<compile_context>
chip_gen: v7x
topology: tpu7x:2x2x1
jax: 0.10.0
libtpu: 0.0.40
codegen_flags: <defaults>
</compile_context>

<pallas_src>
import jax
import jax.numpy as jnp
from jax import lax
from jax.experimental import pallas as pl
from jax.experimental.pallas import tpu as pltpu


NEG = -1e30  # Python float: stands in for -inf padding of the max pools.


# ------------------------------ Pallas kernel -------------------------------

def _make_spp_kernel(H, W, tc, G):
    """Fused cv1 + {5,9,13} max-pool + implicit concat + cv2.

    One grid step = one image (axis 0) x one cv1-channel group (axis 1).
    All spatial maps live in the flat (H*W, tc) layout end-to-end.
    """
    HW = H * W

    def kernel(x_ref, w1_ref, s1_ref, b1_ref, w2_ref, s2_ref, b2_ref,
               o_ref, cat_ref):
        g = pl.program_id(1)

        # Additive "-inf" padding masks for the pooling shifts, built once per
        # grid step from iota (tiny (HW,1) -> (HW,tc) broadcasts).
        idx = lax.broadcasted_iota(jnp.int32, (HW, 1), 0)
        col = idx % W

        def amask(valid):
            return jnp.broadcast_to(jnp.where(valid, 0.0, NEG), (HW, tc))

        w_shifts = ((-2, amask(col >= 2)), (-1, amask(col >= 1)),
                    (1, amask(col <= W - 2)), (2, amask(col <= W - 3)))
        h_shifts = ((-2 * W, amask(idx >= 2 * W)), (-W, amask(idx >= W)),
                    (W, amask(idx <= HW - W - 1)),
                    (2 * W, amask(idx <= HW - 2 * W - 1)))

        def pool5(a):
            # Separable 5x5, stride-1, "same" (-inf padded) max pool on the
            # flat (HW, tc) map: columns w-2..w+2, then rows h-2..h+2.
            r = a
            for d, m in w_shifts:
                r = jnp.maximum(r, jnp.roll(a, -d, axis=0) + m)
            out = r
            for d, m in h_shifts:
                out = jnp.maximum(out, jnp.roll(r, -d, axis=0) + m)
            return out

        # ---- cv1 (this channel group): bf16 matmul, f32 accum, BN + SiLU ----
        y1 = jnp.dot(x_ref[0], w1_ref[g], preferred_element_type=jnp.float32)
        y1 = y1 * s1_ref[g] + b1_ref[g]
        y1 = y1 * jax.nn.sigmoid(y1)                   # SiLU, f32

        # ---- pyramid: 5, 9 = 5∘5, 13 = 5∘5∘5 (all stride-1 "same") ----
        p5 = pool5(y1)
        p9 = pool5(p5)
        p13 = pool5(p9)

        # ---- implicit concat: stage 4 branches into (HW, 4*tc) bf16 ----
        cat_ref[:, 0 * tc:1 * tc] = y1.astype(jnp.bfloat16)
        cat_ref[:, 1 * tc:2 * tc] = p5.astype(jnp.bfloat16)
        cat_ref[:, 2 * tc:3 * tc] = p9.astype(jnp.bfloat16)
        cat_ref[:, 3 * tc:4 * tc] = p13.astype(jnp.bfloat16)

        # ---- cv2 contribution: one (HW, 4*tc) @ (4*tc, c2) matmul ----
        part = jnp.dot(cat_ref[...], w2_ref[g],
                       preferred_element_type=jnp.float32)

        # ---- accumulate directly into the resident f32 output block ----
        @pl.when(g == 0)
        def _():
            o_ref[0] = part

        @pl.when(g > 0)
        def _():
            o_ref[0] = o_ref[0] + part

        # ---- cv2 BN + SiLU epilogue once the group reduction is done ----
        @pl.when(g == G - 1)
        def _():
            z = o_ref[0] * s2_ref[...] + b2_ref[...]
            o_ref[0] = z * jax.nn.sigmoid(z)

    return kernel


# ------------------------------ Wrapper (glue) -------------------------------

def spp_forward(x_nhwc, params):
    """SPP forward. x_nhwc: (N, H, W, c1) f32 -> (N, H, W, c2) f32."""
    N, H, W, c1 = x_nhwc.shape
    w1 = params["w1"]                     # (c1, c_)
    w2 = params["w2"]                     # (4*c_, c2), rows [y, m5, m9, m13]
    s1, b1 = params["s1"], params["b1"]   # (c_,)  folded BN of cv1
    s2, b2 = params["s2"], params["b2"]   # (c2,)  folded BN of cv2
    c_ = w1.shape[1]
    c2 = w2.shape[1]
    HW = H * W

    # Channel-group tile for the reduction axis: 128 is MXU-friendly on every
    # generation (v5e MXU is 128x128) and bounds per-step VMEM.
    tc = 128 if c_ % 128 == 0 else c_
    G = c_ // tc

    f32, bf16 = jnp.float32, jnp.bfloat16

    # bf16 activations / weights (MXU-native), f32 BN parameters.
    x2d = x_nhwc.reshape(N, HW, c1).astype(bf16)
    w1g = w1.reshape(c1, G, tc).transpose(1, 0, 2).astype(bf16)      # (G,c1,tc)
    s1g = s1.astype(f32).reshape(G, 1, tc)
    b1g = b1.astype(f32).reshape(G, 1, tc)
    # cv2 weight regrouped so each group's 4*tc K-rows are one contiguous slab
    # ordered [y_g, m5_g, m9_g, m13_g]  ->  (G, 4*tc, c2).
    w2g = (w2.reshape(4, G, tc, c2).transpose(1, 0, 2, 3)
             .reshape(G, 4 * tc, c2).astype(bf16))
    s2r = s2.astype(f32).reshape(1, c2)
    b2r = b2.astype(f32).reshape(1, c2)

    kernel = _make_spp_kernel(H, W, tc, G)
    out = pl.pallas_call(
        kernel,
        out_shape=jax.ShapeDtypeStruct((N, HW, c2), f32),
        grid_spec=pltpu.PrefetchScalarGridSpec(
            num_scalar_prefetch=0,
            grid=(N, G),                           # (image, channel group)
            in_specs=[
                # Per-image activations (re-DMA only when n changes).
                pl.BlockSpec((1, HW, c1), lambda n, g: (n, 0, 0)),
                # Weights / BN params: full-array blocks with constant index
                # maps -> loaded once, resident in VMEM for the whole grid.
                pl.BlockSpec((G, c1, tc), lambda n, g: (0, 0, 0)),
                pl.BlockSpec((G, 1, tc), lambda n, g: (0, 0, 0)),
                pl.BlockSpec((G, 1, tc), lambda n, g: (0, 0, 0)),
                pl.BlockSpec((G, 4 * tc, c2), lambda n, g: (0, 0, 0)),
                pl.BlockSpec((1, c2), lambda n, g: (0, 0)),
                pl.BlockSpec((1, c2), lambda n, g: (0, 0)),
            ],
            # Output block is the accumulator: index independent of g.
            out_specs=pl.BlockSpec((1, HW, c2), lambda n, g: (n, 0, 0)),
            scratch_shapes=[pltpu.VMEM((HW, 4 * tc), bf16)],
        ),
        compiler_params=pltpu.CompilerParams(
            dimension_semantics=("parallel", "arbitrary"),
            vmem_limit_bytes=40 * 1024 * 1024,
        ),
    )(x2d, w1g, s1g, b1g, w2g, s2r, b2r)
    return out.reshape(N, H, W, c2)


# ----------------------------- Pure-JAX reference ----------------------------

def ref_forward(x_nhwc, params, *, bf16_dot_inputs=False):
    """Reference SPP.  bf16_dot_inputs=True quantizes the matmul operands to
    bf16 (what the kernel feeds the MXU) while accumulating in f32."""
    f32 = jnp.float32
    q = ((lambda a: a.astype(jnp.bfloat16).astype(f32))
         if bf16_dot_inputs else (lambda a: a))
    w1 = params["w1"][None, None]         # (1,1,c1,c_)  HWIO
    w2 = params["w2"][None, None]         # (1,1,4c_,c2) HWIO
    s1, b1, s2, b2 = params["s1"], params["b1"], params["s2"], params["b2"]
    dn = ("NHWC", "HWIO", "NHWC")

    y = lax.conv_general_dilated(q(x_nhwc), q(w1), (1, 1), "VALID",
                                 dimension_numbers=dn,
                                 precision=lax.Precision.HIGHEST)
    y = y * s1 + b1
    y = y * jax.nn.sigmoid(y)

    def maxpool_same(a, k):
        p = k // 2
        return lax.reduce_window(a, -jnp.inf, lax.max,
                                 (1, k, k, 1), (1, 1, 1, 1),
                                 [(0, 0), (p, p), (p, p), (0, 0)])

    cat = jnp.concatenate(
        [y, maxpool_same(y, 5), maxpool_same(y, 9), maxpool_same(y, 13)],
        axis=-1)
    z = lax.conv_general_dilated(q(cat), q(w2), (1, 1), "VALID",
                                 dimension_numbers=dn,
                                 precision=lax.Precision.HIGHEST)
    z = z * s2 + b2
    z = z * jax.nn.sigmoid(z)
    return z


# ----------------------------------- main ------------------------------------

if __name__ == "__main__":
    key = jax.random.PRNGKey(0)
    N, C1, C2, H, W = 2, 4, 4, 16, 16
    c_ = C1 // 2                       # SPP hidden width
    eps = 1e-5                         # nn.BatchNorm2d default

    keys = jax.random.split(key, 11)
    x_nchw = jax.random.normal(keys[0], (N, C1, H, W), jnp.float32)

    # Deterministic synthetic parameters.
    w1 = jax.random.normal(keys[1], (C1, c_), jnp.float32) * 0.2        # cv1 1x1
    w2 = jax.random.normal(keys[2], (4 * c_, C2), jnp.float32) * 0.2    # cv2 1x1
    gamma1 = 1.0 + 0.1 * jax.random.normal(keys[3], (c_,), jnp.float32)
    beta1 = 0.1 * jax.random.normal(keys[4], (c_,), jnp.float32)
    mean1 = 0.1 * jax.random.normal(keys[5], (c_,), jnp.float32)
    var1 = jnp.abs(jax.random.normal(keys[6], (c_,), jnp.float32)) + 0.5
    gamma2 = 1.0 + 0.1 * jax.random.normal(keys[7], (C2,), jnp.float32)
    beta2 = 0.1 * jax.random.normal(keys[8], (C2,), jnp.float32)
    mean2 = 0.1 * jax.random.normal(keys[9], (C2,), jnp.float32)
    var2 = jnp.abs(jax.random.normal(keys[10], (C2,), jnp.float32)) + 0.5

    # Fold BN (inference mode) into per-channel scale/bias.
    s1 = gamma1 / jnp.sqrt(var1 + eps)
    b1 = beta1 - mean1 * s1
    s2 = gamma2 / jnp.sqrt(var2 + eps)
    b2 = beta2 - mean2 * s2

    params = {"w1": w1, "w2": w2, "s1": s1, "b1": b1, "s2": s2, "b2": b2}

    x_nhwc = jnp.transpose(x_nchw, (0, 2, 3, 1))
    out_nhwc = spp_forward(x_nhwc, params)
    out_nchw = jnp.transpose(out_nhwc, (0, 3, 1, 2))
    jax.block_until_ready(out_nchw)

    # Same-precision reference (bf16 MXU operands, f32 accumulation): tight.
    ref_bf = jnp.transpose(
        ref_forward(x_nhwc, params, bf16_dot_inputs=True), (0, 3, 1, 2))
    # Full-f32 module math: tolerance set by the bf16 quantization of inputs.
    ref_fp = jnp.transpose(
        ref_forward(x_nhwc, params, bf16_dot_inputs=False), (0, 3, 1, 2))

    assert out_nchw.shape == (N, C2, H, W)
    assert jnp.allclose(out_nchw, ref_bf, atol=5e-3, rtol=5e-3), \
        "mismatch vs bf16-operand reference"
    assert jnp.allclose(out_nchw, ref_fp, atol=5e-2, rtol=5e-2), \
        "mismatch vs f32 reference"

    print("KERNEL_OK")
</pallas_src>

<mosaic_0001>
module attributes {stable_mosaic.version = 11 : i64} {
  func.func @kernel(%arg0: i32, %arg1: i32, %arg2: memref<1x256x4xbf16, #tpu.memory_space<vmem>>, %arg3: memref<1x4x2xbf16, #tpu.memory_space<vmem>>, %arg4: memref<1x1x2xf32, #tpu.memory_space<vmem>>, %arg5: memref<1x1x2xf32, #tpu.memory_space<vmem>>, %arg6: memref<1x8x4xbf16, #tpu.memory_space<vmem>>, %arg7: memref<1x4xf32, #tpu.memory_space<vmem>>, %arg8: memref<1x4xf32, #tpu.memory_space<vmem>>, %arg9: memref<1x256x4xf32, #tpu.memory_space<vmem>>, %arg10: memref<256x8xbf16, #tpu.memory_space<vmem>>) attributes {dimension_semantics = [#tpu.dimension_semantics<parallel>, #tpu.dimension_semantics<arbitrary>], iteration_bounds = array<i64: 2, 1>, scalar_prefetch = 0 : i64, scratch_operands = 1 : i64, tpu.core_type = #tpu.core_type<tc>, window_params = [{transform_indices = @transform_0, window_bounds = array<i64: 1, 256, 4>}, {pipeline_mode = #tpu.pipeline_mode<synchronous>, transform_indices = @transform_1, window_bounds = array<i64: 1, 4, 2>}, {pipeline_mode = #tpu.pipeline_mode<synchronous>, transform_indices = @transform_2, window_bounds = array<i64: 1, 1, 2>}, {pipeline_mode = #tpu.pipeline_mode<synchronous>, transform_indices = @transform_3, window_bounds = array<i64: 1, 1, 2>}, {pipeline_mode = #tpu.pipeline_mode<synchronous>, transform_indices = @transform_4, window_bounds = array<i64: 1, 8, 4>}, {pipeline_mode = #tpu.pipeline_mode<synchronous>, transform_indices = @transform_5, window_bounds = array<i64: 1, 4>}, {pipeline_mode = #tpu.pipeline_mode<synchronous>, transform_indices = @transform_6, window_bounds = array<i64: 1, 4>}, {transform_indices = @transform_7, window_bounds = array<i64: 1, 256, 4>}]} {
    %0 = tpu.iota {dimensions = array<i32: 0>} : vector<256x1xi32>
    %c16_i32 = arith.constant 16 : i32
    %c0_i32 = arith.constant 0 : i32
    %1 = arith.cmpi eq, %c16_i32, %c0_i32 : i32
    %c1_i32 = arith.constant 1 : i32
    %2 = arith.select %1, %c1_i32, %c16_i32 : i32
    %3 = vector.broadcast %2 : i32 to vector<256x1xi32>
    %4 = arith.remsi %0, %3 : vector<256x1xi32>
    %c0_i32_0 = arith.constant 0 : i32
    %5 = vector.broadcast %c0_i32_0 : i32 to vector<256x1xi32>
    %6 = arith.cmpi ne, %4, %5 : vector<256x1xi32>
    %c0_i32_1 = arith.constant 0 : i32
    %7 = vector.broadcast %c0_i32_1 : i32 to vector<256x1xi32>
    %8 = arith.cmpi slt, %4, %7 : vector<256x1xi32>
    %c0_i32_2 = arith.constant 0 : i32
    %9 = arith.cmpi slt, %2, %c0_i32_2 : i32
    %10 = vector.broadcast %9 : i1 to vector<256x1xi1>
    %11 = vector.broadcast %10 : vector<256x1xi1> to vector<256x1xi1>
    %12 = arith.xori %8, %11 : vector<256x1xi1>
    %13 = arith.andi %12, %6 : vector<256x1xi1>
    %14 = vector.broadcast %2 : i32 to vector<256x1xi32>
    %15 = arith.addi %4, %14 : vector<256x1xi32>
    %16 = arith.select %13, %15, %4 : vector<256x1xi1>, vector<256x1xi32>
    %c2_i32 = arith.constant 2 : i32
    %17 = vector.broadcast %c2_i32 : i32 to vector<256x1xi32>
    %18 = arith.cmpi sge, %16, %17 : vector<256x1xi32>
    %cst = arith.constant 0.000000e+00 : f32
    %cst_3 = arith.constant -1.000000e+30 : f32
    %19 = vector.broadcast %cst : f32 to vector<256x1xf32>
    %20 = vector.broadcast %cst_3 : f32 to vector<256x1xf32>
    %21 = arith.select %18, %19, %20 : vector<256x1xi1>, vector<256x1xf32>
    %22 = vector.shape_cast %21 : vector<256x1xf32> to vector<256x1xf32>
    %23 = vector.broadcast %22 : vector<256x1xf32> to vector<256x2xf32>
    %c1_i32_4 = arith.constant 1 : i32
    %24 = vector.broadcast %c1_i32_4 : i32 to vector<256x1xi32>
    %25 = arith.cmpi sge, %16, %24 : vector<256x1xi32>
    %cst_5 = arith.constant 0.000000e+00 : f32
    %cst_6 = arith.constant -1.000000e+30 : f32
    %26 = vector.broadcast %cst_5 : f32 to vector<256x1xf32>
    %27 = vector.broadcast %cst_6 : f32 to vector<256x1xf32>
    %28 = arith.select %25, %26, %27 : vector<256x1xi1>, vector<256x1xf32>
    %29 = vector.shape_cast %28 : vector<256x1xf32> to vector<256x1xf32>
    %30 = vector.broadcast %29 : vector<256x1xf32> to vector<256x2xf32>
    %c14_i32 = arith.constant 14 : i32
    %31 = vector.broadcast %c14_i32 : i32 to vector<256x1xi32>
    %32 = arith.cmpi sle, %16, %31 : vector<256x1xi32>
    %cst_7 = arith.constant 0.000000e+00 : f32
    %cst_8 = arith.constant -1.000000e+30 : f32
    %33 = vector.broadcast %cst_7 : f32 to vector<256x1xf32>
    %34 = vector.broadcast %cst_8 : f32 to vector<256x1xf32>
    %35 = arith.select %32, %33, %34 : vector<256x1xi1>, vector<256x1xf32>
    %36 = vector.shape_cast %35 : vector<256x1xf32> to vector<256x1xf32>
    %37 = vector.broadcast %36 : vector<256x1xf32> to vector<256x2xf32>
    %c13_i32 = arith.constant 13 : i32
    %38 = vector.broadcast %c13_i32 : i32 to vector<256x1xi32>
    %39 = arith.cmpi sle, %16, %38 : vector<256x1xi32>
    %cst_9 = arith.constant 0.000000e+00 : f32
    %cst_10 = arith.constant -1.000000e+30 : f32
    %40 = vector.broadcast %cst_9 : f32 to vector<256x1xf32>
    %41 = vector.broadcast %cst_10 : f32 to vector<256x1xf32>
    %42 = arith.select %39, %40, %41 : vector<256x1xi1>, vector<256x1xf32>
    %43 = vector.shape_cast %42 : vector<256x1xf32> to vector<256x1xf32>
    %44 = vector.broadcast %43 : vector<256x1xf32> to vector<256x2xf32>
    %c32_i32 = arith.constant 32 : i32
    %45 = vector.broadcast %c32_i32 : i32 to vector<256x1xi32>
    %46 = arith.cmpi sge, %0, %45 : vector<256x1xi32>
    %cst_11 = arith.constant 0.000000e+00 : f32
    %cst_12 = arith.constant -1.000000e+30 : f32
    %47 = vector.broadcast %cst_11 : f32 to vector<256x1xf32>
    %48 = vector.broadcast %cst_12 : f32 to vector<256x1xf32>
    %49 = arith.select %46, %47, %48 : vector<256x1xi1>, vector<256x1xf32>
    %50 = vector.shape_cast %49 : vector<256x1xf32> to vector<256x1xf32>
    %51 = vector.broadcast %50 : vector<256x1xf32> to vector<256x2xf32>
    %c16_i32_13 = arith.constant 16 : i32
    %52 = vector.broadcast %c16_i32_13 : i32 to vector<256x1xi32>
    %53 = arith.cmpi sge, %0, %52 : vector<256x1xi32>
    %cst_14 = arith.constant 0.000000e+00 : f32
    %cst_15 = arith.constant -1.000000e+30 : f32
    %54 = vector.broadcast %cst_14 : f32 to vector<256x1xf32>
    %55 = vector.broadcast %cst_15 : f32 to vector<256x1xf32>
    %56 = arith.select %53, %54, %55 : vector<256x1xi1>, vector<256x1xf32>
    %57 = vector.shape_cast %56 : vector<256x1xf32> to vector<256x1xf32>
    %58 = vector.broadcast %57 : vector<256x1xf32> to vector<256x2xf32>
    %c239_i32 = arith.constant 239 : i32
    %59 = vector.broadcast %c239_i32 : i32 to vector<256x1xi32>
    %60 = arith.cmpi sle, %0, %59 : vector<256x1xi32>
    %cst_16 = arith.constant 0.000000e+00 : f32
    %cst_17 = arith.constant -1.000000e+30 : f32
    %61 = vector.broadcast %cst_16 : f32 to vector<256x1xf32>
    %62 = vector.broadcast %cst_17 : f32 to vector<256x1xf32>
    %63 = arith.select %60, %61, %62 : vector<256x1xi1>, vector<256x1xf32>
    %64 = vector.shape_cast %63 : vector<256x1xf32> to vector<256x1xf32>
    %65 = vector.broadcast %64 : vector<256x1xf32> to vector<256x2xf32>
    %c223_i32 = arith.constant 223 : i32
    %66 = vector.broadcast %c223_i32 : i32 to vector<256x1xi32>
    %67 = arith.cmpi sle, %0, %66 : vector<256x1xi32>
    %cst_18 = arith.constant 0.000000e+00 : f32
    %cst_19 = arith.constant -1.000000e+30 : f32
    %68 = vector.broadcast %cst_18 : f32 to vector<256x1xf32>
    %69 = vector.broadcast %cst_19 : f32 to vector<256x1xf32>
    %70 = arith.select %67, %68, %69 : vector<256x1xi1>, vector<256x1xf32>
    %71 = vector.shape_cast %70 : vector<256x1xf32> to vector<256x1xf32>
    %72 = vector.broadcast %71 : vector<256x1xf32> to vector<256x2xf32>
    %c0 = arith.constant 0 : index
    %c0_20 = arith.constant 0 : index
    %c0_21 = arith.constant 0 : index
    %73 = vector.load %arg2[%c0, %c0_20, %c0_21] : memref<1x256x4xbf16, #tpu.memory_space<vmem>>, vector<1x256x4xbf16>
    %74 = vector.shape_cast %73 : vector<1x256x4xbf16> to vector<256x4xbf16>
    %75 = arith.index_cast %arg1 : i32 to index
    %c0_22 = arith.constant 0 : index
    %c0_23 = arith.constant 0 : index
    %76 = vector.load %arg3[%75, %c0_22, %c0_23] : memref<1x4x2xbf16, #tpu.memory_space<vmem>>, vector<1x4x2xbf16>
    %77 = vector.shape_cast %76 : vector<1x4x2xbf16> to vector<4x2xbf16>
    %cst_24 = arith.constant dense<0.000000e+00> : vector<256x2xf32>
    %78 = tpu.matmul %74, %77, %cst_24 {dimension_numbers = #tpu.dot_dimension_numbers<[1], [0], [0], [1], [0, 0, 1, 1], [], []>} : vector<256x4xbf16>, vector<4x2xbf16>, vector<256x2xf32> -> vector<256x2xf32>
    %79 = arith.index_cast %arg1 : i32 to index
    %c0_25 = arith.constant 0 : index
    %c0_26 = arith.constant 0 : index
    %80 = vector.load %arg4[%79, %c0_25, %c0_26] : memref<1x1x2xf32, #tpu.memory_space<vmem>>, vector<1x1x2xf32>
    %81 = vector.shape_cast %80 : vector<1x1x2xf32> to vector<1x2xf32>
    %82 = vector.broadcast %81 : vector<1x2xf32> to vector<256x2xf32>
    %83 = arith.mulf %78, %82 : vector<256x2xf32>
    %84 = arith.index_cast %arg1 : i32 to index
    %c0_27 = arith.constant 0 : index
    %c0_28 = arith.constant 0 : index
    %85 = vector.load %arg5[%84, %c0_27, %c0_28] : memref<1x1x2xf32, #tpu.memory_space<vmem>>, vector<1x1x2xf32>
    %86 = vector.shape_cast %85 : vector<1x1x2xf32> to vector<1x2xf32>
    %87 = vector.broadcast %86 : vector<1x2xf32> to vector<256x2xf32>
    %88 = arith.addf %83, %87 : vector<256x2xf32>
    %89 = arith.negf %88 : vector<256x2xf32>
    %90 = math.exp %89 : vector<256x2xf32>
    %cst_29 = arith.constant 1.000000e+00 : f32
    %91 = vector.broadcast %cst_29 : f32 to vector<256x2xf32>
    %92 = arith.addf %91, %90 : vector<256x2xf32>
    %93 = arith.divf %91, %92 : vector<256x2xf32>
    %94 = arith.mulf %88, %93 : vector<256x2xf32>
    %95 = vector.extract_strided_slice %94 {offsets = [254, 0], sizes = [2, 2], strides = [1, 1]} : vector<256x2xf32> to vector<2x2xf32>
    %96 = vector.extract_strided_slice %94 {offsets = [0, 0], sizes = [254, 2], strides = [1, 1]} : vector<256x2xf32> to vector<254x2xf32>
    %97 = tpu.concatenate %95, %96 in 0 : vector<2x2xf32>, vector<254x2xf32> -> vector<256x2xf32>
    %98 = arith.addf %97, %23 : vector<256x2xf32>
    %99 = arith.maximumf %94, %98 : vector<256x2xf32>
    %100 = vector.extract_strided_slice %94 {offsets = [255, 0], sizes = [1, 2], strides = [1, 1]} : vector<256x2xf32> to vector<1x2xf32>
    %101 = vector.extract_strided_slice %94 {offsets = [0, 0], sizes = [255, 2], strides = [1, 1]} : vector<256x2xf32> to vector<255x2xf32>
    %102 = tpu.concatenate %100, %101 in 0 : vector<1x2xf32>, vector<255x2xf32> -> vector<256x2xf32>
    %103 = arith.addf %102, %30 : vector<256x2xf32>
    %104 = arith.maximumf %99, %103 : vector<256x2xf32>
    %105 = vector.extract_strided_slice %94 {offsets = [1, 0], sizes = [255, 2], strides = [1, 1]} : vector<256x2xf32> to vector<255x2xf32>
    %106 = vector.extract_strided_slice %94 {offsets = [0, 0], sizes = [1, 2], strides = [1, 1]} : vector<256x2xf32> to vector<1x2xf32>
    %107 = tpu.concatenate %105, %106 in 0 : vector<255x2xf32>, vector<1x2xf32> -> vector<256x2xf32>
    %108 = arith.addf %107, %37 : vector<256x2xf32>
    %109 = arith.maximumf %104, %108 : vector<256x2xf32>
    %110 = vector.extract_strided_slice %94 {offsets = [2, 0], sizes = [254, 2], strides = [1, 1]} : vector<256x2xf32> to vector<254x2xf32>
    %111 = vector.extract_strided_slice %94 {offsets = [0, 0], sizes = [2, 2], strides = [1, 1]} : vector<256x2xf32> to vector<2x2xf32>
    %112 = tpu.concatenate %110, %111 in 0 : vector<254x2xf32>, vector<2x2xf32> -> vector<256x2xf32>
    %113 = arith.addf %112, %44 : vector<256x2xf32>
    %114 = arith.maximumf %109, %113 : vector<256x2xf32>
    %115 = vector.extract_strided_slice %114 {offsets = [224, 0], sizes = [32, 2], strides = [1, 1]} : vector<256x2xf32> to vector<32x2xf32>
    %116 = vector.extract_strided_slice %114 {offsets = [0, 0], sizes = [224, 2], strides = [1, 1]} : vector<256x2xf32> to vector<224x2xf32>
    %117 = tpu.concatenate %115, %116 in 0 : vector<32x2xf32>, vector<224x2xf32> -> vector<256x2xf32>
    %118 = arith.addf %117, %51 : vector<256x2xf32>
    %119 = arith.maximumf %114, %118 : vector<256x2xf32>
    %120 = vector.extract_strided_slice %114 {offsets = [240, 0], sizes = [16, 2], strides = [1, 1]} : vector<256x2xf32> to vector<16x2xf32>
    %121 = vector.extract_strided_slice %114 {offsets = [0, 0], sizes = [240, 2], strides = [1, 1]} : vector<256x2xf32> to vector<240x2xf32>
    %122 = tpu.concatenate %120, %121 in 0 : vector<16x2xf32>, vector<240x2xf32> -> vector<256x2xf32>
    %123 = arith.addf %122, %58 : vector<256x2xf32>
    %124 = arith.maximumf %119, %123 : vector<256x2xf32>
    %125 = vector.extract_strided_slice %114 {offsets = [16, 0], sizes = [240, 2], strides = [1, 1]} : vector<256x2xf32> to vector<240x2xf32>
    %126 = vector.extract_strided_slice %114 {offsets = [0, 0], sizes = [16, 2], strides = [1, 1]} : vector<256x2xf32> to vector<16x2xf32>
    %127 = tpu.concatenate %125, %126 in 0 : vector<240x2xf32>, vector<16x2xf32> -> vector<256x2xf32>
    %128 = arith.addf %127, %65 : vector<256x2xf32>
    %129 = arith.maximumf %124, %128 : vector<256x2xf32>
    %130 = vector.extract_strided_slice %114 {offsets = [32, 0], sizes = [224, 2], strides = [1, 1]} : vector<256x2xf32> to vector<224x2xf32>
    %131 = vector.extract_strided_slice %114 {offsets = [0, 0], sizes = [32, 2], strides = [1, 1]} : vector<256x2xf32> to vector<32x2xf32>
    %132 = tpu.concatenate %130, %131 in 0 : vector<224x2xf32>, vector<32x2xf32> -> vector<256x2xf32>
    %133 = arith.addf %132, %72 : vector<256x2xf32>
    %134 = arith.maximumf %129, %133 : vector<256x2xf32>
    %135 = vector.extract_strided_slice %134 {offsets = [254, 0], sizes = [2, 2], strides = [1, 1]} : vector<256x2xf32> to vector<2x2xf32>
    %136 = vector.extract_strided_slice %134 {offsets = [0, 0], sizes = [254, 2], strides = [1, 1]} : vector<256x2xf32> to vector<254x2xf32>
    %137 = tpu.concatenate %135, %136 in 0 : vector<2x2xf32>, vector<254x2xf32> -> vector<256x2xf32>
    %138 = arith.addf %137, %23 : vector<256x2xf32>
    %139 = arith.maximumf %134, %138 : vector<256x2xf32>
    %140 = vector.extract_strided_slice %134 {offsets = [255, 0], sizes = [1, 2], strides = [1, 1]} : vector<256x2xf32> to vector<1x2xf32>
    %141 = vector.extract_strided_slice %134 {offsets = [0, 0], sizes = [255, 2], strides = [1, 1]} : vector<256x2xf32> to vector<255x2xf32>
    %142 = tpu.concatenate %140, %141 in 0 : vector<1x2xf32>, vector<255x2xf32> -> vector<256x2xf32>
    %143 = arith.addf %142, %30 : vector<256x2xf32>
    %144 = arith.maximumf %139, %143 : vector<256x2xf32>
    %145 = vector.extract_strided_slice %134 {offsets = [1, 0], sizes = [255, 2], strides = [1, 1]} : vector<256x2xf32> to vector<255x2xf32>
    %146 = vector.extract_strided_slice %134 {offsets = [0, 0], sizes = [1, 2], strides = [1, 1]} : vector<256x2xf32> to vector<1x2xf32>
    %147 = tpu.concatenate %145, %146 in 0 : vector<255x2xf32>, vector<1x2xf32> -> vector<256x2xf32>
    %148 = arith.addf %147, %37 : vector<256x2xf32>
    %149 = arith.maximumf %144, %148 : vector<256x2xf32>
    %150 = vector.extract_strided_slice %134 {offsets = [2, 0], sizes = [254, 2], strides = [1, 1]} : vector<256x2xf32> to vector<254x2xf32>
    %151 = vector.extract_strided_slice %134 {offsets = [0, 0], sizes = [2, 2], strides = [1, 1]} : vector<256x2xf32> to vector<2x2xf32>
    %152 = tpu.concatenate %150, %151 in 0 : vector<254x2xf32>, vector<2x2xf32> -> vector<256x2xf32>
    %153 = arith.addf %152, %44 : vector<256x2xf32>
    %154 = arith.maximumf %149, %153 : vector<256x2xf32>
    %155 = vector.extract_strided_slice %154 {offsets = [224, 0], sizes = [32, 2], strides = [1, 1]} : vector<256x2xf32> to vector<32x2xf32>
    %156 = vector.extract_strided_slice %154 {offsets = [0, 0], sizes = [224, 2], strides = [1, 1]} : vector<256x2xf32> to vector<224x2xf32>
    %157 = tpu.concatenate %155, %156 in 0 : vector<32x2xf32>, vector<224x2xf32> -> vector<256x2xf32>
    %158 = arith.addf %157, %51 : vector<256x2xf32>
    %159 = arith.maximumf %154, %158 : vector<256x2xf32>
    %160 = vector.extract_strided_slice %154 {offsets = [240, 0], sizes = [16, 2], strides = [1, 1]} : vector<256x2xf32> to vector<16x2xf32>
    %161 = vector.extract_strided_slice %154 {offsets = [0, 0], sizes = [240, 2], strides = [1, 1]} : vector<256x2xf32> to vector<240x2xf32>
    %162 = tpu.concatenate %160, %161 in 0 : vector<16x2xf32>, vector<240x2xf32> -> vector<256x2xf32>
    %163 = arith.addf %162, %58 : vector<256x2xf32>
    %164 = arith.maximumf %159, %163 : vector<256x2xf32>
    %165 = vector.extract_strided_slice %154 {offsets = [16, 0], sizes = [240, 2], strides = [1, 1]} : vector<256x2xf32> to vector<240x2xf32>
    %166 = vector.extract_strided_slice %154 {offsets = [0, 0], sizes = [16, 2], strides = [1, 1]} : vector<256x2xf32> to vector<16x2xf32>
    %167 = tpu.concatenate %165, %166 in 0 : vector<240x2xf32>, vector<16x2xf32> -> vector<256x2xf32>
    %168 = arith.addf %167, %65 : vector<256x2xf32>
    %169 = arith.maximumf %164, %168 : vector<256x2xf32>
    %170 = vector.extract_strided_slice %154 {offsets = [32, 0], sizes = [224, 2], strides = [1, 1]} : vector<256x2xf32> to vector<224x2xf32>
    %171 = vector.extract_strided_slice %154 {offsets = [0, 0], sizes = [32, 2], strides = [1, 1]} : vector<256x2xf32> to vector<32x2xf32>
    %172 = tpu.concatenate %170, %171 in 0 : vector<224x2xf32>, vector<32x2xf32> -> vector<256x2xf32>
    %173 = arith.addf %172, %72 : vector<256x2xf32>
    %174 = arith.maximumf %169, %173 : vector<256x2xf32>
    %175 = vector.extract_strided_slice %174 {offsets = [254, 0], sizes = [2, 2], strides = [1, 1]} : vector<256x2xf32> to vector<2x2xf32>
    %176 = vector.extract_strided_slice %174 {offsets = [0, 0], sizes = [254, 2], strides = [1, 1]} : vector<256x2xf32> to vector<254x2xf32>
    %177 = tpu.concatenate %175, %176 in 0 : vector<2x2xf32>, vector<254x2xf32> -> vector<256x2xf32>
    %178 = arith.addf %177, %23 : vector<256x2xf32>
    %179 = arith.maximumf %174, %178 : vector<256x2xf32>
    %180 = vector.extract_strided_slice %174 {offsets = [255, 0], sizes = [1, 2], strides = [1, 1]} : vector<256x2xf32> to vector<1x2xf32>
    %181 = vector.extract_strided_slice %174 {offsets = [0, 0], sizes = [255, 2], strides = [1, 1]} : vector<256x2xf32> to vector<255x2xf32>
    %182 = tpu.concatenate %180, %181 in 0 : vector<1x2xf32>, vector<255x2xf32> -> vector<256x2xf32>
    %183 = arith.addf %182, %30 : vector<256x2xf32>
    %184 = arith.maximumf %179, %183 : vector<256x2xf32>
    %185 = vector.extract_strided_slice %174 {offsets = [1, 0], sizes = [255, 2], strides = [1, 1]} : vector<256x2xf32> to vector<255x2xf32>
    %186 = vector.extract_strided_slice %174 {offsets = [0, 0], sizes = [1, 2], strides = [1, 1]} : vector<256x2xf32> to vector<1x2xf32>
    %187 = tpu.concatenate %185, %186 in 0 : vector<255x2xf32>, vector<1x2xf32> -> vector<256x2xf32>
    %188 = arith.addf %187, %37 : vector<256x2xf32>
    %189 = arith.maximumf %184, %188 : vector<256x2xf32>
    %190 = vector.extract_strided_slice %174 {offsets = [2, 0], sizes = [254, 2], strides = [1, 1]} : vector<256x2xf32> to vector<254x2xf32>
    %191 = vector.extract_strided_slice %174 {offsets = [0, 0], sizes = [2, 2], strides = [1, 1]} : vector<256x2xf32> to vector<2x2xf32>
    %192 = tpu.concatenate %190, %191 in 0 : vector<254x2xf32>, vector<2x2xf32> -> vector<256x2xf32>
    %193 = arith.addf %192, %44 : vector<256x2xf32>
    %194 = arith.maximumf %189, %193 : vector<256x2xf32>
    %195 = vector.extract_strided_slice %194 {offsets = [224, 0], sizes = [32, 2], strides = [1, 1]} : vector<256x2xf32> to vector<32x2xf32>
    %196 = vector.extract_strided_slice %194 {offsets = [0, 0], sizes = [224, 2], strides = [1, 1]} : vector<256x2xf32> to vector<224x2xf32>
    %197 = tpu.concatenate %195, %196 in 0 : vector<32x2xf32>, vector<224x2xf32> -> vector<256x2xf32>
    %198 = arith.addf %197, %51 : vector<256x2xf32>
    %199 = arith.maximumf %194, %198 : vector<256x2xf32>
    %200 = vector.extract_strided_slice %194 {offsets = [240, 0], sizes = [16, 2], strides = [1, 1]} : vector<256x2xf32> to vector<16x2xf32>
    %201 = vector.extract_strided_slice %194 {offsets = [0, 0], sizes = [240, 2], strides = [1, 1]} : vector<256x2xf32> to vector<240x2xf32>
    %202 = tpu.concatenate %200, %201 in 0 : vector<16x2xf32>, vector<240x2xf32> -> vector<256x2xf32>
    %203 = arith.addf %202, %58 : vector<256x2xf32>
    %204 = arith.maximumf %199, %203 : vector<256x2xf32>
    %205 = vector.extract_strided_slice %194 {offsets = [16, 0], sizes = [240, 2], strides = [1, 1]} : vector<256x2xf32> to vector<240x2xf32>
    %206 = vector.extract_strided_slice %194 {offsets = [0, 0], sizes = [16, 2], strides = [1, 1]} : vector<256x2xf32> to vector<16x2xf32>
    %207 = tpu.concatenate %205, %206 in 0 : vector<240x2xf32>, vector<16x2xf32> -> vector<256x2xf32>
    %208 = arith.addf %207, %65 : vector<256x2xf32>
    %209 = arith.maximumf %204, %208 : vector<256x2xf32>
    %210 = vector.extract_strided_slice %194 {offsets = [32, 0], sizes = [224, 2], strides = [1, 1]} : vector<256x2xf32> to vector<224x2xf32>
    %211 = vector.extract_strided_slice %194 {offsets = [0, 0], sizes = [32, 2], strides = [1, 1]} : vector<256x2xf32> to vector<32x2xf32>
    %212 = tpu.concatenate %210, %211 in 0 : vector<224x2xf32>, vector<32x2xf32> -> vector<256x2xf32>
    %213 = arith.addf %212, %72 : vector<256x2xf32>
    %214 = arith.maximumf %209, %213 : vector<256x2xf32>
    %215 = arith.truncf %94 : vector<256x2xf32> to vector<256x2xbf16>
    %c0_30 = arith.constant 0 : index
    %c0_31 = arith.constant 0 : index
    %216 = vector.load %arg10[%c0_30, %c0_31] : memref<256x8xbf16, #tpu.memory_space<vmem>>, vector<256x2xbf16>
    tpu.vector_store %arg10[%c0_30, %c0_31], %215 {strides = array<i32>} : memref<256x8xbf16, #tpu.memory_space<vmem>>, vector<256x2xbf16>,
    %217 = arith.truncf %134 : vector<256x2xf32> to vector<256x2xbf16>
    %c0_32 = arith.constant 0 : index
    %c2 = arith.constant 2 : index
    %218 = vector.load %arg10[%c0_32, %c2] : memref<256x8xbf16, #tpu.memory_space<vmem>>, vector<256x2xbf16>
    tpu.vector_store %arg10[%c0_32, %c2], %217 {strides = array<i32>} : memref<256x8xbf16, #tpu.memory_space<vmem>>, vector<256x2xbf16>,
    %219 = arith.truncf %174 : vector<256x2xf32> to vector<256x2xbf16>
    %c0_33 = arith.constant 0 : index
    %c4 = arith.constant 4 : index
    %220 = vector.load %arg10[%c0_33, %c4] : memref<256x8xbf16, #tpu.memory_space<vmem>>, vector<256x2xbf16>
    tpu.vector_store %arg10[%c0_33, %c4], %219 {strides = array<i32>} : memref<256x8xbf16, #tpu.memory_space<vmem>>, vector<256x2xbf16>,
    %221 = arith.truncf %214 : vector<256x2xf32> to vector<256x2xbf16>
    %c0_34 = arith.constant 0 : index
    %c6 = arith.constant 6 : index
    %222 = vector.load %arg10[%c0_34, %c6] : memref<256x8xbf16, #tpu.memory_space<vmem>>, vector<256x2xbf16>
    tpu.vector_store %arg10[%c0_34, %c6], %221 {strides = array<i32>} : memref<256x8xbf16, #tpu.memory_space<vmem>>, vector<256x2xbf16>,
    %c0_35 = arith.constant 0 : index
    %c0_36 = arith.constant 0 : index
    %223 = vector.load %arg10[%c0_35, %c0_36] : memref<256x8xbf16, #tpu.memory_space<vmem>>, vector<256x8xbf16>
    %224 = arith.index_cast %arg1 : i32 to index
    %c0_37 = arith.constant 0 : index
    %c0_38 = arith.constant 0 : index
    %225 = vector.load %arg6[%224, %c0_37, %c0_38] : memref<1x8x4xbf16, #tpu.memory_space<vmem>>, vector<1x8x4xbf16>
    %226 = vector.shape_cast %225 : vector<1x8x4xbf16> to vector<8x4xbf16>
    %cst_39 = arith.constant dense<0.000000e+00> : vector<256x4xf32>
    %227 = tpu.matmul %223, %226, %cst_39 {dimension_numbers = #tpu.dot_dimension_numbers<[1], [0], [0], [1], [0, 0, 1, 1], [], []>} : vector<256x8xbf16>, vector<8x4xbf16>, vector<256x4xf32> -> vector<256x4xf32>
    %c0_i32_40 = arith.constant 0 : i32
    %228 = arith.cmpi eq, %arg1, %c0_i32_40 : i32
    %229 = arith.extui %228 : i1 to i32
    %c0_i32_41 = arith.constant 0 : i32
    %230 = arith.cmpi ne, %229, %c0_i32_41 : i32
    scf.if %230 {
      %c0_46 = arith.constant 0 : index
      %c0_47 = arith.constant 0 : index
      %c0_48 = arith.constant 0 : index
      %237 = vector.load %arg9[%c0_46, %c0_47, %c0_48] : memref<1x256x4xf32, #tpu.memory_space<vmem>>, vector<1x256x4xf32>
      %238 = vector.shape_cast %237 : vector<1x256x4xf32> to vector<256x4xf32>
      %239 = vector.shape_cast %227 : vector<256x4xf32> to vector<1x256x4xf32>
      tpu.vector_store %arg9[%c0_46, %c0_47, %c0_48], %239 {strides = array<i32>} : memref<1x256x4xf32, #tpu.memory_space<vmem>>, vector<1x256x4xf32>,
    } else {
    }
    %c0_i32_42 = arith.constant 0 : i32
    %231 = arith.cmpi sgt, %arg1, %c0_i32_42 : i32
    %232 = arith.extui %231 : i1 to i32
    %c0_i32_43 = arith.constant 0 : i32
    %233 = arith.cmpi ne, %232, %c0_i32_43 : i32
    scf.if %233 {
      %c0_46 = arith.constant 0 : index
      %c0_47 = arith.constant 0 : index
      %c0_48 = arith.constant 0 : index
      %237 = vector.load %arg9[%c0_46, %c0_47, %c0_48] : memref<1x256x4xf32, #tpu.memory_space<vmem>>, vector<1x256x4xf32>
      %238 = vector.shape_cast %237 : vector<1x256x4xf32> to vector<256x4xf32>
      %239 = arith.addf %238, %227 : vector<256x4xf32>
      %c0_49 = arith.constant 0 : index
      %c0_50 = arith.constant 0 : index
      %c0_51 = arith.constant 0 : index
      %240 = vector.load %arg9[%c0_49, %c0_50, %c0_51] : memref<1x256x4xf32, #tpu.memory_space<vmem>>, vector<1x256x4xf32>
      %241 = vector.shape_cast %240 : vector<1x256x4xf32> to vector<256x4xf32>
      %242 = vector.shape_cast %239 : vector<256x4xf32> to vector<1x256x4xf32>
      tpu.vector_store %arg9[%c0_49, %c0_50, %c0_51], %242 {strides = array<i32>} : memref<1x256x4xf32, #tpu.memory_space<vmem>>, vector<1x256x4xf32>,
    } else {
    }
    %c0_i32_44 = arith.constant 0 : i32
    %234 = arith.cmpi eq, %arg1, %c0_i32_44 : i32
    %235 = arith.extui %234 : i1 to i32
    %c0_i32_45 = arith.constant 0 : i32
    %236 = arith.cmpi ne, %235, %c0_i32_45 : i32
    scf.if %236 {
      %c0_46 = arith.constant 0 : index
      %c0_47 = arith.constant 0 : index
      %c0_48 = arith.constant 0 : index
      %237 = vector.load %arg9[%c0_46, %c0_47, %c0_48] : memref<1x256x4xf32, #tpu.memory_space<vmem>>, vector<1x256x4xf32>
      %238 = vector.shape_cast %237 : vector<1x256x4xf32> to vector<256x4xf32>
      %c0_49 = arith.constant 0 : index
      %c0_50 = arith.constant 0 : index
      %239 = vector.load %arg7[%c0_49, %c0_50] : memref<1x4xf32, #tpu.memory_space<vmem>>, vector<1x4xf32>
      %240 = vector.broadcast %239 : vector<1x4xf32> to vector<256x4xf32>
      %241 = arith.mulf %238, %240 : vector<256x4xf32>
      %c0_51 = arith.constant 0 : index
      %c0_52 = arith.constant 0 : index
      %242 = vector.load %arg8[%c0_51, %c0_52] : memref<1x4xf32, #tpu.memory_space<vmem>>, vector<1x4xf32>
      %243 = vector.broadcast %242 : vector<1x4xf32> to vector<256x4xf32>
      %244 = arith.addf %241, %243 : vector<256x4xf32>
      %245 = arith.negf %244 : vector<256x4xf32>
      %246 = math.exp %245 : vector<256x4xf32>
      %cst_53 = arith.constant 1.000000e+00 : f32
      %247 = vector.broadcast %cst_53 : f32 to vector<256x4xf32>
      %248 = arith.addf %247, %246 : vector<256x4xf32>
      %249 = arith.divf %247, %248 : vector<256x4xf32>
      %250 = arith.mulf %244, %249 : vector<256x4xf32>
      %c0_54 = arith.constant 0 : index
      %c0_55 = arith.constant 0 : index
      %c0_56 = arith.constant 0 : index
      %251 = vector.load %arg9[%c0_54, %c0_55, %c0_56] : memref<1x256x4xf32, #tpu.memory_space<vmem>>, vector<1x256x4xf32>
      %252 = vector.shape_cast %251 : vector<1x256x4xf32> to vector<256x4xf32>
      %253 = vector.shape_cast %250 : vector<256x4xf32> to vector<1x256x4xf32>
      tpu.vector_store %arg9[%c0_54, %c0_55, %c0_56], %253 {strides = array<i32>} : memref<1x256x4xf32, #tpu.memory_space<vmem>>, vector<1x256x4xf32>,
    } else {
    }
    return
  }
  func.func @transform_0(%arg0: i32, %arg1: i32) -> (i32, i32, i32) {
    %c0_i32 = arith.constant 0 : i32
    %c0_i32_0 = arith.constant 0 : i32
    %c0_i32_1 = arith.constant 0 : i32
    return %arg0, %c0_i32, %c0_i32_0 : i32, i32, i32
  }
  func.func @transform_1(%arg0: i32, %arg1: i32) -> (i32, i32, i32) {
    %c0_i32 = arith.constant 0 : i32
    %c0_i32_0 = arith.constant 0 : i32
    %c0_i32_1 = arith.constant 0 : i32
    %c0_i32_2 = arith.constant 0 : i32
    return %c0_i32, %c0_i32_0, %c0_i32_1 : i32, i32, i32
  }
  func.func @transform_2(%arg0: i32, %arg1: i32) -> (i32, i32, i32) {
    %c0_i32 = arith.constant 0 : i32
    %c0_i32_0 = arith.constant 0 : i32
    %c0_i32_1 = arith.constant 0 : i32
    %c0_i32_2 = arith.constant 0 : i32
    return %c0_i32, %c0_i32_0, %c0_i32_1 : i32, i32, i32
  }
  func.func @transform_3(%arg0: i32, %arg1: i32) -> (i32, i32, i32) {
    %c0_i32 = arith.constant 0 : i32
    %c0_i32_0 = arith.constant 0 : i32
    %c0_i32_1 = arith.constant 0 : i32
    %c0_i32_2 = arith.constant 0 : i32
    return %c0_i32, %c0_i32_0, %c0_i32_1 : i32, i32, i32
  }
  func.func @transform_4(%arg0: i32, %arg1: i32) -> (i32, i32, i32) {
    %c0_i32 = arith.constant 0 : i32
    %c0_i32_0 = arith.constant 0 : i32
    %c0_i32_1 = arith.constant 0 : i32
    %c0_i32_2 = arith.constant 0 : i32
    return %c0_i32, %c0_i32_0, %c0_i32_1 : i32, i32, i32
  }
  func.func @transform_5(%arg0: i32, %arg1: i32) -> (i32, i32) {
    %c0_i32 = arith.constant 0 : i32
    %c0_i32_0 = arith.constant 0 : i32
    %c0_i32_1 = arith.constant 0 : i32
    return %c0_i32, %c0_i32_0 : i32, i32
  }
  func.func @transform_6(%arg0: i32, %arg1: i32) -> (i32, i32) {
    %c0_i32 = arith.constant 0 : i32
    %c0_i32_0 = arith.constant 0 : i32
    %c0_i32_1 = arith.constant 0 : i32
    return %c0_i32, %c0_i32_0 : i32, i32
  }
  func.func @transform_7(%arg0: i32, %arg1: i32) -> (i32, i32, i32) {
    %c0_i32 = arith.constant 0 : i32
    %c0_i32_0 = arith.constant 0 : i32
    %c0_i32_1 = arith.constant 0 : i32
    return %arg0, %c0_i32, %c0_i32_0 : i32, i32, i32
  }
}

</mosaic_0001>

<llo_original>
// kernel: tpu_custom_call.1
$region0: #{tpu_custom_call.1}
  #allocation0 [shape = 'u32[]', space=smem, size = 0x4, offset = 0x4, fixed_abs, tag = 'smem constant byte address 0x4 - core index']
  #allocation1 [shape = 'u32[144,128]{1,0:T(1,128)}', space=vmem, size = 0x12000, scoped, tag = 'internal scratch']
  #allocation2 [shape = 'bf16[256,8]{1,0:T(16,128)(2,1)}', space=vmem, size = 0x10000, scoped, tag = 'scratch operand']
  %s0 = inlined_call_operand.vmem [shape: bf16[2,256,4], index: 0, kind: input, shape index: {}]
  %s1 = inlined_call_operand.vmem [shape: bf16[1,4,2], index: 1, kind: input, shape index: {}]
  %s2 = inlined_call_operand.vmem [shape: f32[1,1,2], index: 2, kind: input, shape index: {}]
  %s3 = inlined_call_operand.vmem [shape: f32[1,1,2], index: 3, kind: input, shape index: {}]
  %s4 = inlined_call_operand.vmem [shape: bf16[1,8,4], index: 4, kind: input, shape index: {}]
  %s5 = inlined_call_operand.vmem [shape: f32[1,4], index: 5, kind: input, shape index: {}]
  %s6 = inlined_call_operand.vmem [shape: f32[1,4], index: 6, kind: input, shape index: {}]
  %s7 = inlined_call_operand.vmem [shape: f32[2,256,4], index: 7, kind: output, shape index: {}]
  %s8 = sld [smem:[#allocation0]]
  $region73: #{tpu_custom_call.1} parent=0
    _
  %s10 = ssub.s32 1, %s8
  %s11 = scalar_select 0, %s10, %s8
  loop: start=0, step=1, limit=4
  $region2: #{tpu_custom_call.1} parent=0 // loop_pre_header
    _
  $region3: #{tpu_custom_call.1} parent=0 // loop_header
    %s13 = sphi 0, %s17
    %p14 = scmp.ge.s32.totalorder %s13, 4
    %s20 = sphi 0, %s32
    %s21 = sphi 0, %s28
    %s22 = sphi 0, %s20
    %s23 = sphi 0, %s21
    %s24 = sphi 0, %s22
    %s25 = sphi 0, %s23
    %s35 = sphi 0, %s37
    %s38 = sphi 0, %s35
    %s39 = sphi 0, %s38
    %s55 = sphi 0, %s39
    %s59 = sphi 0, %s59
    %s61 = sphi 0, %s59
    %s62 = sphi 0, %s61
    %s76 = sphi 0, %s62
    %s80 = sphi 0, %s80
    %s82 = sphi 0, %s80
    %s83 = sphi 0, %s82
    %s97 = sphi 0, %s83
    %s101 = sphi 0, %s101
    %s103 = sphi 0, %s101
    %s104 = sphi 0, %s103
    %s118 = sphi 0, %s104
    %s122 = sphi 0, %s122
    %s124 = sphi 0, %s122
    %s125 = sphi 0, %s124
    %s139 = sphi 0, %s125
    %s143 = sphi 0, %s143
    %s145 = sphi 0, %s143
    %s146 = sphi 0, %s145
    %s160 = sphi 0, %s146
    %s164 = sphi 0, %s164
    %s166 = sphi 0, %s164
    %s167 = sphi 0, %s166
    %s181 = sphi 0, %s167
    %s187 = sphi 0, %s189
    %s190 = sphi 0, %s187
    %s191 = sphi 0, %s190
    %s207 = sphi 0, %s191
  $region4: #{tpu_custom_call.1} parent=0 // loop_header_branch
    %16 = sbr.rel (%p14) target = $region8
  $region5: #{tpu_custom_call.1} parent=0 // loop_body
    %s18 = ssub.s32 %s13, 1
    %s19 = ssub.s32 %s13, 2
    %s26 = sadd.s32 1, %s21
    %p27 = scmp.ge.s32.totalorder %s26, 1
    %s28 = scalar_select %p27, 0, %s26
    %s29 = sadd.s32 1, %s20
    %s30 = scalar_select %p27, %s29, %s20
    %p31 = scmp.ge.s32.totalorder %s30, 2
    %s32 = scalar_select %p31, 0, %s30
    %s33 = ssub.s32 %s20, %s32
    %p34 = scmp.eq.s32.totalorder %s33, 0
    %s36 = sadd.s32 %s35, 1
    %s37 = scalar_select %p34, %s35, %s36
    %p40 = pneg %p34
    %p41 = scmp.eq.s32.totalorder %s13, 1
    %p42 = por %p40, %p41
    %p43 = scmp.ne.s32.totalorder %s35, %s38
    %p44 = scmp.eq.s32.totalorder %s13, 0
    %p45 = por %p43, %p44
    %p46 = scmp.ne.s32.totalorder %s35, %s38
    %p47 = scmp.eq.s32.totalorder %s18, 1
    %p48 = por %p46, %p47
    %p49 = scmp.ne.s32.totalorder %s38, %s39
    %p50 = scmp.eq.s32.totalorder %s18, 0
    %p51 = por %p49, %p50
    %p52 = scmp.ne.s32.totalorder %s38, %s39
    %p53 = scmp.eq.s32.totalorder %s19, 1
    %p54 = por %p52, %p53
    %p56 = scmp.ne.s32.totalorder %s39, %s55
    %p57 = scmp.eq.s32.totalorder %s19, 0
    %p58 = por %p56, %p57
    %s60 = sadd.s32 %s59, 1
    %p63 = scmp.eq.s32.totalorder %s13, 1
    %p64 = scmp.ne.s32.totalorder %s59, %s61
    %p65 = scmp.eq.s32.totalorder %s13, 0
    %p66 = por %p64, %p65
    %p67 = scmp.ne.s32.totalorder %s59, %s61
    %p68 = scmp.eq.s32.totalorder %s18, 1
    %p69 = por %p67, %p68
    %p70 = scmp.ne.s32.totalorder %s61, %s62
    %p71 = scmp.eq.s32.totalorder %s18, 0
    %p72 = por %p70, %p71
    %p73 = scmp.ne.s32.totalorder %s61, %s62
    %p74 = scmp.eq.s32.totalorder %s19, 1
    %p75 = por %p73, %p74
    %p77 = scmp.ne.s32.totalorder %s62, %s76
    %p78 = scmp.eq.s32.totalorder %s19, 0
    %p79 = por %p77, %p78
    %s81 = sadd.s32 %s80, 1
    %p84 = scmp.eq.s32.totalorder %s13, 1
    %p85 = scmp.ne.s32.totalorder %s80, %s82
    %p86 = scmp.eq.s32.totalorder %s13, 0
    %p87 = por %p85, %p86
    %p88 = scmp.ne.s32.totalorder %s80, %s82
    %p89 = scmp.eq.s32.totalorder %s18, 1
    %p90 = por %p88, %p89
    %p91 = scmp.ne.s32.totalorder %s82, %s83
    %p92 = scmp.eq.s32.totalorder %s18, 0
    %p93 = por %p91, %p92
    %p94 = scmp.ne.s32.totalorder %s82, %s83
    %p95 = scmp.eq.s32.totalorder %s19, 1
    %p96 = por %p94, %p95
    %p98 = scmp.ne.s32.totalorder %s83, %s97
    %p99 = scmp.eq.s32.totalorder %s19, 0
    %p100 = por %p98, %p99
    %s102 = sadd.s32 %s101, 1
    %p105 = scmp.eq.s32.totalorder %s13, 1
    %p106 = scmp.ne.s32.totalorder %s101, %s103
    %p107 = scmp.eq.s32.totalorder %s13, 0
    %p108 = por %p106, %p107
    %p109 = scmp.ne.s32.totalorder %s101, %s103
    %p110 = scmp.eq.s32.totalorder %s18, 1
    %p111 = por %p109, %p110
    %p112 = scmp.ne.s32.totalorder %s103, %s104
    %p113 = scmp.eq.s32.totalorder %s18, 0
    %p114 = por %p112, %p113
    %p115 = scmp.ne.s32.totalorder %s103, %s104
    %p116 = scmp.eq.s32.totalorder %s19, 1
    %p117 = por %p115, %p116
    %p119 = scmp.ne.s32.totalorder %s104, %s118
    %p120 = scmp.eq.s32.totalorder %s19, 0
    %p121 = por %p119, %p120
    %s123 = sadd.s32 %s122, 1
    %p126 = scmp.eq.s32.totalorder %s13, 1
    %p127 = scmp.ne.s32.totalorder %s122, %s124
    %p128 = scmp.eq.s32.totalorder %s13, 0
    %p129 = por %p127, %p128
    %p130 = scmp.ne.s32.totalorder %s122, %s124
    %p131 = scmp.eq.s32.totalorder %s18, 1
    %p132 = por %p130, %p131
    %p133 = scmp.ne.s32.totalorder %s124, %s125
    %p134 = scmp.eq.s32.totalorder %s18, 0
    %p135 = por %p133, %p134
    %p136 = scmp.ne.s32.totalorder %s124, %s125
    %p137 = scmp.eq.s32.totalorder %s19, 1
    %p138 = por %p136, %p137
    %p140 = scmp.ne.s32.totalorder %s125, %s139
    %p141 = scmp.eq.s32.totalorder %s19, 0
    %p142 = por %p140, %p141
    %s144 = sadd.s32 %s143, 1
    %p147 = scmp.eq.s32.totalorder %s13, 1
    %p148 = scmp.ne.s32.totalorder %s143, %s145
    %p149 = scmp.eq.s32.totalorder %s13, 0
    %p150 = por %p148, %p149
    %p151 = scmp.ne.s32.totalorder %s143, %s145
    %p152 = scmp.eq.s32.totalorder %s18, 1
    %p153 = por %p151, %p152
    %p154 = scmp.ne.s32.totalorder %s145, %s146
    %p155 = scmp.eq.s32.totalorder %s18, 0
    %p156 = por %p154, %p155
    %p157 = scmp.ne.s32.totalorder %s145, %s146
    %p158 = scmp.eq.s32.totalorder %s19, 1
    %p159 = por %p157, %p158
    %p161 = scmp.ne.s32.totalorder %s146, %s160
    %p162 = scmp.eq.s32.totalorder %s19, 0
    %p163 = por %p161, %p162
    %s165 = sadd.s32 %s164, 1
    %p168 = scmp.eq.s32.totalorder %s13, 1
    %p169 = scmp.ne.s32.totalorder %s164, %s166
    %p170 = scmp.eq.s32.totalorder %s13, 0
    %p171 = por %p169, %p170
    %p172 = scmp.ne.s32.totalorder %s164, %s166
    %p173 = scmp.eq.s32.totalorder %s18, 1
    %p174 = por %p172, %p173
    %p175 = scmp.ne.s32.totalorder %s166, %s167
    %p176 = scmp.eq.s32.totalorder %s18, 0
    %p177 = por %p175, %p176
    %p178 = scmp.ne.s32.totalorder %s166, %s167
    %p179 = scmp.eq.s32.totalorder %s19, 1
    %p180 = por %p178, %p179
    %p182 = scmp.ne.s32.totalorder %s167, %s181
    %p183 = scmp.eq.s32.totalorder %s19, 0
    %p184 = por %p182, %p183
    %s185 = ssub.s32 %s20, %s32
    %p186 = scmp.eq.s32.totalorder %s185, 0
    %s188 = sadd.s32 %s187, 1
    %s189 = scalar_select %p186, %s187, %s188
    %p192 = pneg %p186
    %p193 = scmp.eq.s32.totalorder %s13, 1
    %p194 = por %p192, %p193
    %p195 = scmp.ne.s32.totalorder %s187, %s190
    %p196 = scmp.eq.s32.totalorder %s13, 0
    %p197 = por %p195, %p196
    %p198 = scmp.ne.s32.totalorder %s187, %s190
    %p199 = scmp.eq.s32.totalorder %s18, 1
    %p200 = por %p198, %p199
    %p201 = scmp.ne.s32.totalorder %s190, %s191
    %p202 = scmp.eq.s32.totalorder %s18, 0
    %p203 = por %p201, %p202
    %p204 = scmp.ne.s32.totalorder %s190, %s191
    %p205 = scmp.eq.s32.totalorder %s19, 1
    %p206 = por %p204, %p205
    %p208 = scmp.ne.s32.totalorder %s191, %s207
    %p209 = scmp.eq.s32.totalorder %s19, 0
    %p210 = por %p208, %p209
    %p211 = scmp.le.s32.totalorder 1, %s13
    %p212 = scmp.lt.s32.totalorder %s13, 3
    %p213 = pnand %p211, %p212
    %p214 = pneg %p213
    // Predicated region
    $region9: #{tpu_custom_call.1} parent=5 // pred_check
      _
    $region10: #{tpu_custom_call.1} parent=5 // pred_check_branch
      %216 = sbr.rel (%p213) target = $region12
    $region11: #{tpu_custom_call.1} parent=5 // pred_region
      %s217 = ssub.s32 %s13, 1
      // Predicated region
      $region13: #{tpu_custom_call.1} parent=11 // pred_check
        %p218 = pneg %p72
      $region14: #{tpu_custom_call.1} parent=11 // pred_check_branch
        %220 = sbr.rel (%p218) target = $region16
      $region15: #{tpu_custom_call.1} parent=11 // pred_region
        _
      $region16: #{tpu_custom_call.1} parent=11 // pred_fallthru
        _
      // Predicated region
      $region17: #{tpu_custom_call.1} parent=11 // pred_check
        %p221 = pneg %p93
      $region18: #{tpu_custom_call.1} parent=11 // pred_check_branch
        %223 = sbr.rel (%p221) target = $region20
      $region19: #{tpu_custom_call.1} parent=11 // pred_region
        _
      $region20: #{tpu_custom_call.1} parent=11 // pred_fallthru
        _
      // Predicated region
      $region21: #{tpu_custom_call.1} parent=11 // pred_check
        %p224 = pneg %p114
      $region22: #{tpu_custom_call.1} parent=11 // pred_check_branch
        %226 = sbr.rel (%p224) target = $region24
      $region23: #{tpu_custom_call.1} parent=11 // pred_region
        _
      $region24: #{tpu_custom_call.1} parent=11 // pred_fallthru
        _
      // Predicated region
      $region25: #{tpu_custom_call.1} parent=11 // pred_check
        %p227 = pneg %p135
      $region26: #{tpu_custom_call.1} parent=11 // pred_check_branch
        %229 = sbr.rel (%p227) target = $region28
      $region27: #{tpu_custom_call.1} parent=11 // pred_region
        _
      $region28: #{tpu_custom_call.1} parent=11 // pred_fallthru
        _
      // Predicated region
      $region29: #{tpu_custom_call.1} parent=11 // pred_check
        %p230 = pneg %p156
      $region30: #{tpu_custom_call.1} parent=11 // pred_check_branch
        %232 = sbr.rel (%p230) target = $region32
      $region31: #{tpu_custom_call.1} parent=11 // pred_region
        _
      $region32: #{tpu_custom_call.1} parent=11 // pred_fallthru
        _
      // Predicated region
      $region33: #{tpu_custom_call.1} parent=11 // pred_check
        %p233 = pneg %p177
      $region34: #{tpu_custom_call.1} parent=11 // pred_check_branch
        %235 = sbr.rel (%p233) target = $region36
      $region35: #{tpu_custom_call.1} parent=11 // pred_region
        _
      $region36: #{tpu_custom_call.1} parent=11 // pred_fallthru
        _
    $region12: #{tpu_custom_call.1} parent=5 // pred_fallthru
      _
    %p236 = scmp.lt.s32.totalorder %s13, 2
    // Predicated region
    $region37: #{tpu_custom_call.1} parent=5 // pred_check
      %p237 = pneg %p236
    $region38: #{tpu_custom_call.1} parent=5 // pred_check_branch
      %239 = sbr.rel (%p237) target = $region40
    $region39: #{tpu_custom_call.1} parent=5 // pred_region
      // Predicated region
      $region41: #{tpu_custom_call.1} parent=39 // pred_check
        %p240 = pneg %p45
      $region42: #{tpu_custom_call.1} parent=39 // pred_check_branch
        %242 = sbr.rel (%p240) target = $region44
      $region43: #{tpu_custom_call.1} parent=39 // pred_region
        %p243 = scmp.lt.s32.totalorder %s20, 1
        %s244 = scalar_select %p243, %s20, 1
        %s245 = smul.addr %s244, 32
        %s246 = smul.addr %s245, 4
        %s247 = scalar_lea.vmem %s0, %s246
      $region44: #{tpu_custom_call.1} parent=39 // pred_fallthru
        _
    $region40: #{tpu_custom_call.1} parent=5 // pred_fallthru
      _
    %p248 = scmp.le.s32.totalorder 1, %s13
    %p249 = scmp.lt.s32.totalorder %s13, 3
    %p250 = pnand %p248, %p249
    %p251 = pneg %p250
    // Predicated region
    $region45: #{tpu_custom_call.1} parent=5 // pred_check
      _
    $region46: #{tpu_custom_call.1} parent=5 // pred_check_branch
      %253 = sbr.rel (%p250) target = $region48
    $region47: #{tpu_custom_call.1} parent=5 // pred_region
      %s254 = ssub.s32 %s13, 1
      %p255 = scmp.lt.s32.totalorder %s22, 1
      %s256 = scalar_select %p255, %s22, 1
      %s257 = smul.addr %s256, 32
      %s258 = smul.addr %s257, 4
      %s259 = scalar_lea.vmem %s0, %s258
      %p260 = pneg %p51
      %p261 = pneg %p48
      %p262 = pneg %p72
      %p263 = pneg %p69
      %p264 = pneg %p93
      %p265 = pneg %p90
      %p266 = pneg %p114
      %p267 = pneg %p111
      %p268 = pneg %p135
      %p269 = pneg %p132
      %p270 = pneg %p156
      %p271 = pneg %p153
      %p272 = pneg %p177
      %p273 = pneg %p174
      %p274 = pneg %p203
      %p275 = pneg %p200
      %p276 = scmp.lt.s32.totalorder %s22, 1
      %s277 = scalar_select %p276, %s22, 1
      %s278 = smul.addr %s277, 32
      %s279 = smul.addr %s278, 8
      %s280 = scalar_lea.vmem %s7, %s279
      %p281 = scmp.lt.s32.totalorder %s22, 1
      %s282 = scalar_select %p281, %s22, 1
      %s283 = smul.addr %s282, 32
      %s284 = smul.addr %s283, 4
      %s285 = scalar_lea.vmem %s0, %s284
      %p286 = scmp.lt.s32.totalorder %s22, 1
      %s287 = scalar_select %p286, %s22, 1
      %s288 = smul.addr %s287, 32
      %s289 = smul.addr %s288, 8
      %s290 = scalar_lea.vmem %s7, %s289
      %v292 = vlaneseq
      %v293 = vshrl.u32 %v292, 7
      %v294 = vadd.s32 %v293, 8
      %v295 = vadd.s32 %v293, 16
      %v296 = vadd.s32 %v293, 24
      %v297 = vadd.s32 %v293, 32
      %v298 = vadd.s32 %v293, 40
      %v299 = vadd.s32 %v293, 48
      %v300 = vadd.s32 %v293, 56
      %v301 = vadd.s32 %v293, 64
      %v302 = vadd.s32 %v293, 72
      %v303 = vadd.s32 %v293, 80
      %v304 = vadd.s32 %v293, 88
      %v305 = vadd.s32 %v293, 96
      %v306 = vadd.s32 %v293, 104
      %v307 = vadd.s32 %v293, 112
      %v308 = vadd.s32 %v293, 120
      %v309 = vadd.s32 %v293, 128
      %v310 = vadd.s32 %v293, 136
      %v311 = vadd.s32 %v293, 144
      %v312 = vadd.s32 %v293, 152
      %v313 = vadd.s32 %v293, 160
      %v314 = vadd.s32 %v293, 168
      %v315 = vadd.s32 %v293, 176
      %v316 = vadd.s32 %v293, 184
      %v317 = vadd.s32 %v293, 192
      %v318 = vadd.s32 %v293, 200
      %v319 = vadd.s32 %v293, 208
      %v320 = vadd.s32 %v293, 216
      %v321 = vadd.s32 %v293, 224
      %v322 = vadd.s32 %v293, 232
      %v323 = vadd.s32 %v293, 240
      %v324 = vadd.s32 %v293, 248
      %vm325 = vcmp.lt.s32.totalorder %v293, 0
      %v326 = vsub.s32 0, %v293
      %v327 = vsel %vm325, %v326, %v293
      %v328 = vshrl.u32 %v327, 4
      %v329 = vand.u32 %v327, 15
      %v330 = vsub.s32 0, %v329
      %v331 = vsel %vm325, %v330, %v329
      %vm332 = vcmp.lt.s32.totalorder %v294, 0
      %v333 = vsub.s32 0, %v294
      %v334 = vsel %vm332, %v333, %v294
      %v335 = vshrl.u32 %v334, 4
      %v336 = vand.u32 %v334, 15
      %v337 = vsub.s32 0, %v336
      %v338 = vsel %vm332, %v337, %v336
      %vm339 = vcmp.lt.s32.totalorder %v295, 0
      %v340 = vsub.s32 0, %v295
      %v341 = vsel %vm339, %v340, %v295
      %v342 = vshrl.u32 %v341, 4
      %v343 = vand.u32 %v341, 15
      %v344 = vsub.s32 0, %v343
      %v345 = vsel %vm339, %v344, %v343
      %vm346 = vcmp.lt.s32.totalorder %v296, 0
      %v347 = vsub.s32 0, %v296
      %v348 = vsel %vm346, %v347, %v296
      %v349 = vshrl.u32 %v348, 4
      %v350 = vand.u32 %v348, 15
      %v351 = vsub.s32 0, %v350
      %v352 = vsel %vm346, %v351, %v350
      %vm353 = vcmp.lt.s32.totalorder %v297, 0
      %v354 = vsub.s32 0, %v297
      %v355 = vsel %vm353, %v354, %v297
      %v356 = vshrl.u32 %v355, 4
      %v357 = vand.u32 %v355, 15
      %v358 = vsub.s32 0, %v357
      %v359 = vsel %vm353, %v358, %v357
      %vm360 = vcmp.lt.s32.totalorder %v298, 0
      %v361 = vsub.s32 0, %v298
      %v362 = vsel %vm360, %v361, %v298
      %v363 = vshrl.u32 %v362, 4
      %v364 = vand.u32 %v362, 15
      %v365 = vsub.s32 0, %v364
      %v366 = vsel %vm360, %v365, %v364
      %vm367 = vcmp.lt.s32.totalorder %v299, 0
      %v368 = vsub.s32 0, %v299
      %v369 = vsel %vm367, %v368, %v299
      %v370 = vshrl.u32 %v369, 4
      %v371 = vand.u32 %v369, 15
      %v372 = vsub.s32 0, %v371
      %v373 = vsel %vm367, %v372, %v371
      %vm374 = vcmp.lt.s32.totalorder %v300, 0
      %v375 = vsub.s32 0, %v300
      %v376 = vsel %vm374, %v375, %v300
      %v377 = vshrl.u32 %v376, 4
      %v378 = vand.u32 %v376, 15
      %v379 = vsub.s32 0, %v378
      %v380 = vsel %vm374, %v379, %v378
      %vm381 = vcmp.lt.s32.totalorder %v301, 0
      %v382 = vsub.s32 0, %v301
      %v383 = vsel %vm381, %v382, %v301
      %v384 = vshrl.u32 %v383, 4
      %v385 = vand.u32 %v383, 15
      %v386 = vsub.s32 0, %v385
      %v387 = vsel %vm381, %v386, %v385
      %vm388 = vcmp.lt.s32.totalorder %v302, 0
      %v389 = vsub.s32 0, %v302
      %v390 = vsel %vm388, %v389, %v302
      %v391 = vshrl.u32 %v390, 4
      %v392 = vand.u32 %v390, 15
      %v393 = vsub.s32 0, %v392
      %v394 = vsel %vm388, %v393, %v392
      %vm395 = vcmp.lt.s32.totalorder %v303, 0
      %v396 = vsub.s32 0, %v303
      %v397 = vsel %vm395, %v396, %v303
      %v398 = vshrl.u32 %v397, 4
      %v399 = vand.u32 %v397, 15
      %v400 = vsub.s32 0, %v399
      %v401 = vsel %vm395, %v400, %v399
      %vm402 = vcmp.lt.s32.totalorder %v304, 0
      %v403 = vsub.s32 0, %v304
      %v404 = vsel %vm402, %v403, %v304
      %v405 = vshrl.u32 %v404, 4
      %v406 = vand.u32 %v404, 15
      %v407 = vsub.s32 0, %v406
      %v408 = vsel %vm402, %v407, %v406
      %vm409 = vcmp.lt.s32.totalorder %v305, 0
      %v410 = vsub.s32 0, %v305
      %v411 = vsel %vm409, %v410, %v305
      %v412 = vshrl.u32 %v411, 4
      %v413 = vand.u32 %v411, 15
      %v414 = vsub.s32 0, %v413
      %v415 = vsel %vm409, %v414, %v413
      %vm416 = vcmp.lt.s32.totalorder %v306, 0
      %v417 = vsub.s32 0, %v306
      %v418 = vsel %vm416, %v417, %v306
      %v419 = vshrl.u32 %v418, 4
      %v420 = vand.u32 %v418, 15
      %v421 = vsub.s32 0, %v420
      %v422 = vsel %vm416, %v421, %v420
      %vm423 = vcmp.lt.s32.totalorder %v307, 0
      %v424 = vsub.s32 0, %v307
      %v425 = vsel %vm423, %v424, %v307
      %v426 = vshrl.u32 %v425, 4
      %v427 = vand.u32 %v425, 15
      %v428 = vsub.s32 0, %v427
      %v429 = vsel %vm423, %v428, %v427
      %vm430 = vcmp.lt.s32.totalorder %v308, 0
      %v431 = vsub.s32 0, %v308
      %v432 = vsel %vm430, %v431, %v308
      %v433 = vshrl.u32 %v432, 4
      %v434 = vand.u32 %v432, 15
      %v435 = vsub.s32 0, %v434
      %v436 = vsel %vm430, %v435, %v434
      %vm437 = vcmp.lt.s32.totalorder %v309, 0
      %v438 = vsub.s32 0, %v309
      %v439 = vsel %vm437, %v438, %v309
      %v440 = vshrl.u32 %v439, 4
      %v441 = vand.u32 %v439, 15
      %v442 = vsub.s32 0, %v441
      %v443 = vsel %vm437, %v442, %v441
      %vm444 = vcmp.lt.s32.totalorder %v310, 0
      %v445 = vsub.s32 0, %v310
      %v446 = vsel %vm444, %v445, %v310
      %v447 = vshrl.u32 %v446, 4
      %v448 = vand.u32 %v446, 15
      %v449 = vsub.s32 0, %v448
      %v450 = vsel %vm444, %v449, %v448
      %vm451 = vcmp.lt.s32.totalorder %v311, 0
      %v452 = vsub.s32 0, %v311
      %v453 = vsel %vm451, %v452, %v311
      %v454 = vshrl.u32 %v453, 4
      %v455 = vand.u32 %v453, 15
      %v456 = vsub.s32 0, %v455
      %v457 = vsel %vm451, %v456, %v455
      %vm458 = vcmp.lt.s32.totalorder %v312, 0
      %v459 = vsub.s32 0, %v312
      %v460 = vsel %vm458, %v459, %v312
      %v461 = vshrl.u32 %v460, 4
      %v462 = vand.u32 %v460, 15
      %v463 = vsub.s32 0, %v462
      %v464 = vsel %vm458, %v463, %v462
      %vm465 = vcmp.lt.s32.totalorder %v313, 0
      %v466 = vsub.s32 0, %v313
      %v467 = vsel %vm465, %v466, %v313
      %v468 = vshrl.u32 %v467, 4
      %v469 = vand.u32 %v467, 15
      %v470 = vsub.s32 0, %v469
      %v471 = vsel %vm465, %v470, %v469
      %vm472 = vcmp.lt.s32.totalorder %v314, 0
      %v473 = vsub.s32 0, %v314
      %v474 = vsel %vm472, %v473, %v314
      %v475 = vshrl.u32 %v474, 4
      %v476 = vand.u32 %v474, 15
      %v477 = vsub.s32 0, %v476
      %v478 = vsel %vm472, %v477, %v476
      %vm479 = vcmp.lt.s32.totalorder %v315, 0
      %v480 = vsub.s32 0, %v315
      %v481 = vsel %vm479, %v480, %v315
      %v482 = vshrl.u32 %v481, 4
      %v483 = vand.u32 %v481, 15
      %v484 = vsub.s32 0, %v483
      %v485 = vsel %vm479, %v484, %v483
      %vm486 = vcmp.lt.s32.totalorder %v316, 0
      %v487 = vsub.s32 0, %v316
      %v488 = vsel %vm486, %v487, %v316
      %v489 = vshrl.u32 %v488, 4
      %v490 = vand.u32 %v488, 15
      %v491 = vsub.s32 0, %v490
      %v492 = vsel %vm486, %v491, %v490
      %vm493 = vcmp.lt.s32.totalorder %v317, 0
      %v494 = vsub.s32 0, %v317
      %v495 = vsel %vm493, %v494, %v317
      %v496 = vshrl.u32 %v495, 4
      %v497 = vand.u32 %v495, 15
      %v498 = vsub.s32 0, %v497
      %v499 = vsel %vm493, %v498, %v497
      %vm500 = vcmp.lt.s32.totalorder %v318, 0
      %v501 = vsub.s32 0, %v318
      %v502 = vsel %vm500, %v501, %v318
      %v503 = vshrl.u32 %v502, 4
      %v504 = vand.u32 %v502, 15
      %v505 = vsub.s32 0, %v504
      %v506 = vsel %vm500, %v505, %v504
      %vm507 = vcmp.lt.s32.totalorder %v319, 0
      %v508 = vsub.s32 0, %v319
      %v509 = vsel %vm507, %v508, %v319
      %v510 = vshrl.u32 %v509, 4
      %v511 = vand.u32 %v509, 15
      %v512 = vsub.s32 0, %v511
      %v513 = vsel %vm507, %v512, %v511
      %vm514 = vcmp.lt.s32.totalorder %v320, 0
      %v515 = vsub.s32 0, %v320
      %v516 = vsel %vm514, %v515, %v320
      %v517 = vshrl.u32 %v516, 4
      %v518 = vand.u32 %v516, 15
      %v519 = vsub.s32 0, %v518
      %v520 = vsel %vm514, %v519, %v518
      %vm521 = vcmp.lt.s32.totalorder %v321, 0
      %v522 = vsub.s32 0, %v321
      %v523 = vsel %vm521, %v522, %v321
      %v524 = vshrl.u32 %v523, 4
      %v525 = vand.u32 %v523, 15
      %v526 = vsub.s32 0, %v525
      %v527 = vsel %vm521, %v526, %v525
      %vm528 = vcmp.lt.s32.totalorder %v322, 0
      %v529 = vsub.s32 0, %v322
      %v530 = vsel %vm528, %v529, %v322
      %v531 = vshrl.u32 %v530, 4
      %v532 = vand.u32 %v530, 15
      %v533 = vsub.s32 0, %v532
      %v534 = vsel %vm528, %v533, %v532
      %vm535 = vcmp.lt.s32.totalorder %v323, 0
      %v536 = vsub.s32 0, %v323
      %v537 = vsel %vm535, %v536, %v323
      %v538 = vshrl.u32 %v537, 4
      %v539 = vand.u32 %v537, 15
      %v540 = vsub.s32 0, %v539
      %v541 = vsel %vm535, %v540, %v539
      %vm542 = vcmp.lt.s32.totalorder %v324, 0
      %v543 = vsub.s32 0, %v324
      %v544 = vsel %vm542, %v543, %v324
      %v545 = vshrl.u32 %v544, 4
      %v546 = vand.u32 %v544, 15
      %v547 = vsub.s32 0, %v546
      %v548 = vsel %vm542, %v547, %v546
      %vm549 = vcmp.ne.s32.totalorder %v331, 0
      %vm550 = vcmp.ne.s32.totalorder %v338, 0
      %vm551 = vcmp.ne.s32.totalorder %v345, 0
      %vm552 = vcmp.ne.s32.totalorder %v352, 0
      %vm553 = vcmp.ne.s32.totalorder %v359, 0
      %vm554 = vcmp.ne.s32.totalorder %v366, 0
      %vm555 = vcmp.ne.s32.totalorder %v373, 0
      %vm556 = vcmp.ne.s32.totalorder %v380, 0
      %vm557 = vcmp.ne.s32.totalorder %v387, 0
      %vm558 = vcmp.ne.s32.totalorder %v394, 0
      %vm559 = vcmp.ne.s32.totalorder %v401, 0
      %vm560 = vcmp.ne.s32.totalorder %v408, 0
      %vm561 = vcmp.ne.s32.totalorder %v415, 0
      %vm562 = vcmp.ne.s32.totalorder %v422, 0
      %vm563 = vcmp.ne.s32.totalorder %v429, 0
      %vm564 = vcmp.ne.s32.totalorder %v436, 0
      %vm565 = vcmp.ne.s32.totalorder %v443, 0
      %vm566 = vcmp.ne.s32.totalorder %v450, 0
      %vm567 = vcmp.ne.s32.totalorder %v457, 0
      %vm568 = vcmp.ne.s32.totalorder %v464, 0
      %vm569 = vcmp.ne.s32.totalorder %v471, 0
      %vm570 = vcmp.ne.s32.totalorder %v478, 0
      %vm571 = vcmp.ne.s32.totalorder %v485, 0
      %vm572 = vcmp.ne.s32.totalorder %v492, 0
      %vm573 = vcmp.ne.s32.totalorder %v499, 0
      %vm574 = vcmp.ne.s32.totalorder %v506, 0
      %vm575 = vcmp.ne.s32.totalorder %v513, 0
      %vm576 = vcmp.ne.s32.totalorder %v520, 0
      %vm577 = vcmp.ne.s32.totalorder %v527, 0
      %vm578 = vcmp.ne.s32.totalorder %v534, 0
      %vm579 = vcmp.ne.s32.totalorder %v541, 0
      %vm580 = vcmp.ne.s32.totalorder %v548, 0
      %vm581 = vcmp.lt.s32.totalorder %v331, 0
      %vm582 = vcmp.lt.s32.totalorder %v338, 0
      %vm583 = vcmp.lt.s32.totalorder %v345, 0
      %vm584 = vcmp.lt.s32.totalorder %v352, 0
      %vm585 = vcmp.lt.s32.totalorder %v359, 0
      %vm586 = vcmp.lt.s32.totalorder %v366, 0
      %vm587 = vcmp.lt.s32.totalorder %v373, 0
      %vm588 = vcmp.lt.s32.totalorder %v380, 0
      %vm589 = vcmp.lt.s32.totalorder %v387, 0
      %vm590 = vcmp.lt.s32.totalorder %v394, 0
      %vm591 = vcmp.lt.s32.totalorder %v401, 0
      %vm592 = vcmp.lt.s32.totalorder %v408, 0
      %vm593 = vcmp.lt.s32.totalorder %v415, 0
      %vm594 = vcmp.lt.s32.totalorder %v422, 0
      %vm595 = vcmp.lt.s32.totalorder %v429, 0
      %vm596 = vcmp.lt.s32.totalorder %v436, 0
      %vm597 = vcmp.lt.s32.totalorder %v443, 0
      %vm598 = vcmp.lt.s32.totalorder %v450, 0
      %vm599 = vcmp.lt.s32.totalorder %v457, 0
      %vm600 = vcmp.lt.s32.totalorder %v464, 0
      %vm601 = vcmp.lt.s32.totalorder %v471, 0
      %vm602 = vcmp.lt.s32.totalorder %v478, 0
      %vm603 = vcmp.lt.s32.totalorder %v485, 0
      %vm604 = vcmp.lt.s32.totalorder %v492, 0
      %vm605 = vcmp.lt.s32.totalorder %v499, 0
      %vm606 = vcmp.lt.s32.totalorder %v506, 0
      %vm607 = vcmp.lt.s32.totalorder %v513, 0
      %vm608 = vcmp.lt.s32.totalorder %v520, 0
      %vm609 = vcmp.lt.s32.totalorder %v527, 0
      %vm610 = vcmp.lt.s32.totalorder %v534, 0
      %vm611 = vcmp.lt.s32.totalorder %v541, 0
      %vm612 = vcmp.lt.s32.totalorder %v548, 0
      %vm613 = vmand %vm581, %vm549
      %vm614 = vmand %vm582, %vm550
      %vm615 = vmand %vm583, %vm551
      %vm616 = vmand %vm584, %vm552
      %vm617 = vmand %vm585, %vm553
      %vm618 = vmand %vm586, %vm554
      %vm619 = vmand %vm587, %vm555
      %vm620 = vmand %vm588, %vm556
      %vm621 = vmand %vm589, %vm557
      %vm622 = vmand %vm590, %vm558
      %vm623 = vmand %vm591, %vm559
      %vm624 = vmand %vm592, %vm560
      %vm625 = vmand %vm593, %vm561
      %vm626 = vmand %vm594, %vm562
      %vm627 = vmand %vm595, %vm563
      %vm628 = vmand %vm596, %vm564
      %vm629 = vmand %vm597, %vm565
      %vm630 = vmand %vm598, %vm566
      %vm631 = vmand %vm599, %vm567
      %vm632 = vmand %vm600, %vm568
      %vm633 = vmand %vm601, %vm569
      %vm634 = vmand %vm602, %vm570
      %vm635 = vmand %vm603, %vm571
      %vm636 = vmand %vm604, %vm572
      %vm637 = vmand %vm605, %vm573
      %vm638 = vmand %vm606, %vm574
      %vm639 = vmand %vm607, %vm575
      %vm640 = vmand %vm608, %vm576
      %vm641 = vmand %vm609, %vm577
      %vm642 = vmand %vm610, %vm578
      %vm643 = vmand %vm611, %vm579
      %vm644 = vmand %vm612, %vm580
      %v645 = vadd.s32 %v331, 16
      %v646 = vadd.s32 %v338, 16
      %v647 = vadd.s32 %v345, 16
      %v648 = vadd.s32 %v352, 16
      %v649 = vadd.s32 %v359, 16
      %v650 = vadd.s32 %v366, 16
      %v651 = vadd.s32 %v373, 16
      %v652 = vadd.s32 %v380, 16
      %v653 = vadd.s32 %v387, 16
      %v654 = vadd.s32 %v394, 16
      %v655 = vadd.s32 %v401, 16
      %v656 = vadd.s32 %v408, 16
      %v657 = vadd.s32 %v415, 16
      %v658 = vadd.s32 %v422, 16
      %v659 = vadd.s32 %v429, 16
      %v660 = vadd.s32 %v436, 16
      %v661 = vadd.s32 %v443, 16
      %v662 = vadd.s32 %v450, 16
      %v663 = vadd.s32 %v457, 16
      %v664 = vadd.s32 %v464, 16
      %v665 = vadd.s32 %v471, 16
      %v666 = vadd.s32 %v478, 16
      %v667 = vadd.s32 %v485, 16
      %v668 = vadd.s32 %v492, 16
      %v669 = vadd.s32 %v499, 16
      %v670 = vadd.s32 %v506, 16
      %v671 = vadd.s32 %v513, 16
      %v672 = vadd.s32 %v520, 16
      %v673 = vadd.s32 %v527, 16
      %v674 = vadd.s32 %v534, 16
      %v675 = vadd.s32 %v541, 16
      %v676 = vadd.s32 %v548, 16
      %v677 = vsel %vm613, %v645, %v331
      %v678 = vsel %vm614, %v646, %v338
      %v679 = vsel %vm615, %v647, %v345
      %v680 = vsel %vm616, %v648, %v352
      %v681 = vsel %vm617, %v649, %v359
      %v682 = vsel %vm618, %v650, %v366
      %v683 = vsel %vm619, %v651, %v373
      %v684 = vsel %vm620, %v652, %v380
      %v685 = vsel %vm621, %v653, %v387
      %v686 = vsel %vm622, %v654, %v394
      %v687 = vsel %vm623, %v655, %v401
      %v688 = vsel %vm624, %v656, %v408
      %v689 = vsel %vm625, %v657, %v415
      %v690 = vsel %vm626, %v658, %v422
      %v691 = vsel %vm627, %v659, %v429
      %v692 = vsel %vm628, %v660, %v436
      %v693 = vsel %vm629, %v661, %v443
      %v694 = vsel %vm630, %v662, %v450
      %v695 = vsel %vm631, %v663, %v457
      %v696 = vsel %vm632, %v664, %v464
      %v697 = vsel %vm633, %v665, %v471
      %v698 = vsel %vm634, %v666, %v478
      %v699 = vsel %vm635, %v667, %v485
      %v700 = vsel %vm636, %v668, %v492
      %v701 = vsel %vm637, %v669, %v499
      %v702 = vsel %vm638, %v670, %v506
      %v703 = vsel %vm639, %v671, %v513
      %v704 = vsel %vm640, %v672, %v520
      %v705 = vsel %vm641, %v673, %v527
      %v706 = vsel %vm642, %v674, %v534
      %v707 = vsel %vm643, %v675, %v541
      %v708 = vsel %vm644, %v676, %v548
      %vm709 = vcmp.ge.s32.totalorder %v677, 2
      %vm710 = vcmp.ge.s32.totalorder %v678, 2
      %vm711 = vcmp.ge.s32.totalorder %v679, 2
      %vm712 = vcmp.ge.s32.totalorder %v680, 2
      %vm713 = vcmp.ge.s32.totalorder %v681, 2
      %vm714 = vcmp.ge.s32.totalorder %v682, 2
      %vm715 = vcmp.ge.s32.totalorder %v683, 2
      %vm716 = vcmp.ge.s32.totalorder %v684, 2
      %vm717 = vcmp.ge.s32.totalorder %v685, 2
      %vm718 = vcmp.ge.s32.totalorder %v686, 2
      %vm719 = vcmp.ge.s32.totalorder %v687, 2
      %vm720 = vcmp.ge.s32.totalorder %v688, 2
      %vm721 = vcmp.ge.s32.totalorder %v689, 2
      %vm722 = vcmp.ge.s32.totalorder %v690, 2
      %vm723 = vcmp.ge.s32.totalorder %v691, 2
      %vm724 = vcmp.ge.s32.totalorder %v692, 2
      %vm725 = vcmp.ge.s32.totalorder %v693, 2
      %vm726 = vcmp.ge.s32.totalorder %v694, 2
      %vm727 = vcmp.ge.s32.totalorder %v695, 2
      %vm728 = vcmp.ge.s32.totalorder %v696, 2
      %vm729 = vcmp.ge.s32.totalorder %v697, 2
      %vm730 = vcmp.ge.s32.totalorder %v698, 2
      %vm731 = vcmp.ge.s32.totalorder %v699, 2
      %vm732 = vcmp.ge.s32.totalorder %v700, 2
      %vm733 = vcmp.ge.s32.totalorder %v701, 2
      %vm734 = vcmp.ge.s32.totalorder %v702, 2
      %vm735 = vcmp.ge.s32.totalorder %v703, 2
      %vm736 = vcmp.ge.s32.totalorder %v704, 2
      %vm737 = vcmp.ge.s32.totalorder %v705, 2
      %vm738 = vcmp.ge.s32.totalorder %v706, 2
      %vm739 = vcmp.ge.s32.totalorder %v707, 2
      %vm740 = vcmp.ge.s32.totalorder %v708, 2
      %v741 = vsel %vm709, 0.0, -1e+30
      %v742 = vsel %vm710, 0.0, -1e+30
      %v743 = vsel %vm711, 0.0, -1e+30
      %v744 = vsel %vm712, 0.0, -1e+30
      %v745 = vsel %vm713, 0.0, -1e+30
      %v746 = vsel %vm714, 0.0, -1e+30
      %v747 = vsel %vm715, 0.0, -1e+30
      %v748 = vsel %vm716, 0.0, -1e+30
      %v749 = vsel %vm717, 0.0, -1e+30
      %v750 = vsel %vm718, 0.0, -1e+30
      %v751 = vsel %vm719, 0.0, -1e+30
      %v752 = vsel %vm720, 0.0, -1e+30
      %v753 = vsel %vm721, 0.0, -1e+30
      %v754 = vsel %vm722, 0.0, -1e+30
      %v755 = vsel %vm723, 0.0, -1e+30
      %v756 = vsel %vm724, 0.0, -1e+30
      %v757 = vsel %vm725, 0.0, -1e+30
      %v758 = vsel %vm726, 0.0, -1e+30
      %v759 = vsel %vm727, 0.0, -1e+30
      %v760 = vsel %vm728, 0.0, -1e+30
      %v761 = vsel %vm729, 0.0, -1e+30
      %v762 = vsel %vm730, 0.0, -1e+30
      %v763 = vsel %vm731, 0.0, -1e+30
      %v764 = vsel %vm732, 0.0, -1e+30
      %v765 = vsel %vm733, 0.0, -1e+30
      %v766 = vsel %vm734, 0.0, -1e+30
      %v767 = vsel %vm735, 0.0, -1e+30
      %v768 = vsel %vm736, 0.0, -1e+30
      %v769 = vsel %vm737, 0.0, -1e+30
      %v770 = vsel %vm738, 0.0, -1e+30
      %v771 = vsel %vm739, 0.0, -1e+30
      %v772 = vsel %vm740, 0.0, -1e+30
      %vm773 = vcmp.ge.s32.totalorder %v677, 1
      %vm774 = vcmp.ge.s32.totalorder %v678, 1
      %vm775 = vcmp.ge.s32.totalorder %v679, 1
      %vm776 = vcmp.ge.s32.totalorder %v680, 1
      %vm777 = vcmp.ge.s32.totalorder %v681, 1
      %vm778 = vcmp.ge.s32.totalorder %v682, 1
      %vm779 = vcmp.ge.s32.totalorder %v683, 1
      %vm780 = vcmp.ge.s32.totalorder %v684, 1
      %vm781 = vcmp.ge.s32.totalorder %v685, 1
      %vm782 = vcmp.ge.s32.totalorder %v686, 1
      %vm783 = vcmp.ge.s32.totalorder %v687, 1
      %vm784 = vcmp.ge.s32.totalorder %v688, 1
      %vm785 = vcmp.ge.s32.totalorder %v689, 1
      %vm786 = vcmp.ge.s32.totalorder %v690, 1
      %vm787 = vcmp.ge.s32.totalorder %v691, 1
      %vm788 = vcmp.ge.s32.totalorder %v692, 1
      %vm789 = vcmp.ge.s32.totalorder %v693, 1
      %vm790 = vcmp.ge.s32.totalorder %v694, 1
      %vm791 = vcmp.ge.s32.totalorder %v695, 1
      %vm792 = vcmp.ge.s32.totalorder %v696, 1
      %vm793 = vcmp.ge.s32.totalorder %v697, 1
      %vm794 = vcmp.ge.s32.totalorder %v698, 1
      %vm795 = vcmp.ge.s32.totalorder %v699, 1
      %vm796 = vcmp.ge.s32.totalorder %v700, 1
      %vm797 = vcmp.ge.s32.totalorder %v701, 1
      %vm798 = vcmp.ge.s32.totalorder %v702, 1
      %vm799 = vcmp.ge.s32.totalorder %v703, 1
      %vm800 = vcmp.ge.s32.totalorder %v704, 1
      %vm801 = vcmp.ge.s32.totalorder %v705, 1
      %vm802 = vcmp.ge.s32.totalorder %v706, 1
      %vm803 = vcmp.ge.s32.totalorder %v707, 1
      %vm804 = vcmp.ge.s32.totalorder %v708, 1
      %v805 = vsel %vm773, 0.0, -1e+30
      %v806 = vsel %vm774, 0.0, -1e+30
      %v807 = vsel %vm775, 0.0, -1e+30
      %v808 = vsel %vm776, 0.0, -1e+30
      %v809 = vsel %vm777, 0.0, -1e+30
      %v810 = vsel %vm778, 0.0, -1e+30
      %v811 = vsel %vm779, 0.0, -1e+30
      %v812 = vsel %vm780, 0.0, -1e+30
      %v813 = vsel %vm781, 0.0, -1e+30
      %v814 = vsel %vm782, 0.0, -1e+30
      %v815 = vsel %vm783, 0.0, -1e+30
      %v816 = vsel %vm784, 0.0, -1e+30
      %v817 = vsel %vm785, 0.0, -1e+30
      %v818 = vsel %vm786, 0.0, -1e+30
      %v819 = vsel %vm787, 0.0, -1e+30
      %v820 = vsel %vm788, 0.0, -1e+30
      %v821 = vsel %vm789, 0.0, -1e+30
      %v822 = vsel %vm790, 0.0, -1e+30
      %v823 = vsel %vm791, 0.0, -1e+30
      %v824 = vsel %vm792, 0.0, -1e+30
      %v825 = vsel %vm793, 0.0, -1e+30
      %v826 = vsel %vm794, 0.0, -1e+30
      %v827 = vsel %vm795, 0.0, -1e+30
      %v828 = vsel %vm796, 0.0, -1e+30
      %v829 = vsel %vm797, 0.0, -1e+30
      %v830 = vsel %vm798, 0.0, -1e+30
      %v831 = vsel %vm799, 0.0, -1e+30
      %v832 = vsel %vm800, 0.0, -1e+30
      %v833 = vsel %vm801, 0.0, -1e+30
      %v834 = vsel %vm802, 0.0, -1e+30
      %v835 = vsel %vm803, 0.0, -1e+30
      %v836 = vsel %vm804, 0.0, -1e+30
      %vm837 = vcmp.le.s32.totalorder %v677, 14
      %vm838 = vcmp.le.s32.totalorder %v678, 14
      %vm839 = vcmp.le.s32.totalorder %v679, 14
      %vm840 = vcmp.le.s32.totalorder %v680, 14
      %vm841 = vcmp.le.s32.totalorder %v681, 14
      %vm842 = vcmp.le.s32.totalorder %v682, 14
      %vm843 = vcmp.le.s32.totalorder %v683, 14
      %vm844 = vcmp.le.s32.totalorder %v684, 14
      %vm845 = vcmp.le.s32.totalorder %v685, 14
      %vm846 = vcmp.le.s32.totalorder %v686, 14
      %vm847 = vcmp.le.s32.totalorder %v687, 14
      %vm848 = vcmp.le.s32.totalorder %v688, 14
      %vm849 = vcmp.le.s32.totalorder %v689, 14
      %vm850 = vcmp.le.s32.totalorder %v690, 14
      %vm851 = vcmp.le.s32.totalorder %v691, 14
      %vm852 = vcmp.le.s32.totalorder %v692, 14
      %vm853 = vcmp.le.s32.totalorder %v693, 14
      %vm854 = vcmp.le.s32.totalorder %v694, 14
      %vm855 = vcmp.le.s32.totalorder %v695, 14
      %vm856 = vcmp.le.s32.totalorder %v696, 14
      %vm857 = vcmp.le.s32.totalorder %v697, 14
      %vm858 = vcmp.le.s32.totalorder %v698, 14
      %vm859 = vcmp.le.s32.totalorder %v699, 14
      %vm860 = vcmp.le.s32.totalorder %v700, 14
      %vm861 = vcmp.le.s32.totalorder %v701, 14
      %vm862 = vcmp.le.s32.totalorder %v702, 14
      %vm863 = vcmp.le.s32.totalorder %v703, 14
      %vm864 = vcmp.le.s32.totalorder %v704, 14
      %vm865 = vcmp.le.s32.totalorder %v705, 14
      %vm866 = vcmp.le.s32.totalorder %v706, 14
      %vm867 = vcmp.le.s32.totalorder %v707, 14
      %vm868 = vcmp.le.s32.totalorder %v708, 14
      %v869 = vsel %vm837, 0.0, -1e+30
      %v870 = vsel %vm838, 0.0, -1e+30
      %v871 = vsel %vm839, 0.0, -1e+30
      %v872 = vsel %vm840, 0.0, -1e+30
      %v873 = vsel %vm841, 0.0, -1e+30
      %v874 = vsel %vm842, 0.0, -1e+30
      %v875 = vsel %vm843, 0.0, -1e+30
      %v876 = vsel %vm844, 0.0, -1e+30
      %v877 = vsel %vm845, 0.0, -1e+30
      %v878 = vsel %vm846, 0.0, -1e+30
      %v879 = vsel %vm847, 0.0, -1e+30
      %v880 = vsel %vm848, 0.0, -1e+30
      %v881 = vsel %vm849, 0.0, -1e+30
      %v882 = vsel %vm850, 0.0, -1e+30
      %v883 = vsel %vm851, 0.0, -1e+30
      %v884 = vsel %vm852, 0.0, -1e+30
      %v885 = vsel %vm853, 0.0, -1e+30
      %v886 = vsel %vm854, 0.0, -1e+30
      %v887 = vsel %vm855, 0.0, -1e+30
      %v888 = vsel %vm856, 0.0, -1e+30
      %v889 = vsel %vm857, 0.0, -1e+30
      %v890 = vsel %vm858, 0.0, -1e+30
      %v891 = vsel %vm859, 0.0, -1e+30
      %v892 = vsel %vm860, 0.0, -1e+30
      %v893 = vsel %vm861, 0.0, -1e+30
      %v894 = vsel %vm862, 0.0, -1e+30
      %v895 = vsel %vm863, 0.0, -1e+30
      %v896 = vsel %vm864, 0.0, -1e+30
      %v897 = vsel %vm865, 0.0, -1e+30
      %v898 = vsel %vm866, 0.0, -1e+30
      %v899 = vsel %vm867, 0.0, -1e+30
      %v900 = vsel %vm868, 0.0, -1e+30
      %vm901 = vcmp.le.s32.totalorder %v677, 13
      %vm902 = vcmp.le.s32.totalorder %v678, 13
      %vm903 = vcmp.le.s32.totalorder %v679, 13
      %vm904 = vcmp.le.s32.totalorder %v680, 13
      %vm905 = vcmp.le.s32.totalorder %v681, 13
      %vm906 = vcmp.le.s32.totalorder %v682, 13
      %vm907 = vcmp.le.s32.totalorder %v683, 13
      %vm908 = vcmp.le.s32.totalorder %v684, 13
      %vm909 = vcmp.le.s32.totalorder %v685, 13
      %vm910 = vcmp.le.s32.totalorder %v686, 13
      %vm911 = vcmp.le.s32.totalorder %v687, 13
      %vm912 = vcmp.le.s32.totalorder %v688, 13
      %vm913 = vcmp.le.s32.totalorder %v689, 13
      %vm914 = vcmp.le.s32.totalorder %v690, 13
      %vm915 = vcmp.le.s32.totalorder %v691, 13
      %vm916 = vcmp.le.s32.totalorder %v692, 13
      %vm917 = vcmp.le.s32.totalorder %v693, 13
      %vm918 = vcmp.le.s32.totalorder %v694, 13
      %vm919 = vcmp.le.s32.totalorder %v695, 13
      %vm920 = vcmp.le.s32.totalorder %v696, 13
      %vm921 = vcmp.le.s32.totalorder %v697, 13
      %vm922 = vcmp.le.s32.totalorder %v698, 13
      %vm923 = vcmp.le.s32.totalorder %v699, 13
      %vm924 = vcmp.le.s32.totalorder %v700, 13
      %vm925 = vcmp.le.s32.totalorder %v701, 13
      %vm926 = vcmp.le.s32.totalorder %v702, 13
      %vm927 = vcmp.le.s32.totalorder %v703, 13
      %vm928 = vcmp.le.s32.totalorder %v704, 13
      %vm929 = vcmp.le.s32.totalorder %v705, 13
      %vm930 = vcmp.le.s32.totalorder %v706, 13
      %vm931 = vcmp.le.s32.totalorder %v707, 13
      %vm932 = vcmp.le.s32.totalorder %v708, 13
      %v933 = vsel %vm901, 0.0, -1e+30
      %v934 = vsel %vm902, 0.0, -1e+30
      %v935 = vsel %vm903, 0.0, -1e+30
      %v936 = vsel %vm904, 0.0, -1e+30
      %v937 = vsel %vm905, 0.0, -1e+30
      %v938 = vsel %vm906, 0.0, -1e+30
      %v939 = vsel %vm907, 0.0, -1e+30
      %v940 = vsel %vm908, 0.0, -1e+30
      %v941 = vsel %vm909, 0.0, -1e+30
      %v942 = vsel %vm910, 0.0, -1e+30
      %v943 = vsel %vm911, 0.0, -1e+30
      %v944 = vsel %vm912, 0.0, -1e+30
      %v945 = vsel %vm913, 0.0, -1e+30
      %v946 = vsel %vm914, 0.0, -1e+30
      %v947 = vsel %vm915, 0.0, -1e+30
      %v948 = vsel %vm916, 0.0, -1e+30
      %v949 = vsel %vm917, 0.0, -1e+30
      %v950 = vsel %vm918, 0.0, -1e+30
      %v951 = vsel %vm919, 0.0, -1e+30
      %v952 = vsel %vm920, 0.0, -1e+30
      %v953 = vsel %vm921, 0.0, -1e+30
      %v954 = vsel %vm922, 0.0, -1e+30
      %v955 = vsel %vm923, 0.0, -1e+30
      %v956 = vsel %vm924, 0.0, -1e+30
      %v957 = vsel %vm925, 0.0, -1e+30
      %v958 = vsel %vm926, 0.0, -1e+30
      %v959 = vsel %vm927, 0.0, -1e+30
      %v960 = vsel %vm928, 0.0, -1e+30
      %v961 = vsel %vm929, 0.0, -1e+30
      %v962 = vsel %vm930, 0.0, -1e+30
      %v963 = vsel %vm931, 0.0, -1e+30
      %v964 = vsel %vm932, 0.0, -1e+30
      %vm965 = vcmp.ge.s32.totalorder %v293, 32
      %vm966 = vcmp.ge.s32.totalorder %v294, 32
      %vm967 = vcmp.ge.s32.totalorder %v295, 32
      %vm968 = vcmp.ge.s32.totalorder %v296, 32
      %vm969 = vcmp.ge.s32.totalorder %v297, 32
      %vm970 = vcmp.ge.s32.totalorder %v298, 32
      %vm971 = vcmp.ge.s32.totalorder %v299, 32
      %vm972 = vcmp.ge.s32.totalorder %v300, 32
      %vm973 = vcmp.ge.s32.totalorder %v301, 32
      %vm974 = vcmp.ge.s32.totalorder %v302, 32
      %vm975 = vcmp.ge.s32.totalorder %v303, 32
      %vm976 = vcmp.ge.s32.totalorder %v304, 32
      %vm977 = vcmp.ge.s32.totalorder %v305, 32
      %vm978 = vcmp.ge.s32.totalorder %v306, 32
      %vm979 = vcmp.ge.s32.totalorder %v307, 32
      %vm980 = vcmp.ge.s32.totalorder %v308, 32
      %vm981 = vcmp.ge.s32.totalorder %v309, 32
      %vm982 = vcmp.ge.s32.totalorder %v310, 32
      %vm983 = vcmp.ge.s32.totalorder %v311, 32
      %vm984 = vcmp.ge.s32.totalorder %v312, 32
      %vm985 = vcmp.ge.s32.totalorder %v313, 32
      %vm986 = vcmp.ge.s32.totalorder %v314, 32
      %vm987 = vcmp.ge.s32.totalorder %v315, 32
      %vm988 = vcmp.ge.s32.totalorder %v316, 32
      %vm989 = vcmp.ge.s32.totalorder %v317, 32
      %vm990 = vcmp.ge.s32.totalorder %v318, 32
      %vm991 = vcmp.ge.s32.totalorder %v319, 32
      %vm992 = vcmp.ge.s32.totalorder %v320, 32
      %vm993 = vcmp.ge.s32.totalorder %v321, 32
      %vm994 = vcmp.ge.s32.totalorder %v322, 32
      %vm995 = vcmp.ge.s32.totalorder %v323, 32
      %vm996 = vcmp.ge.s32.totalorder %v324, 32
      %v997 = vsel %vm965, 0.0, -1e+30
      %v998 = vsel %vm966, 0.0, -1e+30
      %v999 = vsel %vm967, 0.0, -1e+30
      %v1000 = vsel %vm968, 0.0, -1e+30
      %v1001 = vsel %vm969, 0.0, -1e+30
      %v1002 = vsel %vm970, 0.0, -1e+30
      %v1003 = vsel %vm971, 0.0, -1e+30
      %v1004 = vsel %vm972, 0.0, -1e+30
      %v1005 = vsel %vm973, 0.0, -1e+30
      %v1006 = vsel %vm974, 0.0, -1e+30
      %v1007 = vsel %vm975, 0.0, -1e+30
      %v1008 = vsel %vm976, 0.0, -1e+30
      %v1009 = vsel %vm977, 0.0, -1e+30
      %v1010 = vsel %vm978, 0.0, -1e+30
      %v1011 = vsel %vm979, 0.0, -1e+30
      %v1012 = vsel %vm980, 0.0, -1e+30
      %v1013 = vsel %vm981, 0.0, -1e+30
      %v1014 = vsel %vm982, 0.0, -1e+30
      %v1015 = vsel %vm983, 0.0, -1e+30
      %v1016 = vsel %vm984, 0.0, -1e+30
      %v1017 = vsel %vm985, 0.0, -1e+30
      %v1018 = vsel %vm986, 0.0, -1e+30
      %v1019 = vsel %vm987, 0.0, -1e+30
      %v1020 = vsel %vm988, 0.0, -1e+30
      %v1021 = vsel %vm989, 0.0, -1e+30
      %v1022 = vsel %vm990, 0.0, -1e+30
      %v1023 = vsel %vm991, 0.0, -1e+30
      %v1024 = vsel %vm992, 0.0, -1e+30
      %v1025 = vsel %vm993, 0.0, -1e+30
      %v1026 = vsel %vm994, 0.0, -1e+30
      %v1027 = vsel %vm995, 0.0, -1e+30
      %v1028 = vsel %vm996, 0.0, -1e+30
      %vm1029 = vcmp.ge.s32.totalorder %v293, 16
      %vm1030 = vcmp.ge.s32.totalorder %v294, 16
      %vm1031 = vcmp.ge.s32.totalorder %v295, 16
      %vm1032 = vcmp.ge.s32.totalorder %v296, 16
      %vm1033 = vcmp.ge.s32.totalorder %v297, 16
      %vm1034 = vcmp.ge.s32.totalorder %v298, 16
      %vm1035 = vcmp.ge.s32.totalorder %v299, 16
      %vm1036 = vcmp.ge.s32.totalorder %v300, 16
      %vm1037 = vcmp.ge.s32.totalorder %v301, 16
      %vm1038 = vcmp.ge.s32.totalorder %v302, 16
      %vm1039 = vcmp.ge.s32.totalorder %v303, 16
      %vm1040 = vcmp.ge.s32.totalorder %v304, 16
      %vm1041 = vcmp.ge.s32.totalorder %v305, 16
      %vm1042 = vcmp.ge.s32.totalorder %v306, 16
      %vm1043 = vcmp.ge.s32.totalorder %v307, 16
      %vm1044 = vcmp.ge.s32.totalorder %v308, 16
      %vm1045 = vcmp.ge.s32.totalorder %v309, 16
      %vm1046 = vcmp.ge.s32.totalorder %v310, 16
      %vm1047 = vcmp.ge.s32.totalorder %v311, 16
      %vm1048 = vcmp.ge.s32.totalorder %v312, 16
      %vm1049 = vcmp.ge.s32.totalorder %v313, 16
      %vm1050 = vcmp.ge.s32.totalorder %v314, 16
      %vm1051 = vcmp.ge.s32.totalorder %v315, 16
      %vm1052 = vcmp.ge.s32.totalorder %v316, 16
      %vm1053 = vcmp.ge.s32.totalorder %v317, 16
      %vm1054 = vcmp.ge.s32.totalorder %v318, 16
      %vm1055 = vcmp.ge.s32.totalorder %v319, 16
      %vm1056 = vcmp.ge.s32.totalorder %v320, 16
      %vm1057 = vcmp.ge.s32.totalorder %v321, 16
      %vm1058 = vcmp.ge.s32.totalorder %v322, 16
      %vm1059 = vcmp.ge.s32.totalorder %v323, 16
      %vm1060 = vcmp.ge.s32.totalorder %v324, 16
      %v1061 = vsel %vm1029, 0.0, -1e+30
      %v1062 = vsel %vm1030, 0.0, -1e+30
      %v1063 = vsel %vm1031, 0.0, -1e+30
      %v1064 = vsel %vm1032, 0.0, -1e+30
      %v1065 = vsel %vm1033, 0.0, -1e+30
      %v1066 = vsel %vm1034, 0.0, -1e+30
      %v1067 = vsel %vm1035, 0.0, -1e+30
      %v1068 = vsel %vm1036, 0.0, -1e+30
      %v1069 = vsel %vm1037, 0.0, -1e+30
      %v1070 = vsel %vm1038, 0.0, -1e+30
      %v1071 = vsel %vm1039, 0.0, -1e+30
      %v1072 = vsel %vm1040, 0.0, -1e+30
      %v1073 = vsel %vm1041, 0.0, -1e+30
      %v1074 = vsel %vm1042, 0.0, -1e+30
      %v1075 = vsel %vm1043, 0.0, -1e+30
      %v1076 = vsel %vm1044, 0.0, -1e+30
      %v1077 = vsel %vm1045, 0.0, -1e+30
      %v1078 = vsel %vm1046, 0.0, -1e+30
      %v1079 = vsel %vm1047, 0.0, -1e+30
      %v1080 = vsel %vm1048, 0.0, -1e+30
      %v1081 = vsel %vm1049, 0.0, -1e+30
      %v1082 = vsel %vm1050, 0.0, -1e+30
      %v1083 = vsel %vm1051, 0.0, -1e+30
      %v1084 = vsel %vm1052, 0.0, -1e+30
      %v1085 = vsel %vm1053, 0.0, -1e+30
      %v1086 = vsel %vm1054, 0.0, -1e+30
      %v1087 = vsel %vm1055, 0.0, -1e+30
      %v1088 = vsel %vm1056, 0.0, -1e+30
      %v1089 = vsel %vm1057, 0.0, -1e+30
      %v1090 = vsel %vm1058, 0.0, -1e+30
      %v1091 = vsel %vm1059, 0.0, -1e+30
      %v1092 = vsel %vm1060, 0.0, -1e+30
      %vm1093 = vcmp.le.s32.totalorder %v293, 239
      %vm1094 = vcmp.le.s32.totalorder %v294, 239
      %vm1095 = vcmp.le.s32.totalorder %v295, 239
      %vm1096 = vcmp.le.s32.totalorder %v296, 239
      %vm1097 = vcmp.le.s32.totalorder %v297, 239
      %vm1098 = vcmp.le.s32.totalorder %v298, 239
      %vm1099 = vcmp.le.s32.totalorder %v299, 239
      %vm1100 = vcmp.le.s32.totalorder %v300, 239
      %vm1101 = vcmp.le.s32.totalorder %v301, 239
      %vm1102 = vcmp.le.s32.totalorder %v302, 239
      %vm1103 = vcmp.le.s32.totalorder %v303, 239
      %vm1104 = vcmp.le.s32.totalorder %v304, 239
      %vm1105 = vcmp.le.s32.totalorder %v305, 239
      %vm1106 = vcmp.le.s32.totalorder %v306, 239
      %vm1107 = vcmp.le.s32.totalorder %v307, 239
      %vm1108 = vcmp.le.s32.totalorder %v308, 239
      %vm1109 = vcmp.le.s32.totalorder %v309, 239
      %vm1110 = vcmp.le.s32.totalorder %v310, 239
      %vm1111 = vcmp.le.s32.totalorder %v311, 239
      %vm1112 = vcmp.le.s32.totalorder %v312, 239
      %vm1113 = vcmp.le.s32.totalorder %v313, 239
      %vm1114 = vcmp.le.s32.totalorder %v314, 239
      %vm1115 = vcmp.le.s32.totalorder %v315, 239
      %vm1116 = vcmp.le.s32.totalorder %v316, 239
      %vm1117 = vcmp.le.s32.totalorder %v317, 239
      %vm1118 = vcmp.le.s32.totalorder %v318, 239
      %vm1119 = vcmp.le.s32.totalorder %v319, 239
      %vm1120 = vcmp.le.s32.totalorder %v320, 239
      %vm1121 = vcmp.le.s32.totalorder %v321, 239
      %vm1122 = vcmp.le.s32.totalorder %v322, 239
      %vm1123 = vcmp.le.s32.totalorder %v323, 239
      %vm1124 = vcmp.le.s32.totalorder %v324, 239
      %v1125 = vsel %vm1093, 0.0, -1e+30
      %v1126 = vsel %vm1094, 0.0, -1e+30
      %v1127 = vsel %vm1095, 0.0, -1e+30
      %v1128 = vsel %vm1096, 0.0, -1e+30
      %v1129 = vsel %vm1097, 0.0, -1e+30
      %v1130 = vsel %vm1098, 0.0, -1e+30
      %v1131 = vsel %vm1099, 0.0, -1e+30
      %v1132 = vsel %vm1100, 0.0, -1e+30
      %v1133 = vsel %vm1101, 0.0, -1e+30
      %v1134 = vsel %vm1102, 0.0, -1e+30
      %v1135 = vsel %vm1103, 0.0, -1e+30
      %v1136 = vsel %vm1104, 0.0, -1e+30
      %v1137 = vsel %vm1105, 0.0, -1e+30
      %v1138 = vsel %vm1106, 0.0, -1e+30
      %v1139 = vsel %vm1107, 0.0, -1e+30
      %v1140 = vsel %vm1108, 0.0, -1e+30
      %v1141 = vsel %vm1109, 0.0, -1e+30
      %v1142 = vsel %vm1110, 0.0, -1e+30
      %v1143 = vsel %vm1111, 0.0, -1e+30
      %v1144 = vsel %vm1112, 0.0, -1e+30
      %v1145 = vsel %vm1113, 0.0, -1e+30
      %v1146 = vsel %vm1114, 0.0, -1e+30
      %v1147 = vsel %vm1115, 0.0, -1e+30
      %v1148 = vsel %vm1116, 0.0, -1e+30
      %v1149 = vsel %vm1117, 0.0, -1e+30
      %v1150 = vsel %vm1118, 0.0, -1e+30
      %v1151 = vsel %vm1119, 0.0, -1e+30
      %v1152 = vsel %vm1120, 0.0, -1e+30
      %v1153 = vsel %vm1121, 0.0, -1e+30
      %v1154 = vsel %vm1122, 0.0, -1e+30
      %v1155 = vsel %vm1123, 0.0, -1e+30
      %v1156 = vsel %vm1124, 0.0, -1e+30
      %vm1157 = vcmp.le.s32.totalorder %v293, 223
      %vm1158 = vcmp.le.s32.totalorder %v294, 223
      %vm1159 = vcmp.le.s32.totalorder %v295, 223
      %vm1160 = vcmp.le.s32.totalorder %v296, 223
      %vm1161 = vcmp.le.s32.totalorder %v297, 223
      %vm1162 = vcmp.le.s32.totalorder %v298, 223
      %vm1163 = vcmp.le.s32.totalorder %v299, 223
      %vm1164 = vcmp.le.s32.totalorder %v300, 223
      %vm1165 = vcmp.le.s32.totalorder %v301, 223
      %vm1166 = vcmp.le.s32.totalorder %v302, 223
      %vm1167 = vcmp.le.s32.totalorder %v303, 223
      %vm1168 = vcmp.le.s32.totalorder %v304, 223
      %vm1169 = vcmp.le.s32.totalorder %v305, 223
      %vm1170 = vcmp.le.s32.totalorder %v306, 223
      %vm1171 = vcmp.le.s32.totalorder %v307, 223
      %vm1172 = vcmp.le.s32.totalorder %v308, 223
      %vm1173 = vcmp.le.s32.totalorder %v309, 223
      %vm1174 = vcmp.le.s32.totalorder %v310, 223
      %vm1175 = vcmp.le.s32.totalorder %v311, 223
      %vm1176 = vcmp.le.s32.totalorder %v312, 223
      %vm1177 = vcmp.le.s32.totalorder %v313, 223
      %vm1178 = vcmp.le.s32.totalorder %v314, 223
      %vm1179 = vcmp.le.s32.totalorder %v315, 223
      %vm1180 = vcmp.le.s32.totalorder %v316, 223
      %vm1181 = vcmp.le.s32.totalorder %v317, 223
      %vm1182 = vcmp.le.s32.totalorder %v318, 223
      %vm1183 = vcmp.le.s32.totalorder %v319, 223
      %vm1184 = vcmp.le.s32.totalorder %v320, 223
      %vm1185 = vcmp.le.s32.totalorder %v321, 223
      %vm1186 = vcmp.le.s32.totalorder %v322, 223
      %vm1187 = vcmp.le.s32.totalorder %v323, 223
      %vm1188 = vcmp.le.s32.totalorder %v324, 223
      %v1189 = vsel %vm1157, 0.0, -1e+30
      %v1190 = vsel %vm1158, 0.0, -1e+30
      %v1191 = vsel %vm1159, 0.0, -1e+30
      %v1192 = vsel %vm1160, 0.0, -1e+30
      %v1193 = vsel %vm1161, 0.0, -1e+30
      %v1194 = vsel %vm1162, 0.0, -1e+30
      %v1195 = vsel %vm1163, 0.0, -1e+30
      %v1196 = vsel %vm1164, 0.0, -1e+30
      %v1197 = vsel %vm1165, 0.0, -1e+30
      %v1198 = vsel %vm1166, 0.0, -1e+30
      %v1199 = vsel %vm1167, 0.0, -1e+30
      %v1200 = vsel %vm1168, 0.0, -1e+30
      %v1201 = vsel %vm1169, 0.0, -1e+30
      %v1202 = vsel %vm1170, 0.0, -1e+30
      %v1203 = vsel %vm1171, 0.0, -1e+30
      %v1204 = vsel %vm1172, 0.0, -1e+30
      %v1205 = vsel %vm1173, 0.0, -1e+30
      %v1206 = vsel %vm1174, 0.0, -1e+30
      %v1207 = vsel %vm1175, 0.0, -1e+30
      %v1208 = vsel %vm1176, 0.0, -1e+30
      %v1209 = vsel %vm1177, 0.0, -1e+30
      %v1210 = vsel %vm1178, 0.0, -1e+30
      %v1211 = vsel %vm1179, 0.0, -1e+30
      %v1212 = vsel %vm1180, 0.0, -1e+30
      %v1213 = vsel %vm1181, 0.0, -1e+30
      %v1214 = vsel %vm1182, 0.0, -1e+30
      %v1215 = vsel %vm1183, 0.0, -1e+30
      %v1216 = vsel %vm1184, 0.0, -1e+30
      %v1217 = vsel %vm1185, 0.0, -1e+30
      %v1218 = vsel %vm1186, 0.0, -1e+30
      %v1219 = vsel %vm1187, 0.0, -1e+30
      %v1220 = vsel %vm1188, 0.0, -1e+30
      %v1221 = vld [vmem:[%s285] sm:$0xf]
      %v1222 = vld [vmem:[%s285 + $0x4] sm:$0xf]
      %v1223 = vld [vmem:[%s285 + $0x8] sm:$0xf]
      %v1224 = vld [vmem:[%s285 + $0xc] sm:$0xf]
      %v1225 = vld [vmem:[%s285 + $0x10] sm:$0xf]
      %v1226 = vld [vmem:[%s285 + $0x14] sm:$0xf]
      %v1227 = vld [vmem:[%s285 + $0x18] sm:$0xf]
      %v1228 = vld [vmem:[%s285 + $0x1c] sm:$0xf]
      %v1229 = vld [vmem:[%s285 + $0x20] sm:$0xf]
      %v1230 = vld [vmem:[%s285 + $0x24] sm:$0xf]
      %v1231 = vld [vmem:[%s285 + $0x28] sm:$0xf]
      %v1232 = vld [vmem:[%s285 + $0x2c] sm:$0xf]
      %v1233 = vld [vmem:[%s285 + $0x30] sm:$0xf]
      %v1234 = vld [vmem:[%s285 + $0x34] sm:$0xf]
      %v1235 = vld [vmem:[%s285 + $0x38] sm:$0xf]
      %v1236 = vld [vmem:[%s285 + $0x3c] sm:$0xf]
      %v1237 = vld [vmem:[%s285 + $0x40] sm:$0xf]
      %v1238 = vld [vmem:[%s285 + $0x44] sm:$0xf]
      %v1239 = vld [vmem:[%s285 + $0x48] sm:$0xf]
      %v1240 = vld [vmem:[%s285 + $0x4c] sm:$0xf]
      %v1241 = vld [vmem:[%s285 + $0x50] sm:$0xf]
      %v1242 = vld [vmem:[%s285 + $0x54] sm:$0xf]
      %v1243 = vld [vmem:[%s285 + $0x58] sm:$0xf]
      %v1244 = vld [vmem:[%s285 + $0x5c] sm:$0xf]
      %v1245 = vld [vmem:[%s285 + $0x60] sm:$0xf]
      %v1246 = vld [vmem:[%s285 + $0x64] sm:$0xf]
      %v1247 = vld [vmem:[%s285 + $0x68] sm:$0xf]
      %v1248 = vld [vmem:[%s285 + $0x6c] sm:$0xf]
      %v1249 = vld [vmem:[%s285 + $0x70] sm:$0xf]
      %v1250 = vld [vmem:[%s285 + $0x74] sm:$0xf]
      %v1251 = vld [vmem:[%s285 + $0x78] sm:$0xf]
      %v1252 = vld [vmem:[%s285 + $0x7c] sm:$0xf]
      %s1253 = smul.addr %s23, 2
      %s1254 = scalar_lea.vmem %s1, %s1253
      %v1255 = vld [vmem:[%s1254] sm:$0x3]
      %v1288 = vunpack.c.l.b16 %v1221
      %v1289 = vunpack.c.l.b16 %v1222
      %v1290 = vunpack.c.l.b16 %v1223
      %v1291 = vunpack.c.l.b16 %v1224
      %v1292 = vunpack.c.l.b16 %v1225
      %v1293 = vunpack.c.l.b16 %v1226
      %v1294 = vunpack.c.l.b16 %v1227
      %v1295 = vunpack.c.l.b16 %v1228
      %v1296 = vunpack.c.l.b16 %v1229
      %v1297 = vunpack.c.l.b16 %v1230
      %v1298 = vunpack.c.l.b16 %v1231
      %v1299 = vunpack.c.l.b16 %v1232
      %v1300 = vunpack.c.l.b16 %v1233
      %v1301 = vunpack.c.l.b16 %v1234
      %v1302 = vunpack.c.l.b16 %v1235
      %v1303 = vunpack.c.l.b16 %v1236
      %v1304 = vunpack.c.l.b16 %v1237
      %v1305 = vunpack.c.l.b16 %v1238
      %v1306 = vunpack.c.l.b16 %v1239
      %v1307 = vunpack.c.l.b16 %v1240
      %v1308 = vunpack.c.l.b16 %v1241
      %v1309 = vunpack.c.l.b16 %v1242
      %v1310 = vunpack.c.l.b16 %v1243
      %v1311 = vunpack.c.l.b16 %v1244
      %v1312 = vunpack.c.l.b16 %v1245
      %v1313 = vunpack.c.l.b16 %v1246
      %v1314 = vunpack.c.l.b16 %v1247
      %v1315 = vunpack.c.l.b16 %v1248
      %v1316 = vunpack.c.l.b16 %v1249
      %v1317 = vunpack.c.l.b16 %v1250
      %v1318 = vunpack.c.l.b16 %v1251
      %v1319 = vunpack.c.l.b16 %v1252
      %v1320 = vpack.c.b16 %v1289, %v1288
      %v1321 = vpack.c.b16 %v1291, %v1290
      %v1322 = vpack.c.b16 %v1293, %v1292
      %v1323 = vpack.c.b16 %v1295, %v1294
      %v1324 = vpack.c.b16 %v1297, %v1296
      %v1325 = vpack.c.b16 %v1299, %v1298
      %v1326 = vpack.c.b16 %v1301, %v1300
      %v1327 = vpack.c.b16 %v1303, %v1302
      %v1328 = vpack.c.b16 %v1305, %v1304
      %v1329 = vpack.c.b16 %v1307, %v1306
      %v1330 = vpack.c.b16 %v1309, %v1308
      %v1331 = vpack.c.b16 %v1311, %v1310
      %v1332 = vpack.c.b16 %v1313, %v1312
      %v1333 = vpack.c.b16 %v1315, %v1314
      %v1334 = vpack.c.b16 %v1317, %v1316
      %v1335 = vpack.c.b16 %v1319, %v1318
      %vm1336 = vcmask 31744
      %v1338 = vsel %vm1336, %v1320, 0
      %v1341 = vsel %vm1336, %v1321, 0
      %v1344 = vsel %vm1336, %v1322, 0
      %v1347 = vsel %vm1336, %v1323, 0
      %v1350 = vsel %vm1336, %v1324, 0
      %v1353 = vsel %vm1336, %v1325, 0
      %v1356 = vsel %vm1336, %v1326, 0
      %v1359 = vsel %vm1336, %v1327, 0
      %v1362 = vsel %vm1336, %v1328, 0
      %v1365 = vsel %vm1336, %v1329, 0
      %v1368 = vsel %vm1336, %v1330, 0
      %v1371 = vsel %vm1336, %v1331, 0
      %v1374 = vsel %vm1336, %v1332, 0
      %v1377 = vsel %vm1336, %v1333, 0
      %v1380 = vsel %vm1336, %v1334, 0
      %v1383 = vsel %vm1336, %v1335, 0
      %vm1385 = vcmask 1041408
      %v1387 = vsel %vm1385, %v1255, 0
      %1389 = vmatprep.subr.bf16.mxu0 0
      %1390 = vmatpush1.bf16.msra.mxu0 %v1387
      %1391 = vmatprep.subr.bf16.mxu0 0
      %1392 = vmatpush1.bf16.msra.mxu0 0
      %1393 = vmatprep.subr.bf16.mxu0 0
      %1394 = vmatpush1.bf16.msra.mxu0 0
      %1395 = vmatprep.subr.bf16.mxu0 0
      %1396 = vmatpush1.bf16.msra.mxu0 0
      %1397 = vmatprep.subr.bf16.mxu0 0
      %1398 = vmatpush1.bf16.msra.mxu0 0
      %1399 = vmatprep.subr.bf16.mxu0 0
      %1400 = vmatpush1.bf16.msra.mxu0 0
      %1401 = vmatprep.subr.bf16.mxu0 0
      %1402 = vmatpush1.bf16.msra.mxu0 0
      %1403 = vmatprep.subr.bf16.mxu0 0
      %1404 = vmatpush1.bf16.msra.mxu0 0
      %1405 = vmatprep.subr.bf16.mxu0 0
      %1406 = vmatpush1.bf16.msra.mxu0 0
      %1407 = vmatprep.subr.bf16.mxu0 0
      %1408 = vmatpush1.bf16.msra.mxu0 0
      %1409 = vmatprep.subr.bf16.mxu0 0
      %1410 = vmatpush1.bf16.msra.mxu0 0
      %1411 = vmatprep.subr.bf16.mxu0 0
      %1412 = vmatpush1.bf16.msra.mxu0 0
      %1413 = vmatprep.subr.bf16.mxu0 0
      %1414 = vmatpush1.bf16.msra.mxu0 0
      %1415 = vmatprep.subr.bf16.mxu0 0
      %1416 = vmatpush1.bf16.msra.mxu0 0
      %1417 = vmatprep.subr.bf16.mxu0 0
      %1418 = vmatpush1.bf16.msra.mxu0 0
      %1419 = vmatprep.subr.bf16.mxu0 0
      %1420 = vmatpush1.bf16.msra.mxu0 0
      %1421 = vmatprep.mubr.bf16.mxu0 0
      %1422 = vmatmul.mubr.bf16.gmra.mrb[0].mxu0 %v1338
      %v1423 = vpop.f32.mrb[0].mxu0
      %v1424 = vadd.f32 0.0, %v1423
      %v1425 = vpop.f32.mrb[0].mxu0
      %v1426 = vpop.f32.mrb[0].mxu0
      %v1427 = vadd.f32 0.0, %v1426
      %v1428 = vpop.f32.mrb[0].mxu0
      %1429 = vmatprep.mubr.bf16.mxu0 0
      %1430 = vmatmul.mubr.bf16.gmra.mrb[0].mxu0 %v1341
      %v1431 = vpop.f32.mrb[0].mxu0
      %v1432 = vadd.f32 0.0, %v1431
      %v1433 = vpop.f32.mrb[0].mxu0
      %v1434 = vpop.f32.mrb[0].mxu0
      %v1435 = vadd.f32 0.0, %v1434
      %v1436 = vpop.f32.mrb[0].mxu0
      %1437 = vmatprep.mubr.bf16.mxu0 0
      %1438 = vmatmul.mubr.bf16.gmra.mrb[0].mxu0 %v1344
      %v1439 = vpop.f32.mrb[0].mxu0
      %v1440 = vadd.f32 0.0, %v1439
      %v1441 = vpop.f32.mrb[0].mxu0
      %v1442 = vpop.f32.mrb[0].mxu0
      %v1443 = vadd.f32 0.0, %v1442
      %v1444 = vpop.f32.mrb[0].mxu0
      %1445 = vmatprep.mubr.bf16.mxu0 0
      %1446 = vmatmul.mubr.bf16.gmra.mrb[0].mxu0 %v1347
      %v1447 = vpop.f32.mrb[0].mxu0
      %v1448 = vadd.f32 0.0, %v1447
      %v1449 = vpop.f32.mrb[0].mxu0
      %v1450 = vpop.f32.mrb[0].mxu0
      %v1451 = vadd.f32 0.0, %v1450
      %v1452 = vpop.f32.mrb[0].mxu0
      %1453 = vmatprep.mubr.bf16.mxu0 0
      %1454 = vmatmul.mubr.bf16.gmra.mrb[0].mxu0 %v1350
      %v1455 = vpop.f32.mrb[0].mxu0
      %v1456 = vadd.f32 0.0, %v1455
      %v1457 = vpop.f32.mrb[0].mxu0
      %v1458 = vpop.f32.mrb[0].mxu0
      %v1459 = vadd.f32 0.0, %v1458
      %v1460 = vpop.f32.mrb[0].mxu0
      %1461 = vmatprep.mubr.bf16.mxu0 0
      %1462 = vmatmul.mubr.bf16.gmra.mrb[0].mxu0 %v1353
      %v1463 = vpop.f32.mrb[0].mxu0
      %v1464 = vadd.f32 0.0, %v1463
      %v1465 = vpop.f32.mrb[0].mxu0
      %v1466 = vpop.f32.mrb[0].mxu0
      %v1467 = vadd.f32 0.0, %v1466
      %v1468 = vpop.f32.mrb[0].mxu0
      %1469 = vmatprep.mubr.bf16.mxu0 0
      %1470 = vmatmul.mubr.bf16.gmra.mrb[0].mxu0 %v1356
      %v1471 = vpop.f32.mrb[0].mxu0
      %v1472 = vadd.f32 0.0, %v1471
      %v1473 = vpop.f32.mrb[0].mxu0
      %v1474 = vpop.f32.mrb[0].mxu0
      %v1475 = vadd.f32 0.0, %v1474
      %v1476 = vpop.f32.mrb[0].mxu0
      %1477 = vmatprep.mubr.bf16.mxu0 0
      %1478 = vmatmul.mubr.bf16.gmra.mrb[0].mxu0 %v1359
      %v1479 = vpop.f32.mrb[0].mxu0
      %v1480 = vadd.f32 0.0, %v1479
      %v1481 = vpop.f32.mrb[0].mxu0
      %v1482 = vpop.f32.mrb[0].mxu0
      %v1483 = vadd.f32 0.0, %v1482
      %v1484 = vpop.f32.mrb[0].mxu0
      %1485 = vmatprep.mubr.bf16.mxu0 0
      %1486 = vmatmul.mubr.bf16.gmra.mrb[0].mxu0 %v1362
      %v1487 = vpop.f32.mrb[0].mxu0
      %v1488 = vadd.f32 0.0, %v1487
      %v1489 = vpop.f32.mrb[0].mxu0
      %v1490 = vpop.f32.mrb[0].mxu0
      %v1491 = vadd.f32 0.0, %v1490
      %v1492 = vpop.f32.mrb[0].mxu0
      %1493 = vmatprep.mubr.bf16.mxu0 0
      %1494 = vmatmul.mubr.bf16.gmra.mrb[0].mxu0 %v1365
      %v1495 = vpop.f32.mrb[0].mxu0
      %v1496 = vadd.f32 0.0, %v1495
      %v1497 = vpop.f32.mrb[0].mxu0
      %v1498 = vpop.f32.mrb[0].mxu0
      %v1499 = vadd.f32 0.0, %v1498
      %v1500 = vpop.f32.mrb[0].mxu0
      %1501 = vmatprep.mubr.bf16.mxu0 0
      %1502 = vmatmul.mubr.bf16.gmra.mrb[0].mxu0 %v1368
      %v1503 = vpop.f32.mrb[0].mxu0
      %v1504 = vadd.f32 0.0, %v1503
      %v1505 = vpop.f32.mrb[0].mxu0
      %v1506 = vpop.f32.mrb[0].mxu0
      %v1507 = vadd.f32 0.0, %v1506
      %v1508 = vpop.f32.mrb[0].mxu0
      %1509 = vmatprep.mubr.bf16.mxu0 0
      %1510 = vmatmul.mubr.bf16.gmra.mrb[0].mxu0 %v1371
      %v1511 = vpop.f32.mrb[0].mxu0
      %v1512 = vadd.f32 0.0, %v1511
      %v1513 = vpop.f32.mrb[0].mxu0
      %v1514 = vpop.f32.mrb[0].mxu0
      %v1515 = vadd.f32 0.0, %v1514
      %v1516 = vpop.f32.mrb[0].mxu0
      %1517 = vmatprep.mubr.bf16.mxu0 0
      %1518 = vmatmul.mubr.bf16.gmra.mrb[0].mxu0 %v1374
      %v1519 = vpop.f32.mrb[0].mxu0
      %v1520 = vadd.f32 0.0, %v1519
      %v1521 = vpop.f32.mrb[0].mxu0
      %v1522 = vpop.f32.mrb[0].mxu0
      %v1523 = vadd.f32 0.0, %v1522
      %v1524 = vpop.f32.mrb[0].mxu0
      %1525 = vmatprep.mubr.bf16.mxu0 0
      %1526 = vmatmul.mubr.bf16.gmra.mrb[0].mxu0 %v1377
      %v1527 = vpop.f32.mrb[0].mxu0
      %v1528 = vadd.f32 0.0, %v1527
      %v1529 = vpop.f32.mrb[0].mxu0
      %v1530 = vpop.f32.mrb[0].mxu0
      %v1531 = vadd.f32 0.0, %v1530
      %v1532 = vpop.f32.mrb[0].mxu0
      %1533 = vmatprep.mubr.bf16.mxu0 0
      %1534 = vmatmul.mubr.bf16.gmra.mrb[0].mxu0 %v1380
      %v1535 = vpop.f32.mrb[0].mxu0
      %v1536 = vadd.f32 0.0, %v1535
      %v1537 = vpop.f32.mrb[0].mxu0
      %v1538 = vpop.f32.mrb[0].mxu0
      %v1539 = vadd.f32 0.0, %v1538
      %v1540 = vpop.f32.mrb[0].mxu0
      %1541 = vmatprep.mubr.bf16.mxu0 0
      %1542 = vmatmul.mubr.bf16.gmra.mrb[0].mxu0 %v1383
      %v1543 = vpop.f32.mrb[0].mxu0
      %v1544 = vadd.f32 0.0, %v1543
      %v1545 = vpop.f32.mrb[0].mxu0
      %v1546 = vpop.f32.mrb[0].mxu0
      %v1547 = vadd.f32 0.0, %v1546
      %v1548 = vpop.f32.mrb[0].mxu0
      %1549 = vdwg.mxu0
      %s1550 = scalar_lea.vmem %s2, %s23
      %v1551 = vld [vmem:[%s1550] sm:$0x1]
      %v1553 = vlaneseq
      %v1554 = vshrl.u32 %v1553, 7
      %v1555 = vsub.s32 0, %v1554
      %v1556 = vrot.slane %v1551, %v1555
      %v1558 = vmul.f32 %v1424, %v1556
      %v1559 = vmul.f32 %v1427, %v1556
      %v1560 = vmul.f32 %v1432, %v1556
      %v1561 = vmul.f32 %v1435, %v1556
      %v1562 = vmul.f32 %v1440, %v1556
      %v1563 = vmul.f32 %v1443, %v1556
      %v1564 = vmul.f32 %v1448, %v1556
      %v1565 = vmul.f32 %v1451, %v1556
      %v1566 = vmul.f32 %v1456, %v1556
      %v1567 = vmul.f32 %v1459, %v1556
      %v1568 = vmul.f32 %v1464, %v1556
      %v1569 = vmul.f32 %v1467, %v1556
      %v1570 = vmul.f32 %v1472, %v1556
      %v1571 = vmul.f32 %v1475, %v1556
      %v1572 = vmul.f32 %v1480, %v1556
      %v1573 = vmul.f32 %v1483, %v1556
      %v1574 = vmul.f32 %v1488, %v1556
      %v1575 = vmul.f32 %v1491, %v1556
      %v1576 = vmul.f32 %v1496, %v1556
      %v1577 = vmul.f32 %v1499, %v1556
      %v1578 = vmul.f32 %v1504, %v1556
      %v1579 = vmul.f32 %v1507, %v1556
      %v1580 = vmul.f32 %v1512, %v1556
      %v1581 = vmul.f32 %v1515, %v1556
      %v1582 = vmul.f32 %v1520, %v1556
      %v1583 = vmul.f32 %v1523, %v1556
      %v1584 = vmul.f32 %v1528, %v1556
      %v1585 = vmul.f32 %v1531, %v1556
      %v1586 = vmul.f32 %v1536, %v1556
      %v1587 = vmul.f32 %v1539, %v1556
      %v1588 = vmul.f32 %v1544, %v1556
      %v1589 = vmul.f32 %v1547, %v1556
      %s1590 = scalar_lea.vmem %s3, %s23
      %v1591 = vld [vmem:[%s1590] sm:$0x1]
      %v1593 = vlaneseq
      %v1594 = vshrl.u32 %v1593, 7
      %v1595 = vsub.s32 0, %v1594
      %v1596 = vrot.slane %v1591, %v1595
      %v1598 = vadd.f32 %v1558, %v1596
      %v1599 = vadd.f32 %v1559, %v1596
      %v1600 = vadd.f32 %v1560, %v1596
      %v1601 = vadd.f32 %v1561, %v1596
      %v1602 = vadd.f32 %v1562, %v1596
      %v1603 = vadd.f32 %v1563, %v1596
      %v1604 = vadd.f32 %v1564, %v1596
      %v1605 = vadd.f32 %v1565, %v1596
      %v1606 = vadd.f32 %v1566, %v1596
      %v1607 = vadd.f32 %v1567, %v1596
      %v1608 = vadd.f32 %v1568, %v1596
      %v1609 = vadd.f32 %v1569, %v1596
      %v1610 = vadd.f32 %v1570, %v1596
      %v1611 = vadd.f32 %v1571, %v1596
      %v1612 = vadd.f32 %v1572, %v1596
      %v1613 = vadd.f32 %v1573, %v1596
      %v1614 = vadd.f32 %v1574, %v1596
      %v1615 = vadd.f32 %v1575, %v1596
      %v1616 = vadd.f32 %v1576, %v1596
      %v1617 = vadd.f32 %v1577, %v1596
      %v1618 = vadd.f32 %v1578, %v1596
      %v1619 = vadd.f32 %v1579, %v1596
      %v1620 = vadd.f32 %v1580, %v1596
      %v1621 = vadd.f32 %v1581, %v1596
      %v1622 = vadd.f32 %v1582, %v1596
      %v1623 = vadd.f32 %v1583, %v1596
      %v1624 = vadd.f32 %v1584, %v1596
      %v1625 = vadd.f32 %v1585, %v1596
      %v1626 = vadd.f32 %v1586, %v1596
      %v1627 = vadd.f32 %v1587, %v1596
      %v1628 = vadd.f32 %v1588, %v1596
      %v1629 = vadd.f32 %v1589, %v1596
      %v1630 = vxor.u32 %v1598, 2147483648
      %v1631 = vxor.u32 %v1599, 2147483648
      %v1632 = vxor.u32 %v1600, 2147483648
      %v1633 = vxor.u32 %v1601, 2147483648
      %v1634 = vxor.u32 %v1602, 2147483648
      %v1635 = vxor.u32 %v1603, 2147483648
      %v1636 = vxor.u32 %v1604, 2147483648
      %v1637 = vxor.u32 %v1605, 2147483648
      %v1638 = vxor.u32 %v1606, 2147483648
      %v1639 = vxor.u32 %v1607, 2147483648
      %v1640 = vxor.u32 %v1608, 2147483648
      %v1641 = vxor.u32 %v1609, 2147483648
      %v1642 = vxor.u32 %v1610, 2147483648
      %v1643 = vxor.u32 %v1611, 2147483648
      %v1644 = vxor.u32 %v1612, 2147483648
      %v1645 = vxor.u32 %v1613, 2147483648
      %v1646 = vxor.u32 %v1614, 2147483648
      %v1647 = vxor.u32 %v1615, 2147483648
      %v1648 = vxor.u32 %v1616, 2147483648
      %v1649 = vxor.u32 %v1617, 2147483648
      %v1650 = vxor.u32 %v1618, 2147483648
      %v1651 = vxor.u32 %v1619, 2147483648
      %v1652 = vxor.u32 %v1620, 2147483648
      %v1653 = vxor.u32 %v1621, 2147483648
      %v1654 = vxor.u32 %v1622, 2147483648
      %v1655 = vxor.u32 %v1623, 2147483648
      %v1656 = vxor.u32 %v1624, 2147483648
      %v1657 = vxor.u32 %v1625, 2147483648
      %v1658 = vxor.u32 %v1626, 2147483648
      %v1659 = vxor.u32 %v1627, 2147483648
      %v1660 = vxor.u32 %v1628, 2147483648
      %v1661 = vxor.u32 %v1629, 2147483648
      %v1662 = vmul.f32 %v1630, 1.442695
      %v1663 = vpow.pop %v1662
      %v1664 = vmul.f32 %v1631, 1.442695
      %v1665 = vpow.pop %v1664
      %v1666 = vmul.f32 %v1632, 1.442695
      %v1667 = vpow.pop %v1666
      %v1668 = vmul.f32 %v1633, 1.442695
      %v1669 = vpow.pop %v1668
      %v1670 = vmul.f32 %v1634, 1.442695
      %v1671 = vpow.pop %v1670
      %v1672 = vmul.f32 %v1635, 1.442695
      %v1673 = vpow.pop %v1672
      %v1674 = vmul.f32 %v1636, 1.442695
      %v1675 = vpow.pop %v1674
      %v1676 = vmul.f32 %v1637, 1.442695
      %v1677 = vpow.pop %v1676
      %v1678 = vmul.f32 %v1638, 1.442695
      %v1679 = vpow.pop %v1678
      %v1680 = vmul.f32 %v1639, 1.442695
      %v1681 = vpow.pop %v1680
      %v1682 = vmul.f32 %v1640, 1.442695
      %v1683 = vpow.pop %v1682
      %v1684 = vmul.f32 %v1641, 1.442695
      %v1685 = vpow.pop %v1684
      %v1686 = vmul.f32 %v1642, 1.442695
      %v1687 = vpow.pop %v1686
      %v1688 = vmul.f32 %v1643, 1.442695
      %v1689 = vpow.pop %v1688
      %v1690 = vmul.f32 %v1644, 1.442695
      %v1691 = vpow.pop %v1690
      %v1692 = vmul.f32 %v1645, 1.442695
      %v1693 = vpow.pop %v1692
      %v1694 = vmul.f32 %v1646, 1.442695
      %v1695 = vpow.pop %v1694
      %v1696 = vmul.f32 %v1647, 1.442695
      %v1697 = vpow.pop %v1696
      %v1698 = vmul.f32 %v1648, 1.442695
      %v1699 = vpow.pop %v1698
      %v1700 = vmul.f32 %v1649, 1.442695
      %v1701 = vpow.pop %v1700
      %v1702 = vmul.f32 %v1650, 1.442695
      %v1703 = vpow.pop %v1702
      %v1704 = vmul.f32 %v1651, 1.442695
      %v1705 = vpow.pop %v1704
      %v1706 = vmul.f32 %v1652, 1.442695
      %v1707 = vpow.pop %v1706
      %v1708 = vmul.f32 %v1653, 1.442695
      %v1709 = vpow.pop %v1708
      %v1710 = vmul.f32 %v1654, 1.442695
      %v1711 = vpow.pop %v1710
      %v1712 = vmul.f32 %v1655, 1.442695
      %v1713 = vpow.pop %v1712
      %v1714 = vmul.f32 %v1656, 1.442695
      %v1715 = vpow.pop %v1714
      %v1716 = vmul.f32 %v1657, 1.442695
      %v1717 = vpow.pop %v1716
      %v1718 = vmul.f32 %v1658, 1.442695
      %v1719 = vpow.pop %v1718
      %v1720 = vmul.f32 %v1659, 1.442695
      %v1721 = vpow.pop %v1720
      %v1722 = vmul.f32 %v1660, 1.442695
      %v1723 = vpow.pop %v1722
      %v1724 = vmul.f32 %v1661, 1.442695
      %v1725 = vpow.pop %v1724
      %v1726 = vadd.f32 %v1663, 1.0
      %v1727 = vadd.f32 %v1665, 1.0
      %v1728 = vadd.f32 %v1667, 1.0
      %v1729 = vadd.f32 %v1669, 1.0
      %v1730 = vadd.f32 %v1671, 1.0
      %v1731 = vadd.f32 %v1673, 1.0
      %v1732 = vadd.f32 %v1675, 1.0
      %v1733 = vadd.f32 %v1677, 1.0
      %v1734 = vadd.f32 %v1679, 1.0
      %v1735 = vadd.f32 %v1681, 1.0
      %v1736 = vadd.f32 %v1683, 1.0
      %v1737 = vadd.f32 %v1685, 1.0
      %v1738 = vadd.f32 %v1687, 1.0
      %v1739 = vadd.f32 %v1689, 1.0
      %v1740 = vadd.f32 %v1691, 1.0
      %v1741 = vadd.f32 %v1693, 1.0
      %v1742 = vadd.f32 %v1695, 1.0
      %v1743 = vadd.f32 %v1697, 1.0
      %v1744 = vadd.f32 %v1699, 1.0
      %v1745 = vadd.f32 %v1701, 1.0
      %v1746 = vadd.f32 %v1703, 1.0
      %v1747 = vadd.f32 %v1705, 1.0
      %v1748 = vadd.f32 %v1707, 1.0
      %v1749 = vadd.f32 %v1709, 1.0
      %v1750 = vadd.f32 %v1711, 1.0
      %v1751 = vadd.f32 %v1713, 1.0
      %v1752 = vadd.f32 %v1715, 1.0
      %v1753 = vadd.f32 %v1717, 1.0
      %v1754 = vadd.f32 %v1719, 1.0
      %v1755 = vadd.f32 %v1721, 1.0
      %v1756 = vadd.f32 %v1723, 1.0
      %v1757 = vadd.f32 %v1725, 1.0
      %v1758 = vrcp.pop %v1726
      %v1759 = vmul.f32 1.0, %v1758
      %v1760 = vrcp.pop %v1727
      %v1761 = vmul.f32 1.0, %v1760
      %v1762 = vrcp.pop %v1728
      %v1763 = vmul.f32 1.0, %v1762
      %v1764 = vrcp.pop %v1729
      %v1765 = vmul.f32 1.0, %v1764
      %v1766 = vrcp.pop %v1730
      %v1767 = vmul.f32 1.0, %v1766
      %v1768 = vrcp.pop %v1731
      %v1769 = vmul.f32 1.0, %v1768
      %v1770 = vrcp.pop %v1732
      %v1771 = vmul.f32 1.0, %v1770
      %v1772 = vrcp.pop %v1733
      %v1773 = vmul.f32 1.0, %v1772
      %v1774 = vrcp.pop %v1734
      %v1775 = vmul.f32 1.0, %v1774
      %v1776 = vrcp.pop %v1735
      %v1777 = vmul.f32 1.0, %v1776
      %v1778 = vrcp.pop %v1736
      %v1779 = vmul.f32 1.0, %v1778
      %v1780 = vrcp.pop %v1737
      %v1781 = vmul.f32 1.0, %v1780
      %v1782 = vrcp.pop %v1738
      %v1783 = vmul.f32 1.0, %v1782
      %v1784 = vrcp.pop %v1739
      %v1785 = vmul.f32 1.0, %v1784
      %v1786 = vrcp.pop %v1740
      %v1787 = vmul.f32 1.0, %v1786
      %v1788 = vrcp.pop %v1741
      %v1789 = vmul.f32 1.0, %v1788
      %v1790 = vrcp.pop %v1742
      %v1791 = vmul.f32 1.0, %v1790
      %v1792 = vrcp.pop %v1743
      %v1793 = vmul.f32 1.0, %v1792
      %v1794 = vrcp.pop %v1744
      %v1795 = vmul.f32 1.0, %v1794
      %v1796 = vrcp.pop %v1745
      %v1797 = vmul.f32 1.0, %v1796
      %v1798 = vrcp.pop %v1746
      %v1799 = vmul.f32 1.0, %v1798
      %v1800 = vrcp.pop %v1747
      %v1801 = vmul.f32 1.0, %v1800
      %v1802 = vrcp.pop %v1748
      %v1803 = vmul.f32 1.0, %v1802
      %v1804 = vrcp.pop %v1749
      %v1805 = vmul.f32 1.0, %v1804
      %v1806 = vrcp.pop %v1750
      %v1807 = vmul.f32 1.0, %v1806
      %v1808 = vrcp.pop %v1751
      %v1809 = vmul.f32 1.0, %v1808
      %v1810 = vrcp.pop %v1752
      %v1811 = vmul.f32 1.0, %v1810
      %v1812 = vrcp.pop %v1753
      %v1813 = vmul.f32 1.0, %v1812
      %v1814 = vrcp.pop %v1754
      %v1815 = vmul.f32 1.0, %v1814
      %v1816 = vrcp.pop %v1755
      %v1817 = vmul.f32 1.0, %v1816
      %v1818 = vrcp.pop %v1756
      %v1819 = vmul.f32 1.0, %v1818
      %v1820 = vrcp.pop %v1757
      %v1821 = vmul.f32 1.0, %v1820
      %v1822 = vmul.f32 %v1598, %v1759
      %v1823 = vmul.f32 %v1599, %v1761
      %v1824 = vmul.f32 %v1600, %v1763
      %v1825 = vmul.f32 %v1601, %v1765
      %v1826 = vmul.f32 %v1602, %v1767
      %v1827 = vmul.f32 %v1603, %v1769
      %v1828 = vmul.f32 %v1604, %v1771
      %v1829 = vmul.f32 %v1605, %v1773
      %v1830 = vmul.f32 %v1606, %v1775
      %v1831 = vmul.f32 %v1607, %v1777
      %v1832 = vmul.f32 %v1608, %v1779
      %v1833 = vmul.f32 %v1609, %v1781
      %v1834 = vmul.f32 %v1610, %v1783
      %v1835 = vmul.f32 %v1611, %v1785
      %v1836 = vmul.f32 %v1612, %v1787
      %v1837 = vmul.f32 %v1613, %v1789
      %v1838 = vmul.f32 %v1614, %v1791
      %v1839 = vmul.f32 %v1615, %v1793
      %v1840 = vmul.f32 %v1616, %v1795
      %v1841 = vmul.f32 %v1617, %v1797
      %v1842 = vmul.f32 %v1618, %v1799
      %v1843 = vmul.f32 %v1619, %v1801
      %v1844 = vmul.f32 %v1620, %v1803
      %v1845 = vmul.f32 %v1621, %v1805
      %v1846 = vmul.f32 %v1622, %v1807
      %v1847 = vmul.f32 %v1623, %v1809
      %v1848 = vmul.f32 %v1624, %v1811
      %v1849 = vmul.f32 %v1625, %v1813
      %v1850 = vmul.f32 %v1626, %v1815
      %v1851 = vmul.f32 %v1627, %v1817
      %v1852 = vmul.f32 %v1628, %v1819
      %v1853 = vmul.f32 %v1629, %v1821
      %v1855 = vrot.slane %v1853, 6
      %v1888 = vrot.slane %v1822, 6
      %v1889 = vrot.slane %v1823, 6
      %v1890 = vsel %vm1385, %v1888, %v1889
      %v1891 = vrot.slane %v1824, 6
      %v1892 = vsel %vm1385, %v1889, %v1891
      %v1893 = vrot.slane %v1825, 6
      %v1894 = vsel %vm1385, %v1891, %v1893
      %v1895 = vrot.slane %v1826, 6
      %v1896 = vsel %vm1385, %v1893, %v1895
      %v1897 = vrot.slane %v1827, 6
      %v1898 = vsel %vm1385, %v1895, %v1897
      %v1899 = vrot.slane %v1828, 6
      %v1900 = vsel %vm1385, %v1897, %v1899
      %v1901 = vrot.slane %v1829, 6
      %v1902 = vsel %vm1385, %v1899, %v1901
      %v1903 = vrot.slane %v1830, 6
      %v1904 = vsel %vm1385, %v1901, %v1903
      %v1905 = vrot.slane %v1831, 6
      %v1906 = vsel %vm1385, %v1903, %v1905
      %v1907 = vrot.slane %v1832, 6
      %v1908 = vsel %vm1385, %v1905, %v1907
      %v1909 = vrot.slane %v1833, 6
      %v1910 = vsel %vm1385, %v1907, %v1909
      %v1911 = vrot.slane %v1834, 6
      %v1912 = vsel %vm1385, %v1909, %v1911
      %v1913 = vrot.slane %v1835, 6
      %v1914 = vsel %vm1385, %v1911, %v1913
      %v1915 = vrot.slane %v1836, 6
      %v1916 = vsel %vm1385, %v1913, %v1915
      %v1917 = vrot.slane %v1837, 6
      %v1918 = vsel %vm1385, %v1915, %v1917
      %v1919 = vrot.slane %v1838, 6
      %v1920 = vsel %vm1385, %v1917, %v1919
      %v1921 = vrot.slane %v1839, 6
      %v1922 = vsel %vm1385, %v1919, %v1921
      %v1923 = vrot.slane %v1840, 6
      %v1924 = vsel %vm1385, %v1921, %v1923
      %v1925 = vrot.slane %v1841, 6
      %v1926 = vsel %vm1385, %v1923, %v1925
      %v1927 = vrot.slane %v1842, 6
      %v1928 = vsel %vm1385, %v1925, %v1927
      %v1929 = vrot.slane %v1843, 6
      %v1930 = vsel %vm1385, %v1927, %v1929
      %v1931 = vrot.slane %v1844, 6
      %v1932 = vsel %vm1385, %v1929, %v1931
      %v1933 = vrot.slane %v1845, 6
      %v1934 = vsel %vm1385, %v1931, %v1933
      %v1935 = vrot.slane %v1846, 6
      %v1936 = vsel %vm1385, %v1933, %v1935
      %v1937 = vrot.slane %v1847, 6
      %v1938 = vsel %vm1385, %v1935, %v1937
      %v1939 = vrot.slane %v1848, 6
      %v1940 = vsel %vm1385, %v1937, %v1939
      %v1941 = vrot.slane %v1849, 6
      %v1942 = vsel %vm1385, %v1939, %v1941
      %v1943 = vrot.slane %v1850, 6
      %v1944 = vsel %vm1385, %v1941, %v1943
      %v1945 = vrot.slane %v1851, 6
      %v1946 = vsel %vm1385, %v1943, %v1945
      %v1947 = vrot.slane %v1852, 6
      %v1948 = vsel %vm1385, %v1945, %v1947
      %v1949 = vsel %vm1385, %v1947, %v1855
      %v1982 = vsel %vm1385, %v1855, %v1888
      %v1983 = vadd.f32 %v1982, %v741
      %v1984 = vadd.f32 %v1890, %v742
      %v1985 = vadd.f32 %v1892, %v743
      %v1986 = vadd.f32 %v1894, %v744
      %v1987 = vadd.f32 %v1896, %v745
      %v1988 = vadd.f32 %v1898, %v746
      %v1989 = vadd.f32 %v1900, %v747
      %v1990 = vadd.f32 %v1902, %v748
      %v1991 = vadd.f32 %v1904, %v749
      %v1992 = vadd.f32 %v1906, %v750
      %v1993 = vadd.f32 %v1908, %v751
      %v1994 = vadd.f32 %v1910, %v752
      %v1995 = vadd.f32 %v1912, %v753
      %v1996 = vadd.f32 %v1914, %v754
      %v1997 = vadd.f32 %v1916, %v755
      %v1998 = vadd.f32 %v1918, %v756
      %v1999 = vadd.f32 %v1920, %v757
      %v2000 = vadd.f32 %v1922, %v758
      %v2001 = vadd.f32 %v1924, %v759
      %v2002 = vadd.f32 %v1926, %v760
      %v2003 = vadd.f32 %v1928, %v761
      %v2004 = vadd.f32 %v1930, %v762
      %v2005 = vadd.f32 %v1932, %v763
      %v2006 = vadd.f32 %v1934, %v764
      %v2007 = vadd.f32 %v1936, %v765
      %v2008 = vadd.f32 %v1938, %v766
      %v2009 = vadd.f32 %v1940, %v767
      %v2010 = vadd.f32 %v1942, %v768
      %v2011 = vadd.f32 %v1944, %v769
      %v2012 = vadd.f32 %v1946, %v770
      %v2013 = vadd.f32 %v1948, %v771
      %v2014 = vadd.f32 %v1949, %v772
      %v2015 = vmax.f32 %v1822, %v1983
      %v2016 = vmax.f32 %v1823, %v1984
      %v2017 = vmax.f32 %v1824, %v1985
      %v2018 = vmax.f32 %v1825, %v1986
      %v2019 = vmax.f32 %v1826, %v1987
      %v2020 = vmax.f32 %v1827, %v1988
      %v2021 = vmax.f32 %v1828, %v1989
      %v2022 = vmax.f32 %v1829, %v1990
      %v2023 = vmax.f32 %v1830, %v1991
      %v2024 = vmax.f32 %v1831, %v1992
      %v2025 = vmax.f32 %v1832, %v1993
      %v2026 = vmax.f32 %v1833, %v1994
      %v2027 = vmax.f32 %v1834, %v1995
      %v2028 = vmax.f32 %v1835, %v1996
      %v2029 = vmax.f32 %v1836, %v1997
      %v2030 = vmax.f32 %v1837, %v1998
      %v2031 = vmax.f32 %v1838, %v1999
      %v2032 = vmax.f32 %v1839, %v2000
      %v2033 = vmax.f32 %v1840, %v2001
      %v2034 = vmax.f32 %v1841, %v2002
      %v2035 = vmax.f32 %v1842, %v2003
      %v2036 = vmax.f32 %v1843, %v2004
      %v2037 = vmax.f32 %v1844, %v2005
      %v2038 = vmax.f32 %v1845, %v2006
      %v2039 = vmax.f32 %v1846, %v2007
      %v2040 = vmax.f32 %v1847, %v2008
      %v2041 = vmax.f32 %v1848, %v2009
      %v2042 = vmax.f32 %v1849, %v2010
      %v2043 = vmax.f32 %v1850, %v2011
      %v2044 = vmax.f32 %v1851, %v2012
      %v2045 = vmax.f32 %v1852, %v2013
      %v2046 = vmax.f32 %v1853, %v2014
      %v2047 = vrot.slane %v1853, 7
      %vm2049 = vcmask 1040384
      %v2050 = vrot.slane %v1822, 7
      %v2051 = vrot.slane %v1823, 7
      %v2052 = vsel %vm2049, %v2050, %v2051
      %v2053 = vrot.slane %v1824, 7
      %v2054 = vsel %vm2049, %v2051, %v2053
      %v2055 = vrot.slane %v1825, 7
      %v2056 = vsel %vm2049, %v2053, %v2055
      %v2057 = vrot.slane %v1826, 7
      %v2058 = vsel %vm2049, %v2055, %v2057
      %v2059 = vrot.slane %v1827, 7
      %v2060 = vsel %vm2049, %v2057, %v2059
      %v2061 = vrot.slane %v1828, 7
      %v2062 = vsel %vm2049, %v2059, %v2061
      %v2063 = vrot.slane %v1829, 7
      %v2064 = vsel %vm2049, %v2061, %v2063
      %v2065 = vrot.slane %v1830, 7
      %v2066 = vsel %vm2049, %v2063, %v2065
      %v2067 = vrot.slane %v1831, 7
      %v2068 = vsel %vm2049, %v2065, %v2067
      %v2069 = vrot.slane %v1832, 7
      %v2070 = vsel %vm2049, %v2067, %v2069
      %v2071 = vrot.slane %v1833, 7
      %v2072 = vsel %vm2049, %v2069, %v2071
      %v2073 = vrot.slane %v1834, 7
      %v2074 = vsel %vm2049, %v2071, %v2073
      %v2075 = vrot.slane %v1835, 7
      %v2076 = vsel %vm2049, %v2073, %v2075
      %v2077 = vrot.slane %v1836, 7
      %v2078 = vsel %vm2049, %v2075, %v2077
      %v2079 = vrot.slane %v1837, 7
      %v2080 = vsel %vm2049, %v2077, %v2079
      %v2081 = vrot.slane %v1838, 7
      %v2082 = vsel %vm2049, %v2079, %v2081
      %v2083 = vrot.slane %v1839, 7
      %v2084 = vsel %vm2049, %v2081, %v2083
      %v2085 = vrot.slane %v1840, 7
      %v2086 = vsel %vm2049, %v2083, %v2085
      %v2087 = vrot.slane %v1841, 7
      %v2088 = vsel %vm2049, %v2085, %v2087
      %v2089 = vrot.slane %v1842, 7
      %v2090 = vsel %vm2049, %v2087, %v2089
      %v2091 = vrot.slane %v1843, 7
      %v2092 = vsel %vm2049, %v2089, %v2091
      %v2093 = vrot.slane %v1844, 7
      %v2094 = vsel %vm2049, %v2091, %v2093
      %v2095 = vrot.slane %v1845, 7
      %v2096 = vsel %vm2049, %v2093, %v2095
      %v2097 = vrot.slane %v1846, 7
      %v2098 = vsel %vm2049, %v2095, %v2097
      %v2099 = vrot.slane %v1847, 7
      %v2100 = vsel %vm2049, %v2097, %v2099
      %v2101 = vrot.slane %v1848, 7
      %v2102 = vsel %vm2049, %v2099, %v2101
      %v2103 = vrot.slane %v1849, 7
      %v2104 = vsel %vm2049, %v2101, %v2103
      %v2105 = vrot.slane %v1850, 7
      %v2106 = vsel %vm2049, %v2103, %v2105
      %v2107 = vrot.slane %v1851, 7
      %v2108 = vsel %vm2049, %v2105, %v2107
      %v2109 = vrot.slane %v1852, 7
      %v2110 = vsel %vm2049, %v2107, %v2109
      %v2111 = vsel %vm2049, %v2109, %v2047
      %v2144 = vsel %vm2049, %v2047, %v2050
      %v2145 = vadd.f32 %v2144, %v805
      %v2146 = vadd.f32 %v2052, %v806
      %v2147 = vadd.f32 %v2054, %v807
      %v2148 = vadd.f32 %v2056, %v808
      %v2149 = vadd.f32 %v2058, %v809
      %v2150 = vadd.f32 %v2060, %v810
      %v2151 = vadd.f32 %v2062, %v811
      %v2152 = vadd.f32 %v2064, %v812
      %v2153 = vadd.f32 %v2066, %v813
      %v2154 = vadd.f32 %v2068, %v814
      %v2155 = vadd.f32 %v2070, %v815
      %v2156 = vadd.f32 %v2072, %v816
      %v2157 = vadd.f32 %v2074, %v817
      %v2158 = vadd.f32 %v2076, %v818
      %v2159 = vadd.f32 %v2078, %v819
      %v2160 = vadd.f32 %v2080, %v820
      %v2161 = vadd.f32 %v2082, %v821
      %v2162 = vadd.f32 %v2084, %v822
      %v2163 = vadd.f32 %v2086, %v823
      %v2164 = vadd.f32 %v2088, %v824
      %v2165 = vadd.f32 %v2090, %v825
      %v2166 = vadd.f32 %v2092, %v826
      %v2167 = vadd.f32 %v2094, %v827
      %v2168 = vadd.f32 %v2096, %v828
      %v2169 = vadd.f32 %v2098, %v829
      %v2170 = vadd.f32 %v2100, %v830
      %v2171 = vadd.f32 %v2102, %v831
      %v2172 = vadd.f32 %v2104, %v832
      %v2173 = vadd.f32 %v2106, %v833
      %v2174 = vadd.f32 %v2108, %v834
      %v2175 = vadd.f32 %v2110, %v835
      %v2176 = vadd.f32 %v2111, %v836
      %v2177 = vmax.f32 %v2015, %v2145
      %v2178 = vmax.f32 %v2016, %v2146
      %v2179 = vmax.f32 %v2017, %v2147
      %v2180 = vmax.f32 %v2018, %v2148
      %v2181 = vmax.f32 %v2019, %v2149
      %v2182 = vmax.f32 %v2020, %v2150
      %v2183 = vmax.f32 %v2021, %v2151
      %v2184 = vmax.f32 %v2022, %v2152
      %v2185 = vmax.f32 %v2023, %v2153
      %v2186 = vmax.f32 %v2024, %v2154
      %v2187 = vmax.f32 %v2025, %v2155
      %v2188 = vmax.f32 %v2026, %v2156
      %v2189 = vmax.f32 %v2027, %v2157
      %v2190 = vmax.f32 %v2028, %v2158
      %v2191 = vmax.f32 %v2029, %v2159
      %v2192 = vmax.f32 %v2030, %v2160
      %v2193 = vmax.f32 %v2031, %v2161
      %v2194 = vmax.f32 %v2032, %v2162
      %v2195 = vmax.f32 %v2033, %v2163
      %v2196 = vmax.f32 %v2034, %v2164
      %v2197 = vmax.f32 %v2035, %v2165
      %v2198 = vmax.f32 %v2036, %v2166
      %v2199 = vmax.f32 %v2037, %v2167
      %v2200 = vmax.f32 %v2038, %v2168
      %v2201 = vmax.f32 %v2039, %v2169
      %v2202 = vmax.f32 %v2040, %v2170
      %v2203 = vmax.f32 %v2041, %v2171
      %v2204 = vmax.f32 %v2042, %v2172
      %v2205 = vmax.f32 %v2043, %v2173
      %v2206 = vmax.f32 %v2044, %v2174
      %v2207 = vmax.f32 %v2045, %v2175
      %v2208 = vmax.f32 %v2046, %v2176
      %vm2209 = vcmask 1046528
      %v2210 = vrot.slane %v1822, 1
      %v2211 = vrot.slane %v1823, 1
      %v2212 = vsel %vm2209, %v2210, %v2211
      %v2213 = vrot.slane %v1824, 1
      %v2214 = vsel %vm2209, %v2211, %v2213
      %v2215 = vrot.slane %v1825, 1
      %v2216 = vsel %vm2209, %v2213, %v2215
      %v2217 = vrot.slane %v1826, 1
      %v2218 = vsel %vm2209, %v2215, %v2217
      %v2219 = vrot.slane %v1827, 1
      %v2220 = vsel %vm2209, %v2217, %v2219
      %v2221 = vrot.slane %v1828, 1
      %v2222 = vsel %vm2209, %v2219, %v2221
      %v2223 = vrot.slane %v1829, 1
      %v2224 = vsel %vm2209, %v2221, %v2223
      %v2225 = vrot.slane %v1830, 1
      %v2226 = vsel %vm2209, %v2223, %v2225
      %v2227 = vrot.slane %v1831, 1
      %v2228 = vsel %vm2209, %v2225, %v2227
      %v2229 = vrot.slane %v1832, 1
      %v2230 = vsel %vm2209, %v2227, %v2229
      %v2231 = vrot.slane %v1833, 1
      %v2232 = vsel %vm2209, %v2229, %v2231
      %v2233 = vrot.slane %v1834, 1
      %v2234 = vsel %vm2209, %v2231, %v2233
      %v2235 = vrot.slane %v1835, 1
      %v2236 = vsel %vm2209, %v2233, %v2235
      %v2237 = vrot.slane %v1836, 1
      %v2238 = vsel %vm2209, %v2235, %v2237
      %v2239 = vrot.slane %v1837, 1
      %v2240 = vsel %vm2209, %v2237, %v2239
      %v2241 = vrot.slane %v1838, 1
      %v2242 = vsel %vm2209, %v2239, %v2241
      %v2243 = vrot.slane %v1839, 1
      %v2244 = vsel %vm2209, %v2241, %v2243
      %v2245 = vrot.slane %v1840, 1
      %v2246 = vsel %vm2209, %v2243, %v2245
      %v2247 = vrot.slane %v1841, 1
      %v2248 = vsel %vm2209, %v2245, %v2247
      %v2249 = vrot.slane %v1842, 1
      %v2250 = vsel %vm2209, %v2247, %v2249
      %v2251 = vrot.slane %v1843, 1
      %v2252 = vsel %vm2209, %v2249, %v2251
      %v2253 = vrot.slane %v1844, 1
      %v2254 = vsel %vm2209, %v2251, %v2253
      %v2255 = vrot.slane %v1845, 1
      %v2256 = vsel %vm2209, %v2253, %v2255
      %v2257 = vrot.slane %v1846, 1
      %v2258 = vsel %vm2209, %v2255, %v2257
      %v2259 = vrot.slane %v1847, 1
      %v2260 = vsel %vm2209, %v2257, %v2259
      %v2261 = vrot.slane %v1848, 1
      %v2262 = vsel %vm2209, %v2259, %v2261
      %v2263 = vrot.slane %v1849, 1
      %v2264 = vsel %vm2209, %v2261, %v2263
      %v2265 = vrot.slane %v1850, 1
      %v2266 = vsel %vm2209, %v2263, %v2265
      %v2267 = vrot.slane %v1851, 1
      %v2268 = vsel %vm2209, %v2265, %v2267
      %v2269 = vrot.slane %v1852, 1
      %v2270 = vsel %vm2209, %v2267, %v2269
      %v2271 = vrot.slane %v1853, 1
      %v2272 = vsel %vm2209, %v2269, %v2271
      %v2306 = vsel %vm2209, %v2271, %v2210
      %v2307 = vadd.f32 %v2212, %v869
      %v2308 = vadd.f32 %v2214, %v870
      %v2309 = vadd.f32 %v2216, %v871
      %v2310 = vadd.f32 %v2218, %v872
      %v2311 = vadd.f32 %v2220, %v873
      %v2312 = vadd.f32 %v2222, %v874
      %v2313 = vadd.f32 %v2224, %v875
      %v2314 = vadd.f32 %v2226, %v876
      %v2315 = vadd.f32 %v2228, %v877
      %v2316 = vadd.f32 %v2230, %v878
      %v2317 = vadd.f32 %v2232, %v879
      %v2318 = vadd.f32 %v2234, %v880
      %v2319 = vadd.f32 %v2236, %v881
      %v2320 = vadd.f32 %v2238, %v882
      %v2321 = vadd.f32 %v2240, %v883
      %v2322 = vadd.f32 %v2242, %v884
      %v2323 = vadd.f32 %v2244, %v885
      %v2324 = vadd.f32 %v2246, %v886
      %v2325 = vadd.f32 %v2248, %v887
      %v2326 = vadd.f32 %v2250, %v888
      %v2327 = vadd.f32 %v2252, %v889
      %v2328 = vadd.f32 %v2254, %v890
      %v2329 = vadd.f32 %v2256, %v891
      %v2330 = vadd.f32 %v2258, %v892
      %v2331 = vadd.f32 %v2260, %v893
      %v2332 = vadd.f32 %v2262, %v894
      %v2333 = vadd.f32 %v2264, %v895
      %v2334 = vadd.f32 %v2266, %v896
      %v2335 = vadd.f32 %v2268, %v897
      %v2336 = vadd.f32 %v2270, %v898
      %v2337 = vadd.f32 %v2272, %v899
      %v2338 = vadd.f32 %v2306, %v900
      %v2339 = vmax.f32 %v2177, %v2307
      %v2340 = vmax.f32 %v2178, %v2308
      %v2341 = vmax.f32 %v2179, %v2309
      %v2342 = vmax.f32 %v2180, %v2310
      %v2343 = vmax.f32 %v2181, %v2311
      %v2344 = vmax.f32 %v2182, %v2312
      %v2345 = vmax.f32 %v2183, %v2313
      %v2346 = vmax.f32 %v2184, %v2314
      %v2347 = vmax.f32 %v2185, %v2315
      %v2348 = vmax.f32 %v2186, %v2316
      %v2349 = vmax.f32 %v2187, %v2317
      %v2350 = vmax.f32 %v2188, %v2318
      %v2351 = vmax.f32 %v2189, %v2319
      %v2352 = vmax.f32 %v2190, %v2320
      %v2353 = vmax.f32 %v2191, %v2321
      %v2354 = vmax.f32 %v2192, %v2322
      %v2355 = vmax.f32 %v2193, %v2323
      %v2356 = vmax.f32 %v2194, %v2324
      %v2357 = vmax.f32 %v2195, %v2325
      %v2358 = vmax.f32 %v2196, %v2326
      %v2359 = vmax.f32 %v2197, %v2327
      %v2360 = vmax.f32 %v2198, %v2328
      %v2361 = vmax.f32 %v2199, %v2329
      %v2362 = vmax.f32 %v2200, %v2330
      %v2363 = vmax.f32 %v2201, %v2331
      %v2364 = vmax.f32 %v2202, %v2332
      %v2365 = vmax.f32 %v2203, %v2333
      %v2366 = vmax.f32 %v2204, %v2334
      %v2367 = vmax.f32 %v2205, %v2335
      %v2368 = vmax.f32 %v2206, %v2336
      %v2369 = vmax.f32 %v2207, %v2337
      %v2370 = vmax.f32 %v2208, %v2338
      %vm2371 = vcmask 1045504
      %v2372 = vrot.slane %v1822, 2
      %v2373 = vrot.slane %v1823, 2
      %v2374 = vsel %vm2371, %v2372, %v2373
      %v2375 = vrot.slane %v1824, 2
      %v2376 = vsel %vm2371, %v2373, %v2375
      %v2377 = vrot.slane %v1825, 2
      %v2378 = vsel %vm2371, %v2375, %v2377
      %v2379 = vrot.slane %v1826, 2
      %v2380 = vsel %vm2371, %v2377, %v2379
      %v2381 = vrot.slane %v1827, 2
      %v2382 = vsel %vm2371, %v2379, %v2381
      %v2383 = vrot.slane %v1828, 2
      %v2384 = vsel %vm2371, %v2381, %v2383
      %v2385 = vrot.slane %v1829, 2
      %v2386 = vsel %vm2371, %v2383, %v2385
      %v2387 = vrot.slane %v1830, 2
      %v2388 = vsel %vm2371, %v2385, %v2387
      %v2389 = vrot.slane %v1831, 2
      %v2390 = vsel %vm2371, %v2387, %v2389
      %v2391 = vrot.slane %v1832, 2
      %v2392 = vsel %vm2371, %v2389, %v2391
      %v2393 = vrot.slane %v1833, 2
      %v2394 = vsel %vm2371, %v2391, %v2393
      %v2395 = vrot.slane %v1834, 2
      %v2396 = vsel %vm2371, %v2393, %v2395
      %v2397 = vrot.slane %v1835, 2
      %v2398 = vsel %vm2371, %v2395, %v2397
      %v2399 = vrot.slane %v1836, 2
      %v2400 = vsel %vm2371, %v2397, %v2399
      %v2401 = vrot.slane %v1837, 2
      %v2402 = vsel %vm2371, %v2399, %v2401
      %v2403 = vrot.slane %v1838, 2
      %v2404 = vsel %vm2371, %v2401, %v2403
      %v2405 = vrot.slane %v1839, 2
      %v2406 = vsel %vm2371, %v2403, %v2405
      %v2407 = vrot.slane %v1840, 2
      %v2408 = vsel %vm2371, %v2405, %v2407
      %v2409 = vrot.slane %v1841, 2
      %v2410 = vsel %vm2371, %v2407, %v2409
      %v2411 = vrot.slane %v1842, 2
      %v2412 = vsel %vm2371, %v2409, %v2411
      %v2413 = vrot.slane %v1843, 2
      %v2414 = vsel %vm2371, %v2411, %v2413
      %v2415 = vrot.slane %v1844, 2
      %v2416 = vsel %vm2371, %v2413, %v2415
      %v2417 = vrot.slane %v1845, 2
      %v2418 = vsel %vm2371, %v2415, %v2417
      %v2419 = vrot.slane %v1846, 2
      %v2420 = vsel %vm2371, %v2417, %v2419
      %v2421 = vrot.slane %v1847, 2
      %v2422 = vsel %vm2371, %v2419, %v2421
      %v2423 = vrot.slane %v1848, 2
      %v2424 = vsel %vm2371, %v2421, %v2423
      %v2425 = vrot.slane %v1849, 2
      %v2426 = vsel %vm2371, %v2423, %v2425
      %v2427 = vrot.slane %v1850, 2
      %v2428 = vsel %vm2371, %v2425, %v2427
      %v2429 = vrot.slane %v1851, 2
      %v2430 = vsel %vm2371, %v2427, %v2429
      %v2431 = vrot.slane %v1852, 2
      %v2432 = vsel %vm2371, %v2429, %v2431
      %v2433 = vrot.slane %v1853, 2
      %v2434 = vsel %vm2371, %v2431, %v2433
      %v2468 = vsel %vm2371, %v2433, %v2372
      %v2469 = vadd.f32 %v2374, %v933
      %v2470 = vadd.f32 %v2376, %v934
      %v2471 = vadd.f32 %v2378, %v935
      %v2472 = vadd.f32 %v2380, %v936
      %v2473 = vadd.f32 %v2382, %v937
      %v2474 = vadd.f32 %v2384, %v938
      %v2475 = vadd.f32 %v2386, %v939
      %v2476 = vadd.f32 %v2388, %v940
      %v2477 = vadd.f32 %v2390, %v941
      %v2478 = vadd.f32 %v2392, %v942
      %v2479 = vadd.f32 %v2394, %v943
      %v2480 = vadd.f32 %v2396, %v944
      %v2481 = vadd.f32 %v2398, %v945
      %v2482 = vadd.f32 %v2400, %v946
      %v2483 = vadd.f32 %v2402, %v947
      %v2484 = vadd.f32 %v2404, %v948
      %v2485 = vadd.f32 %v2406, %v949
      %v2486 = vadd.f32 %v2408, %v950
      %v2487 = vadd.f32 %v2410, %v951
      %v2488 = vadd.f32 %v2412, %v952
      %v2489 = vadd.f32 %v2414, %v953
      %v2490 = vadd.f32 %v2416, %v954
      %v2491 = vadd.f32 %v2418, %v955
      %v2492 = vadd.f32 %v2420, %v956
      %v2493 = vadd.f32 %v2422, %v957
      %v2494 = vadd.f32 %v2424, %v958
      %v2495 = vadd.f32 %v2426, %v959
      %v2496 = vadd.f32 %v2428, %v960
      %v2497 = vadd.f32 %v2430, %v961
      %v2498 = vadd.f32 %v2432, %v962
      %v2499 = vadd.f32 %v2434, %v963
      %v2500 = vadd.f32 %v2468, %v964
      %v2501 = vmax.f32 %v2339, %v2469
      %v2502 = vmax.f32 %v2340, %v2470
      %v2503 = vmax.f32 %v2341, %v2471
      %v2504 = vmax.f32 %v2342, %v2472
      %v2505 = vmax.f32 %v2343, %v2473
      %v2506 = vmax.f32 %v2344, %v2474
      %v2507 = vmax.f32 %v2345, %v2475
      %v2508 = vmax.f32 %v2346, %v2476
      %v2509 = vmax.f32 %v2347, %v2477
      %v2510 = vmax.f32 %v2348, %v2478
      %v2511 = vmax.f32 %v2349, %v2479
      %v2512 = vmax.f32 %v2350, %v2480
      %v2513 = vmax.f32 %v2351, %v2481
      %v2514 = vmax.f32 %v2352, %v2482
      %v2515 = vmax.f32 %v2353, %v2483
      %v2516 = vmax.f32 %v2354, %v2484
      %v2517 = vmax.f32 %v2355, %v2485
      %v2518 = vmax.f32 %v2356, %v2486
      %v2519 = vmax.f32 %v2357, %v2487
      %v2520 = vmax.f32 %v2358, %v2488
      %v2521 = vmax.f32 %v2359, %v2489
      %v2522 = vmax.f32 %v2360, %v2490
      %v2523 = vmax.f32 %v2361, %v2491
      %v2524 = vmax.f32 %v2362, %v2492
      %v2525 = vmax.f32 %v2363, %v2493
      %v2526 = vmax.f32 %v2364, %v2494
      %v2527 = vmax.f32 %v2365, %v2495
      %v2528 = vmax.f32 %v2366, %v2496
      %v2529 = vmax.f32 %v2367, %v2497
      %v2530 = vmax.f32 %v2368, %v2498
      %v2531 = vmax.f32 %v2369, %v2499
      %v2532 = vmax.f32 %v2370, %v2500
      %v2533 = vadd.f32 %v2529, %v997
      %v2534 = vadd.f32 %v2530, %v998
      %v2535 = vadd.f32 %v2531, %v999
      %v2536 = vadd.f32 %v2532, %v1000
      %v2537 = vadd.f32 %v2501, %v1001
      %v2538 = vadd.f32 %v2502, %v1002
      %v2539 = vadd.f32 %v2503, %v1003
      %v2540 = vadd.f32 %v2504, %v1004
      %v2541 = vadd.f32 %v2505, %v1005
      %v2542 = vadd.f32 %v2506, %v1006
      %v2543 = vadd.f32 %v2507, %v1007
      %v2544 = vadd.f32 %v2508, %v1008
      %v2545 = vadd.f32 %v2509, %v1009
      %v2546 = vadd.f32 %v2510, %v1010
      %v2547 = vadd.f32 %v2511, %v1011
      %v2548 = vadd.f32 %v2512, %v1012
      %v2549 = vadd.f32 %v2513, %v1013
      %v2550 = vadd.f32 %v2514, %v1014
      %v2551 = vadd.f32 %v2515, %v1015
      %v2552 = vadd.f32 %v2516, %v1016
      %v2553 = vadd.f32 %v2517, %v1017
      %v2554 = vadd.f32 %v2518, %v1018
      %v2555 = vadd.f32 %v2519, %v1019
      %v2556 = vadd.f32 %v2520, %v1020
      %v2557 = vadd.f32 %v2521, %v1021
      %v2558 = vadd.f32 %v2522, %v1022
      %v2559 = vadd.f32 %v2523, %v1023
      %v2560 = vadd.f32 %v2524, %v1024
      %v2561 = vadd.f32 %v2525, %v1025
      %v2562 = vadd.f32 %v2526, %v1026
      %v2563 = vadd.f32 %v2527, %v1027
      %v2564 = vadd.f32 %v2528, %v1028
      %v2565 = vmax.f32 %v2501, %v2533
      %v2566 = vmax.f32 %v2502, %v2534
      %v2567 = vmax.f32 %v2503, %v2535
      %v2568 = vmax.f32 %v2504, %v2536
      %v2569 = vmax.f32 %v2505, %v2537
      %v2570 = vmax.f32 %v2506, %v2538
      %v2571 = vmax.f32 %v2507, %v2539
      %v2572 = vmax.f32 %v2508, %v2540
      %v2573 = vmax.f32 %v2509, %v2541
      %v2574 = vmax.f32 %v2510, %v2542
      %v2575 = vmax.f32 %v2511, %v2543
      %v2576 = vmax.f32 %v2512, %v2544
      %v2577 = vmax.f32 %v2513, %v2545
      %v2578 = vmax.f32 %v2514, %v2546
      %v2579 = vmax.f32 %v2515, %v2547
      %v2580 = vmax.f32 %v2516, %v2548
      %v2581 = vmax.f32 %v2517, %v2549
      %v2582 = vmax.f32 %v2518, %v2550
      %v2583 = vmax.f32 %v2519, %v2551
      %v2584 = vmax.f32 %v2520, %v2552
      %v2585 = vmax.f32 %v2521, %v2553
      %v2586 = vmax.f32 %v2522, %v2554
      %v2587 = vmax.f32 %v2523, %v2555
      %v2588 = vmax.f32 %v2524, %v2556
      %v2589 = vmax.f32 %v2525, %v2557
      %v2590 = vmax.f32 %v2526, %v2558
      %v2591 = vmax.f32 %v2527, %v2559
      %v2592 = vmax.f32 %v2528, %v2560
      %v2593 = vmax.f32 %v2529, %v2561
      %v2594 = vmax.f32 %v2530, %v2562
      %v2595 = vmax.f32 %v2531, %v2563
      %v2596 = vmax.f32 %v2532, %v2564
      %v2597 = vadd.f32 %v2531, %v1061
      %v2598 = vadd.f32 %v2532, %v1062
      %v2599 = vadd.f32 %v2501, %v1063
      %v2600 = vadd.f32 %v2502, %v1064
      %v2601 = vadd.f32 %v2503, %v1065
      %v2602 = vadd.f32 %v2504, %v1066
      %v2603 = vadd.f32 %v2505, %v1067
      %v2604 = vadd.f32 %v2506, %v1068
      %v2605 = vadd.f32 %v2507, %v1069
      %v2606 = vadd.f32 %v2508, %v1070
      %v2607 = vadd.f32 %v2509, %v1071
      %v2608 = vadd.f32 %v2510, %v1072
      %v2609 = vadd.f32 %v2511, %v1073
      %v2610 = vadd.f32 %v2512, %v1074
      %v2611 = vadd.f32 %v2513, %v1075
      %v2612 = vadd.f32 %v2514, %v1076
      %v2613 = vadd.f32 %v2515, %v1077
      %v2614 = vadd.f32 %v2516, %v1078
      %v2615 = vadd.f32 %v2517, %v1079
      %v2616 = vadd.f32 %v2518, %v1080
      %v2617 = vadd.f32 %v2519, %v1081
      %v2618 = vadd.f32 %v2520, %v1082
      %v2619 = vadd.f32 %v2521, %v1083
      %v2620 = vadd.f32 %v2522, %v1084
      %v2621 = vadd.f32 %v2523, %v1085
      %v2622 = vadd.f32 %v2524, %v1086
      %v2623 = vadd.f32 %v2525, %v1087
      %v2624 = vadd.f32 %v2526, %v1088
      %v2625 = vadd.f32 %v2527, %v1089
      %v2626 = vadd.f32 %v2528, %v1090
      %v2627 = vadd.f32 %v2529, %v1091
      %v2628 = vadd.f32 %v2530, %v1092
      %v2629 = vmax.f32 %v2565, %v2597
      %v2630 = vmax.f32 %v2566, %v2598
      %v2631 = vmax.f32 %v2567, %v2599
      %v2632 = vmax.f32 %v2568, %v2600
      %v2633 = vmax.f32 %v2569, %v2601
      %v2634 = vmax.f32 %v2570, %v2602
      %v2635 = vmax.f32 %v2571, %v2603
      %v2636 = vmax.f32 %v2572, %v2604
      %v2637 = vmax.f32 %v2573, %v2605
      %v2638 = vmax.f32 %v2574, %v2606
      %v2639 = vmax.f32 %v2575, %v2607
      %v2640 = vmax.f32 %v2576, %v2608
      %v2641 = vmax.f32 %v2577, %v2609
      %v2642 = vmax.f32 %v2578, %v2610
      %v2643 = vmax.f32 %v2579, %v2611
      %v2644 = vmax.f32 %v2580, %v2612
      %v2645 = vmax.f32 %v2581, %v2613
      %v2646 = vmax.f32 %v2582, %v2614
      %v2647 = vmax.f32 %v2583, %v2615
      %v2648 = vmax.f32 %v2584, %v2616
      %v2649 = vmax.f32 %v2585, %v2617
      %v2650 = vmax.f32 %v2586, %v2618
      %v2651 = vmax.f32 %v2587, %v2619
      %v2652 = vmax.f32 %v2588, %v2620
      %v2653 = vmax.f32 %v2589, %v2621
      %v2654 = vmax.f32 %v2590, %v2622
      %v2655 = vmax.f32 %v2591, %v2623
      %v2656 = vmax.f32 %v2592, %v2624
      %v2657 = vmax.f32 %v2593, %v2625
      %v2658 = vmax.f32 %v2594, %v2626
      %v2659 = vmax.f32 %v2595, %v2627
      %v2660 = vmax.f32 %v2596, %v2628
      %v2661 = vadd.f32 %v2503, %v1125
      %v2662 = vadd.f32 %v2504, %v1126
      %v2663 = vadd.f32 %v2505, %v1127
      %v2664 = vadd.f32 %v2506, %v1128
      %v2665 = vadd.f32 %v2507, %v1129
      %v2666 = vadd.f32 %v2508, %v1130
      %v2667 = vadd.f32 %v2509, %v1131
      %v2668 = vadd.f32 %v2510, %v1132
      %v2669 = vadd.f32 %v2511, %v1133
      %v2670 = vadd.f32 %v2512, %v1134
      %v2671 = vadd.f32 %v2513, %v1135
      %v2672 = vadd.f32 %v2514, %v1136
      %v2673 = vadd.f32 %v2515, %v1137
      %v2674 = vadd.f32 %v2516, %v1138
      %v2675 = vadd.f32 %v2517, %v1139
      %v2676 = vadd.f32 %v2518, %v1140
      %v2677 = vadd.f32 %v2519, %v1141
      %v2678 = vadd.f32 %v2520, %v1142
      %v2679 = vadd.f32 %v2521, %v1143
      %v2680 = vadd.f32 %v2522, %v1144
      %v2681 = vadd.f32 %v2523, %v1145
      %v2682 = vadd.f32 %v2524, %v1146
      %v2683 = vadd.f32 %v2525, %v1147
      %v2684 = vadd.f32 %v2526, %v1148
      %v2685 = vadd.f32 %v2527, %v1149
      %v2686 = vadd.f32 %v2528, %v1150
      %v2687 = vadd.f32 %v2529, %v1151
      %v2688 = vadd.f32 %v2530, %v1152
      %v2689 = vadd.f32 %v2531, %v1153
      %v2690 = vadd.f32 %v2532, %v1154
      %v2691 = vadd.f32 %v2501, %v1155
      %v2692 = vadd.f32 %v2502, %v1156
      %v2693 = vmax.f32 %v2629, %v2661
      %v2694 = vmax.f32 %v2630, %v2662
      %v2695 = vmax.f32 %v2631, %v2663
      %v2696 = vmax.f32 %v2632, %v2664
      %v2697 = vmax.f32 %v2633, %v2665
      %v2698 = vmax.f32 %v2634, %v2666
      %v2699 = vmax.f32 %v2635, %v2667
      %v2700 = vmax.f32 %v2636, %v2668
      %v2701 = vmax.f32 %v2637, %v2669
      %v2702 = vmax.f32 %v2638, %v2670
      %v2703 = vmax.f32 %v2639, %v2671
      %v2704 = vmax.f32 %v2640, %v2672
      %v2705 = vmax.f32 %v2641, %v2673
      %v2706 = vmax.f32 %v2642, %v2674
      %v2707 = vmax.f32 %v2643, %v2675
      %v2708 = vmax.f32 %v2644, %v2676
      %v2709 = vmax.f32 %v2645, %v2677
      %v2710 = vmax.f32 %v2646, %v2678
      %v2711 = vmax.f32 %v2647, %v2679
      %v2712 = vmax.f32 %v2648, %v2680
      %v2713 = vmax.f32 %v2649, %v2681
      %v2714 = vmax.f32 %v2650, %v2682
      %v2715 = vmax.f32 %v2651, %v2683
      %v2716 = vmax.f32 %v2652, %v2684
      %v2717 = vmax.f32 %v2653, %v2685
      %v2718 = vmax.f32 %v2654, %v2686
      %v2719 = vmax.f32 %v2655, %v2687
      %v2720 = vmax.f32 %v2656, %v2688
      %v2721 = vmax.f32 %v2657, %v2689
      %v2722 = vmax.f32 %v2658, %v2690
      %v2723 = vmax.f32 %v2659, %v2691
      %v2724 = vmax.f32 %v2660, %v2692
      %v2725 = vadd.f32 %v2505, %v1189
      %v2726 = vadd.f32 %v2506, %v1190
      %v2727 = vadd.f32 %v2507, %v1191
      %v2728 = vadd.f32 %v2508, %v1192
      %v2729 = vadd.f32 %v2509, %v1193
      %v2730 = vadd.f32 %v2510, %v1194
      %v2731 = vadd.f32 %v2511, %v1195
      %v2732 = vadd.f32 %v2512, %v1196
      %v2733 = vadd.f32 %v2513, %v1197
      %v2734 = vadd.f32 %v2514, %v1198
      %v2735 = vadd.f32 %v2515, %v1199
      %v2736 = vadd.f32 %v2516, %v1200
      %v2737 = vadd.f32 %v2517, %v1201
      %v2738 = vadd.f32 %v2518, %v1202
      %v2739 = vadd.f32 %v2519, %v1203
      %v2740 = vadd.f32 %v2520, %v1204
      %v2741 = vadd.f32 %v2521, %v1205
      %v2742 = vadd.f32 %v2522, %v1206
      %v2743 = vadd.f32 %v2523, %v1207
      %v2744 = vadd.f32 %v2524, %v1208
      %v2745 = vadd.f32 %v2525, %v1209
      %v2746 = vadd.f32 %v2526, %v1210
      %v2747 = vadd.f32 %v2527, %v1211
      %v2748 = vadd.f32 %v2528, %v1212
      %v2749 = vadd.f32 %v2529, %v1213
      %v2750 = vadd.f32 %v2530, %v1214
      %v2751 = vadd.f32 %v2531, %v1215
      %v2752 = vadd.f32 %v2532, %v1216
      %v2753 = vadd.f32 %v2501, %v1217
      %v2754 = vadd.f32 %v2502, %v1218
      %v2755 = vadd.f32 %v2503, %v1219
      %v2756 = vadd.f32 %v2504, %v1220
      %v2757 = vmax.f32 %v2693, %v2725
      %v2758 = vmax.f32 %v2694, %v2726
      %v2759 = vmax.f32 %v2695, %v2727
      %v2760 = vmax.f32 %v2696, %v2728
      %v2761 = vmax.f32 %v2697, %v2729
      %v2762 = vmax.f32 %v2698, %v2730
      %v2763 = vmax.f32 %v2699, %v2731
      %v2764 = vmax.f32 %v2700, %v2732
      %v2765 = vmax.f32 %v2701, %v2733
      %v2766 = vmax.f32 %v2702, %v2734
      %v2767 = vmax.f32 %v2703, %v2735
      %v2768 = vmax.f32 %v2704, %v2736
      %v2769 = vmax.f32 %v2705, %v2737
      %v2770 = vmax.f32 %v2706, %v2738
      %v2771 = vmax.f32 %v2707, %v2739
      %v2772 = vmax.f32 %v2708, %v2740
      %v2773 = vmax.f32 %v2709, %v2741
      %v2774 = vmax.f32 %v2710, %v2742
      %v2775 = vmax.f32 %v2711, %v2743
      %v2776 = vmax.f32 %v2712, %v2744
      %v2777 = vmax.f32 %v2713, %v2745
      %v2778 = vmax.f32 %v2714, %v2746
      %v2779 = vmax.f32 %v2715, %v2747
      %v2780 = vmax.f32 %v2716, %v2748
      %v2781 = vmax.f32 %v2717, %v2749
      %v2782 = vmax.f32 %v2718, %v2750
      %v2783 = vmax.f32 %v2719, %v2751
      %v2784 = vmax.f32 %v2720, %v2752
      %v2785 = vmax.f32 %v2721, %v2753
      %v2786 = vmax.f32 %v2722, %v2754
      %v2787 = vmax.f32 %v2723, %v2755
      %v2788 = vmax.f32 %v2724, %v2756
      %v2790 = vrot.slane %v2788, 6
      %v2823 = vrot.slane %v2757, 6
      %v2824 = vrot.slane %v2758, 6
      %v2825 = vsel %vm1385, %v2823, %v2824
      %v2826 = vrot.slane %v2759, 6
      %v2827 = vsel %vm1385, %v2824, %v2826
      %v2828 = vrot.slane %v2760, 6
      %v2829 = vsel %vm1385, %v2826, %v2828
      %v2830 = vrot.slane %v2761, 6
      %v2831 = vsel %vm1385, %v2828, %v2830
      %v2832 = vrot.slane %v2762, 6
      %v2833 = vsel %vm1385, %v2830, %v2832
      %v2834 = vrot.slane %v2763, 6
      %v2835 = vsel %vm1385, %v2832, %v2834
      %v2836 = vrot.slane %v2764, 6
      %v2837 = vsel %vm1385, %v2834, %v2836
      %v2838 = vrot.slane %v2765, 6
      %v2839 = vsel %vm1385, %v2836, %v2838
      %v2840 = vrot.slane %v2766, 6
      %v2841 = vsel %vm1385, %v2838, %v2840
      %v2842 = vrot.slane %v2767, 6
      %v2843 = vsel %vm1385, %v2840, %v2842
      %v2844 = vrot.slane %v2768, 6
      %v2845 = vsel %vm1385, %v2842, %v2844
      %v2846 = vrot.slane %v2769, 6
      %v2847 = vsel %vm1385, %v2844, %v2846
      %v2848 = vrot.slane %v2770, 6
      %v2849 = vsel %vm1385, %v2846, %v2848
      %v2850 = vrot.slane %v2771, 6
      %v2851 = vsel %vm1385, %v2848, %v2850
      %v2852 = vrot.slane %v2772, 6
      %v2853 = vsel %vm1385, %v2850, %v2852
      %v2854 = vrot.slane %v2773, 6
      %v2855 = vsel %vm1385, %v2852, %v2854
      %v2856 = vrot.slane %v2774, 6
      %v2857 = vsel %vm1385, %v2854, %v2856
      %v2858 = vrot.slane %v2775, 6
      %v2859 = vsel %vm1385, %v2856, %v2858
      %v2860 = vrot.slane %v2776, 6
      %v2861 = vsel %vm1385, %v2858, %v2860
      %v2862 = vrot.slane %v2777, 6
      %v2863 = vsel %vm1385, %v2860, %v2862
      %v2864 = vrot.slane %v2778, 6
      %v2865 = vsel %vm1385, %v2862, %v2864
      %v2866 = vrot.slane %v2779, 6
      %v2867 = vsel %vm1385, %v2864, %v2866
      %v2868 = vrot.slane %v2780, 6
      %v2869 = vsel %vm1385, %v2866, %v2868
      %v2870 = vrot.slane %v2781, 6
      %v2871 = vsel %vm1385, %v2868, %v2870
      %v2872 = vrot.slane %v2782, 6
      %v2873 = vsel %vm1385, %v2870, %v2872
      %v2874 = vrot.slane %v2783, 6
      %v2875 = vsel %vm1385, %v2872, %v2874
      %v2876 = vrot.slane %v2784, 6
      %v2877 = vsel %vm1385, %v2874, %v2876
      %v2878 = vrot.slane %v2785, 6
      %v2879 = vsel %vm1385, %v2876, %v2878
      %v2880 = vrot.slane %v2786, 6
      %v2881 = vsel %vm1385, %v2878, %v2880
      %v2882 = vrot.slane %v2787, 6
      %v2883 = vsel %vm1385, %v2880, %v2882
      %v2884 = vsel %vm1385, %v2882, %v2790
      %v2917 = vsel %vm1385, %v2790, %v2823
      %v2918 = vadd.f32 %v2917, %v741
      %v2919 = vadd.f32 %v2825, %v742
      %v2920 = vadd.f32 %v2827, %v743
      %v2921 = vadd.f32 %v2829, %v744
      %v2922 = vadd.f32 %v2831, %v745
      %v2923 = vadd.f32 %v2833, %v746
      %v2924 = vadd.f32 %v2835, %v747
      %v2925 = vadd.f32 %v2837, %v748
      %v2926 = vadd.f32 %v2839, %v749
      %v2927 = vadd.f32 %v2841, %v750
      %v2928 = vadd.f32 %v2843, %v751
      %v2929 = vadd.f32 %v2845, %v752
      %v2930 = vadd.f32 %v2847, %v753
      %v2931 = vadd.f32 %v2849, %v754
      %v2932 = vadd.f32 %v2851, %v755
      %v2933 = vadd.f32 %v2853, %v756
      %v2934 = vadd.f32 %v2855, %v757
      %v2935 = vadd.f32 %v2857, %v758
      %v2936 = vadd.f32 %v2859, %v759
      %v2937 = vadd.f32 %v2861, %v760
      %v2938 = vadd.f32 %v2863, %v761
      %v2939 = vadd.f32 %v2865, %v762
      %v2940 = vadd.f32 %v2867, %v763
      %v2941 = vadd.f32 %v2869, %v764
      %v2942 = vadd.f32 %v2871, %v765
      %v2943 = vadd.f32 %v2873, %v766
      %v2944 = vadd.f32 %v2875, %v767
      %v2945 = vadd.f32 %v2877, %v768
      %v2946 = vadd.f32 %v2879, %v769
      %v2947 = vadd.f32 %v2881, %v770
      %v2948 = vadd.f32 %v2883, %v771
      %v2949 = vadd.f32 %v2884, %v772
      %v2950 = vmax.f32 %v2757, %v2918
      %v2951 = vmax.f32 %v2758, %v2919
      %v2952 = vmax.f32 %v2759, %v2920
      %v2953 = vmax.f32 %v2760, %v2921
      %v2954 = vmax.f32 %v2761, %v2922
      %v2955 = vmax.f32 %v2762, %v2923
      %v2956 = vmax.f32 %v2763, %v2924
      %v2957 = vmax.f32 %v2764, %v2925
      %v2958 = vmax.f32 %v2765, %v2926
      %v2959 = vmax.f32 %v2766, %v2927
      %v2960 = vmax.f32 %v2767, %v2928
      %v2961 = vmax.f32 %v2768, %v2929
      %v2962 = vmax.f32 %v2769, %v2930
      %v2963 = vmax.f32 %v2770, %v2931
      %v2964 = vmax.f32 %v2771, %v2932
      %v2965 = vmax.f32 %v2772, %v2933
      %v2966 = vmax.f32 %v2773, %v2934
      %v2967 = vmax.f32 %v2774, %v2935
      %v2968 = vmax.f32 %v2775, %v2936
      %v2969 = vmax.f32 %v2776, %v2937
      %v2970 = vmax.f32 %v2777, %v2938
      %v2971 = vmax.f32 %v2778, %v2939
      %v2972 = vmax.f32 %v2779, %v2940
      %v2973 = vmax.f32 %v2780, %v2941
      %v2974 = vmax.f32 %v2781, %v2942
      %v2975 = vmax.f32 %v2782, %v2943
      %v2976 = vmax.f32 %v2783, %v2944
      %v2977 = vmax.f32 %v2784, %v2945
      %v2978 = vmax.f32 %v2785, %v2946
      %v2979 = vmax.f32 %v2786, %v2947
      %v2980 = vmax.f32 %v2787, %v2948
      %v2981 = vmax.f32 %v2788, %v2949
      %v2982 = vrot.slane %v2788, 7
      %v2984 = vrot.slane %v2757, 7
      %v2985 = vrot.slane %v2758, 7
      %v2986 = vsel %vm2049, %v2984, %v2985
      %v2987 = vrot.slane %v2759, 7
      %v2988 = vsel %vm2049, %v2985, %v2987
      %v2989 = vrot.slane %v2760, 7
      %v2990 = vsel %vm2049, %v2987, %v2989
      %v2991 = vrot.slane %v2761, 7
      %v2992 = vsel %vm2049, %v2989, %v2991
      %v2993 = vrot.slane %v2762, 7
      %v2994 = vsel %vm2049, %v2991, %v2993
      %v2995 = vrot.slane %v2763, 7
      %v2996 = vsel %vm2049, %v2993, %v2995
      %v2997 = vrot.slane %v2764, 7
      %v2998 = vsel %vm2049, %v2995, %v2997
      %v2999 = vrot.slane %v2765, 7
      %v3000 = vsel %vm2049, %v2997, %v2999
      %v3001 = vrot.slane %v2766, 7
      %v3002 = vsel %vm2049, %v2999, %v3001
      %v3003 = vrot.slane %v2767, 7
      %v3004 = vsel %vm2049, %v3001, %v3003
      %v3005 = vrot.slane %v2768, 7
      %v3006 = vsel %vm2049, %v3003, %v3005
      %v3007 = vrot.slane %v2769, 7
      %v3008 = vsel %vm2049, %v3005, %v3007
      %v3009 = vrot.slane %v2770, 7
      %v3010 = vsel %vm2049, %v3007, %v3009
      %v3011 = vrot.slane %v2771, 7
      %v3012 = vsel %vm2049, %v3009, %v3011
      %v3013 = vrot.slane %v2772, 7
      %v3014 = vsel %vm2049, %v3011, %v3013
      %v3015 = vrot.slane %v2773, 7
      %v3016 = vsel %vm2049, %v3013, %v3015
      %v3017 = vrot.slane %v2774, 7
      %v3018 = vsel %vm2049, %v3015, %v3017
      %v3019 = vrot.slane %v2775, 7
      %v3020 = vsel %vm2049, %v3017, %v3019
      %v3021 = vrot.slane %v2776, 7
      %v3022 = vsel %vm2049, %v3019, %v3021
      %v3023 = vrot.slane %v2777, 7
      %v3024 = vsel %vm2049, %v3021, %v3023
      %v3025 = vrot.slane %v2778, 7
      %v3026 = vsel %vm2049, %v3023, %v3025
      %v3027 = vrot.slane %v2779, 7
      %v3028 = vsel %vm2049, %v3025, %v3027
      %v3029 = vrot.slane %v2780, 7
      %v3030 = vsel %vm2049, %v3027, %v3029
      %v3031 = vrot.slane %v2781, 7
      %v3032 = vsel %vm2049, %v3029, %v3031
      %v3033 = vrot.slane %v2782, 7
      %v3034 = vsel %vm2049, %v3031, %v3033
      %v3035 = vrot.slane %v2783, 7
      %v3036 = vsel %vm2049, %v3033, %v3035
      %v3037 = vrot.slane %v2784, 7
      %v3038 = vsel %vm2049, %v3035, %v3037
      %v3039 = vrot.slane %v2785, 7
      %v3040 = vsel %vm2049, %v3037, %v3039
      %v3041 = vrot.slane %v2786, 7
      %v3042 = vsel %vm2049, %v3039, %v3041
      %v3043 = vrot.slane %v2787, 7
      %v3044 = vsel %vm2049, %v3041, %v3043
      %v3045 = vsel %vm2049, %v3043, %v2982
      %v3078 = vsel %vm2049, %v2982, %v2984
      %v3079 = vadd.f32 %v3078, %v805
      %v3080 = vadd.f32 %v2986, %v806
      %v3081 = vadd.f32 %v2988, %v807
      %v3082 = vadd.f32 %v2990, %v808
      %v3083 = vadd.f32 %v2992, %v809
      %v3084 = vadd.f32 %v2994, %v810
      %v3085 = vadd.f32 %v2996, %v811
      %v3086 = vadd.f32 %v2998, %v812
      %v3087 = vadd.f32 %v3000, %v813
      %v3088 = vadd.f32 %v3002, %v814
      %v3089 = vadd.f32 %v3004, %v815
      %v3090 = vadd.f32 %v3006, %v816
      %v3091 = vadd.f32 %v3008, %v817
      %v3092 = vadd.f32 %v3010, %v818
      %v3093 = vadd.f32 %v3012, %v819
      %v3094 = vadd.f32 %v3014, %v820
      %v3095 = vadd.f32 %v3016, %v821
      %v3096 = vadd.f32 %v3018, %v822
      %v3097 = vadd.f32 %v3020, %v823
      %v3098 = vadd.f32 %v3022, %v824
      %v3099 = vadd.f32 %v3024, %v825
      %v3100 = vadd.f32 %v3026, %v826
      %v3101 = vadd.f32 %v3028, %v827
      %v3102 = vadd.f32 %v3030, %v828
      %v3103 = vadd.f32 %v3032, %v829
      %v3104 = vadd.f32 %v3034, %v830
      %v3105 = vadd.f32 %v3036, %v831
      %v3106 = vadd.f32 %v3038, %v832
      %v3107 = vadd.f32 %v3040, %v833
      %v3108 = vadd.f32 %v3042, %v834
      %v3109 = vadd.f32 %v3044, %v835
      %v3110 = vadd.f32 %v3045, %v836
      %v3111 = vmax.f32 %v2950, %v3079
      %v3112 = vmax.f32 %v2951, %v3080
      %v3113 = vmax.f32 %v2952, %v3081
      %v3114 = vmax.f32 %v2953, %v3082
      %v3115 = vmax.f32 %v2954, %v3083
      %v3116 = vmax.f32 %v2955, %v3084
      %v3117 = vmax.f32 %v2956, %v3085
      %v3118 = vmax.f32 %v2957, %v3086
      %v3119 = vmax.f32 %v2958, %v3087
      %v3120 = vmax.f32 %v2959, %v3088
      %v3121 = vmax.f32 %v2960, %v3089
      %v3122 = vmax.f32 %v2961, %v3090
      %v3123 = vmax.f32 %v2962, %v3091
      %v3124 = vmax.f32 %v2963, %v3092
      %v3125 = vmax.f32 %v2964, %v3093
      %v3126 = vmax.f32 %v2965, %v3094
      %v3127 = vmax.f32 %v2966, %v3095
      %v3128 = vmax.f32 %v2967, %v3096
      %v3129 = vmax.f32 %v2968, %v3097
      %v3130 = vmax.f32 %v2969, %v3098
      %v3131 = vmax.f32 %v2970, %v3099
      %v3132 = vmax.f32 %v2971, %v3100
      %v3133 = vmax.f32 %v2972, %v3101
      %v3134 = vmax.f32 %v2973, %v3102
      %v3135 = vmax.f32 %v2974, %v3103
      %v3136 = vmax.f32 %v2975, %v3104
      %v3137 = vmax.f32 %v2976, %v3105
      %v3138 = vmax.f32 %v2977, %v3106
      %v3139 = vmax.f32 %v2978, %v3107
      %v3140 = vmax.f32 %v2979, %v3108
      %v3141 = vmax.f32 %v2980, %v3109
      %v3142 = vmax.f32 %v2981, %v3110
      %v3143 = vrot.slane %v2757, 1
      %v3144 = vrot.slane %v2758, 1
      %v3145 = vsel %vm2209, %v3143, %v3144
      %v3146 = vrot.slane %v2759, 1
      %v3147 = vsel %vm2209, %v3144, %v3146
      %v3148 = vrot.slane %v2760, 1
      %v3149 = vsel %vm2209, %v3146, %v3148
      %v3150 = vrot.slane %v2761, 1
      %v3151 = vsel %vm2209, %v3148, %v3150
      %v3152 = vrot.slane %v2762, 1
      %v3153 = vsel %vm2209, %v3150, %v3152
      %v3154 = vrot.slane %v2763, 1
      %v3155 = vsel %vm2209, %v3152, %v3154
      %v3156 = vrot.slane %v2764, 1
      %v3157 = vsel %vm2209, %v3154, %v3156
      %v3158 = vrot.slane %v2765, 1
      %v3159 = vsel %vm2209, %v3156, %v3158
      %v3160 = vrot.slane %v2766, 1
      %v3161 = vsel %vm2209, %v3158, %v3160
      %v3162 = vrot.slane %v2767, 1
      %v3163 = vsel %vm2209, %v3160, %v3162
      %v3164 = vrot.slane %v2768, 1
      %v3165 = vsel %vm2209, %v3162, %v3164
      %v3166 = vrot.slane %v2769, 1
      %v3167 = vsel %vm2209, %v3164, %v3166
      %v3168 = vrot.slane %v2770, 1
      %v3169 = vsel %vm2209, %v3166, %v3168
      %v3170 = vrot.slane %v2771, 1
      %v3171 = vsel %vm2209, %v3168, %v3170
      %v3172 = vrot.slane %v2772, 1
      %v3173 = vsel %vm2209, %v3170, %v3172
      %v3174 = vrot.slane %v2773, 1
      %v3175 = vsel %vm2209, %v3172, %v3174
      %v3176 = vrot.slane %v2774, 1
      %v3177 = vsel %vm2209, %v3174, %v3176
      %v3178 = vrot.slane %v2775, 1
      %v3179 = vsel %vm2209, %v3176, %v3178
      %v3180 = vrot.slane %v2776, 1
      %v3181 = vsel %vm2209, %v3178, %v3180
      %v3182 = vrot.slane %v2777, 1
      %v3183 = vsel %vm2209, %v3180, %v3182
      %v3184 = vrot.slane %v2778, 1
      %v3185 = vsel %vm2209, %v3182, %v3184
      %v3186 = vrot.slane %v2779, 1
      %v3187 = vsel %vm2209, %v3184, %v3186
      %v3188 = vrot.slane %v2780, 1
      %v3189 = vsel %vm2209, %v3186, %v3188
      %v3190 = vrot.slane %v2781, 1
      %v3191 = vsel %vm2209, %v3188, %v3190
      %v3192 = vrot.slane %v2782, 1
      %v3193 = vsel %vm2209, %v3190, %v3192
      %v3194 = vrot.slane %v2783, 1
      %v3195 = vsel %vm2209, %v3192, %v3194
      %v3196 = vrot.slane %v2784, 1
      %v3197 = vsel %vm2209, %v3194, %v3196
      %v3198 = vrot.slane %v2785, 1
      %v3199 = vsel %vm2209, %v3196, %v3198
      %v3200 = vrot.slane %v2786, 1
      %v3201 = vsel %vm2209, %v3198, %v3200
      %v3202 = vrot.slane %v2787, 1
      %v3203 = vsel %vm2209, %v3200, %v3202
      %v3204 = vrot.slane %v2788, 1
      %v3205 = vsel %vm2209, %v3202, %v3204
      %v3239 = vsel %vm2209, %v3204, %v3143
      %v3240 = vadd.f32 %v3145, %v869
      %v3241 = vadd.f32 %v3147, %v870
      %v3242 = vadd.f32 %v3149, %v871
      %v3243 = vadd.f32 %v3151, %v872
      %v3244 = vadd.f32 %v3153, %v873
      %v3245 = vadd.f32 %v3155, %v874
      %v3246 = vadd.f32 %v3157, %v875
      %v3247 = vadd.f32 %v3159, %v876
      %v3248 = vadd.f32 %v3161, %v877
      %v3249 = vadd.f32 %v3163, %v878
      %v3250 = vadd.f32 %v3165, %v879
      %v3251 = vadd.f32 %v3167, %v880
      %v3252 = vadd.f32 %v3169, %v881
      %v3253 = vadd.f32 %v3171, %v882
      %v3254 = vadd.f32 %v3173, %v883
      %v3255 = vadd.f32 %v3175, %v884
      %v3256 = vadd.f32 %v3177, %v885
      %v3257 = vadd.f32 %v3179, %v886
      %v3258 = vadd.f32 %v3181, %v887
      %v3259 = vadd.f32 %v3183, %v888
      %v3260 = vadd.f32 %v3185, %v889
      %v3261 = vadd.f32 %v3187, %v890
      %v3262 = vadd.f32 %v3189, %v891
      %v3263 = vadd.f32 %v3191, %v892
      %v3264 = vadd.f32 %v3193, %v893
      %v3265 = vadd.f32 %v3195, %v894
      %v3266 = vadd.f32 %v3197, %v895
      %v3267 = vadd.f32 %v3199, %v896
      %v3268 = vadd.f32 %v3201, %v897
      %v3269 = vadd.f32 %v3203, %v898
      %v3270 = vadd.f32 %v3205, %v899
      %v3271 = vadd.f32 %v3239, %v900
      %v3272 = vmax.f32 %v3111, %v3240
      %v3273 = vmax.f32 %v3112, %v3241
      %v3274 = vmax.f32 %v3113, %v3242
      %v3275 = vmax.f32 %v3114, %v3243
      %v3276 = vmax.f32 %v3115, %v3244
      %v3277 = vmax.f32 %v3116, %v3245
      %v3278 = vmax.f32 %v3117, %v3246
      %v3279 = vmax.f32 %v3118, %v3247
      %v3280 = vmax.f32 %v3119, %v3248
      %v3281 = vmax.f32 %v3120, %v3249
      %v3282 = vmax.f32 %v3121, %v3250
      %v3283 = vmax.f32 %v3122, %v3251
      %v3284 = vmax.f32 %v3123, %v3252
      %v3285 = vmax.f32 %v3124, %v3253
      %v3286 = vmax.f32 %v3125, %v3254
      %v3287 = vmax.f32 %v3126, %v3255
      %v3288 = vmax.f32 %v3127, %v3256
      %v3289 = vmax.f32 %v3128, %v3257
      %v3290 = vmax.f32 %v3129, %v3258
      %v3291 = vmax.f32 %v3130, %v3259
      %v3292 = vmax.f32 %v3131, %v3260
      %v3293 = vmax.f32 %v3132, %v3261
      %v3294 = vmax.f32 %v3133, %v3262
      %v3295 = vmax.f32 %v3134, %v3263
      %v3296 = vmax.f32 %v3135, %v3264
      %v3297 = vmax.f32 %v3136, %v3265
      %v3298 = vmax.f32 %v3137, %v3266
      %v3299 = vmax.f32 %v3138, %v3267
      %v3300 = vmax.f32 %v3139, %v3268
      %v3301 = vmax.f32 %v3140, %v3269
      %v3302 = vmax.f32 %v3141, %v3270
      %v3303 = vmax.f32 %v3142, %v3271
      %v3304 = vrot.slane %v2757, 2
      %v3305 = vrot.slane %v2758, 2
      %v3306 = vsel %vm2371, %v3304, %v3305
      %v3307 = vrot.slane %v2759, 2
      %v3308 = vsel %vm2371, %v3305, %v3307
      %v3309 = vrot.slane %v2760, 2
      %v3310 = vsel %vm2371, %v3307, %v3309
      %v3311 = vrot.slane %v2761, 2
      %v3312 = vsel %vm2371, %v3309, %v3311
      %v3313 = vrot.slane %v2762, 2
      %v3314 = vsel %vm2371, %v3311, %v3313
      %v3315 = vrot.slane %v2763, 2
      %v3316 = vsel %vm2371, %v3313, %v3315
      %v3317 = vrot.slane %v2764, 2
      %v3318 = vsel %vm2371, %v3315, %v3317
      %v3319 = vrot.slane %v2765, 2
      %v3320 = vsel %vm2371, %v3317, %v3319
      %v3321 = vrot.slane %v2766, 2
      %v3322 = vsel %vm2371, %v3319, %v3321
      %v3323 = vrot.slane %v2767, 2
      %v3324 = vsel %vm2371, %v3321, %v3323
      %v3325 = vrot.slane %v2768, 2
      %v3326 = vsel %vm2371, %v3323, %v3325
      %v3327 = vrot.slane %v2769, 2
      %v3328 = vsel %vm2371, %v3325, %v3327
      %v3329 = vrot.slane %v2770, 2
      %v3330 = vsel %vm2371, %v3327, %v3329
      %v3331 = vrot.slane %v2771, 2
      %v3332 = vsel %vm2371, %v3329, %v3331
      %v3333 = vrot.slane %v2772, 2
      %v3334 = vsel %vm2371, %v3331, %v3333
      %v3335 = vrot.slane %v2773, 2
      %v3336 = vsel %vm2371, %v3333, %v3335
      %v3337 = vrot.slane %v2774, 2
      %v3338 = vsel %vm2371, %v3335, %v3337
      %v3339 = vrot.slane %v2775, 2
      %v3340 = vsel %vm2371, %v3337, %v3339
      %v3341 = vrot.slane %v2776, 2
      %v3342 = vsel %vm2371, %v3339, %v3341
      %v3343 = vrot.slane %v2777, 2
      %v3344 = vsel %vm2371, %v3341, %v3343
      %v3345 = vrot.slane %v2778, 2
      %v3346 = vsel %vm2371, %v3343, %v3345
      %v3347 = vrot.slane %v2779, 2
      %v3348 = vsel %vm2371, %v3345, %v3347
      %v3349 = vrot.slane %v2780, 2
      %v3350 = vsel %vm2371, %v3347, %v3349
      %v3351 = vrot.slane %v2781, 2
      %v3352 = vsel %vm2371, %v3349, %v3351
      %v3353 = vrot.slane %v2782, 2
      %v3354 = vsel %vm2371, %v3351, %v3353
      %v3355 = vrot.slane %v2783, 2
      %v3356 = vsel %vm2371, %v3353, %v3355
      %v3357 = vrot.slane %v2784, 2
      %v3358 = vsel %vm2371, %v3355, %v3357
      %v3359 = vrot.slane %v2785, 2
      %v3360 = vsel %vm2371, %v3357, %v3359
      %v3361 = vrot.slane %v2786, 2
      %v3362 = vsel %vm2371, %v3359, %v3361
      %v3363 = vrot.slane %v2787, 2
      %v3364 = vsel %vm2371, %v3361, %v3363
      %v3365 = vrot.slane %v2788, 2
      %v3366 = vsel %vm2371, %v3363, %v3365
      %v3400 = vsel %vm2371, %v3365, %v3304
      %v3401 = vadd.f32 %v3306, %v933
      %v3402 = vadd.f32 %v3308, %v934
      %v3403 = vadd.f32 %v3310, %v935
      %v3404 = vadd.f32 %v3312, %v936
      %v3405 = vadd.f32 %v3314, %v937
      %v3406 = vadd.f32 %v3316, %v938
      %v3407 = vadd.f32 %v3318, %v939
      %v3408 = vadd.f32 %v3320, %v940
      %v3409 = vadd.f32 %v3322, %v941
      %v3410 = vadd.f32 %v3324, %v942
      %v3411 = vadd.f32 %v3326, %v943
      %v3412 = vadd.f32 %v3328, %v944
      %v3413 = vadd.f32 %v3330, %v945
      %v3414 = vadd.f32 %v3332, %v946
      %v3415 = vadd.f32 %v3334, %v947
      %v3416 = vadd.f32 %v3336, %v948
      %v3417 = vadd.f32 %v3338, %v949
      %v3418 = vadd.f32 %v3340, %v950
      %v3419 = vadd.f32 %v3342, %v951
      %v3420 = vadd.f32 %v3344, %v952
      %v3421 = vadd.f32 %v3346, %v953
      %v3422 = vadd.f32 %v3348, %v954
      %v3423 = vadd.f32 %v3350, %v955
      %v3424 = vadd.f32 %v3352, %v956
      %v3425 = vadd.f32 %v3354, %v957
      %v3426 = vadd.f32 %v3356, %v958
      %v3427 = vadd.f32 %v3358, %v959
      %v3428 = vadd.f32 %v3360, %v960
      %v3429 = vadd.f32 %v3362, %v961
      %v3430 = vadd.f32 %v3364, %v962
      %v3431 = vadd.f32 %v3366, %v963
      %v3432 = vadd.f32 %v3400, %v964
      %v3433 = vmax.f32 %v3272, %v3401
      %v3434 = vmax.f32 %v3273, %v3402
      %v3435 = vmax.f32 %v3274, %v3403
      %v3436 = vmax.f32 %v3275, %v3404
      %v3437 = vmax.f32 %v3276, %v3405
      %v3438 = vmax.f32 %v3277, %v3406
      %v3439 = vmax.f32 %v3278, %v3407
      %v3440 = vmax.f32 %v3279, %v3408
      %v3441 = vmax.f32 %v3280, %v3409
      %v3442 = vmax.f32 %v3281, %v3410
      %v3443 = vmax.f32 %v3282, %v3411
      %v3444 = vmax.f32 %v3283, %v3412
      %v3445 = vmax.f32 %v3284, %v3413
      %v3446 = vmax.f32 %v3285, %v3414
      %v3447 = vmax.f32 %v3286, %v3415
      %v3448 = vmax.f32 %v3287, %v3416
      %v3449 = vmax.f32 %v3288, %v3417
      %v3450 = vmax.f32 %v3289, %v3418
      %v3451 = vmax.f32 %v3290, %v3419
      %v3452 = vmax.f32 %v3291, %v3420
      %v3453 = vmax.f32 %v3292, %v3421
      %v3454 = vmax.f32 %v3293, %v3422
      %v3455 = vmax.f32 %v3294, %v3423
      %v3456 = vmax.f32 %v3295, %v3424
      %v3457 = vmax.f32 %v3296, %v3425
      %v3458 = vmax.f32 %v3297, %v3426
      %v3459 = vmax.f32 %v3298, %v3427
      %v3460 = vmax.f32 %v3299, %v3428
      %v3461 = vmax.f32 %v3300, %v3429
      %v3462 = vmax.f32 %v3301, %v3430
      %v3463 = vmax.f32 %v3302, %v3431
      %v3464 = vmax.f32 %v3303, %v3432
      %v3465 = vadd.f32 %v3461, %v997
      %v3466 = vadd.f32 %v3462, %v998
      %v3467 = vadd.f32 %v3463, %v999
      %v3468 = vadd.f32 %v3464, %v1000
      %v3469 = vadd.f32 %v3433, %v1001
      %v3470 = vadd.f32 %v3434, %v1002
      %v3471 = vadd.f32 %v3435, %v1003
      %v3472 = vadd.f32 %v3436, %v1004
      %v3473 = vadd.f32 %v3437, %v1005
      %v3474 = vadd.f32 %v3438, %v1006
      %v3475 = vadd.f32 %v3439, %v1007
      %v3476 = vadd.f32 %v3440, %v1008
      %v3477 = vadd.f32 %v3441, %v1009
      %v3478 = vadd.f32 %v3442, %v1010
      %v3479 = vadd.f32 %v3443, %v1011
      %v3480 = vadd.f32 %v3444, %v1012
      %v3481 = vadd.f32 %v3445, %v1013
      %v3482 = vadd.f32 %v3446, %v1014
      %v3483 = vadd.f32 %v3447, %v1015
      %v3484 = vadd.f32 %v3448, %v1016
      %v3485 = vadd.f32 %v3449, %v1017
      %v3486 = vadd.f32 %v3450, %v1018
      %v3487 = vadd.f32 %v3451, %v1019
      %v3488 = vadd.f32 %v3452, %v1020
      %v3489 = vadd.f32 %v3453, %v1021
      %v3490 = vadd.f32 %v3454, %v1022
      %v3491 = vadd.f32 %v3455, %v1023
      %v3492 = vadd.f32 %v3456, %v1024
      %v3493 = vadd.f32 %v3457, %v1025
      %v3494 = vadd.f32 %v3458, %v1026
      %v3495 = vadd.f32 %v3459, %v1027
      %v3496 = vadd.f32 %v3460, %v1028
      %v3497 = vmax.f32 %v3433, %v3465
      %v3498 = vmax.f32 %v3434, %v3466
      %v3499 = vmax.f32 %v3435, %v3467
      %v3500 = vmax.f32 %v3436, %v3468
      %v3501 = vmax.f32 %v3437, %v3469
      %v3502 = vmax.f32 %v3438, %v3470
      %v3503 = vmax.f32 %v3439, %v3471
      %v3504 = vmax.f32 %v3440, %v3472
      %v3505 = vmax.f32 %v3441, %v3473
      %v3506 = vmax.f32 %v3442, %v3474
      %v3507 = vmax.f32 %v3443, %v3475
      %v3508 = vmax.f32 %v3444, %v3476
      %v3509 = vmax.f32 %v3445, %v3477
      %v3510 = vmax.f32 %v3446, %v3478
      %v3511 = vmax.f32 %v3447, %v3479
      %v3512 = vmax.f32 %v3448, %v3480
      %v3513 = vmax.f32 %v3449, %v3481
      %v3514 = vmax.f32 %v3450, %v3482
      %v3515 = vmax.f32 %v3451, %v3483
      %v3516 = vmax.f32 %v3452, %v3484
      %v3517 = vmax.f32 %v3453, %v3485
      %v3518 = vmax.f32 %v3454, %v3486
      %v3519 = vmax.f32 %v3455, %v3487
      %v3520 = vmax.f32 %v3456, %v3488
      %v3521 = vmax.f32 %v3457, %v3489
      %v3522 = vmax.f32 %v3458, %v3490
      %v3523 = vmax.f32 %v3459, %v3491
      %v3524 = vmax.f32 %v3460, %v3492
      %v3525 = vmax.f32 %v3461, %v3493
      %v3526 = vmax.f32 %v3462, %v3494
      %v3527 = vmax.f32 %v3463, %v3495
      %v3528 = vmax.f32 %v3464, %v3496
      %v3529 = vadd.f32 %v3463, %v1061
      %v3530 = vadd.f32 %v3464, %v1062
      %v3531 = vadd.f32 %v3433, %v1063
      %v3532 = vadd.f32 %v3434, %v1064
      %v3533 = vadd.f32 %v3435, %v1065
      %v3534 = vadd.f32 %v3436, %v1066
      %v3535 = vadd.f32 %v3437, %v1067
      %v3536 = vadd.f32 %v3438, %v1068
      %v3537 = vadd.f32 %v3439, %v1069
      %v3538 = vadd.f32 %v3440, %v1070
      %v3539 = vadd.f32 %v3441, %v1071
      %v3540 = vadd.f32 %v3442, %v1072
      %v3541 = vadd.f32 %v3443, %v1073
      %v3542 = vadd.f32 %v3444, %v1074
      %v3543 = vadd.f32 %v3445, %v1075
      %v3544 = vadd.f32 %v3446, %v1076
      %v3545 = vadd.f32 %v3447, %v1077
      %v3546 = vadd.f32 %v3448, %v1078
      %v3547 = vadd.f32 %v3449, %v1079
      %v3548 = vadd.f32 %v3450, %v1080
      %v3549 = vadd.f32 %v3451, %v1081
      %v3550 = vadd.f32 %v3452, %v1082
      %v3551 = vadd.f32 %v3453, %v1083
      %v3552 = vadd.f32 %v3454, %v1084
      %v3553 = vadd.f32 %v3455, %v1085
      %v3554 = vadd.f32 %v3456, %v1086
      %v3555 = vadd.f32 %v3457, %v1087
      %v3556 = vadd.f32 %v3458, %v1088
      %v3557 = vadd.f32 %v3459, %v1089
      %v3558 = vadd.f32 %v3460, %v1090
      %v3559 = vadd.f32 %v3461, %v1091
      %v3560 = vadd.f32 %v3462, %v1092
      %v3561 = vmax.f32 %v3497, %v3529
      %v3562 = vmax.f32 %v3498, %v3530
      %v3563 = vmax.f32 %v3499, %v3531
      %v3564 = vmax.f32 %v3500, %v3532
      %v3565 = vmax.f32 %v3501, %v3533
      %v3566 = vmax.f32 %v3502, %v3534
      %v3567 = vmax.f32 %v3503, %v3535
      %v3568 = vmax.f32 %v3504, %v3536
      %v3569 = vmax.f32 %v3505, %v3537
      %v3570 = vmax.f32 %v3506, %v3538
      %v3571 = vmax.f32 %v3507, %v3539
      %v3572 = vmax.f32 %v3508, %v3540
      %v3573 = vmax.f32 %v3509, %v3541
      %v3574 = vmax.f32 %v3510, %v3542
      %v3575 = vmax.f32 %v3511, %v3543
      %v3576 = vmax.f32 %v3512, %v3544
      %v3577 = vmax.f32 %v3513, %v3545
      %v3578 = vmax.f32 %v3514, %v3546
      %v3579 = vmax.f32 %v3515, %v3547
      %v3580 = vmax.f32 %v3516, %v3548
      %v3581 = vmax.f32 %v3517, %v3549
      %v3582 = vmax.f32 %v3518, %v3550
      %v3583 = vmax.f32 %v3519, %v3551
      %v3584 = vmax.f32 %v3520, %v3552
      %v3585 = vmax.f32 %v3521, %v3553
      %v3586 = vmax.f32 %v3522, %v3554
      %v3587 = vmax.f32 %v3523, %v3555
      %v3588 = vmax.f32 %v3524, %v3556
      %v3589 = vmax.f32 %v3525, %v3557
      %v3590 = vmax.f32 %v3526, %v3558
      %v3591 = vmax.f32 %v3527, %v3559
      %v3592 = vmax.f32 %v3528, %v3560
      %v3593 = vadd.f32 %v3435, %v1125
      %v3594 = vadd.f32 %v3436, %v1126
      %v3595 = vadd.f32 %v3437, %v1127
      %v3596 = vadd.f32 %v3438, %v1128
      %v3597 = vadd.f32 %v3439, %v1129
      %v3598 = vadd.f32 %v3440, %v1130
      %v3599 = vadd.f32 %v3441, %v1131
      %v3600 = vadd.f32 %v3442, %v1132
      %v3601 = vadd.f32 %v3443, %v1133
      %v3602 = vadd.f32 %v3444, %v1134
      %v3603 = vadd.f32 %v3445, %v1135
      %v3604 = vadd.f32 %v3446, %v1136
      %v3605 = vadd.f32 %v3447, %v1137
      %v3606 = vadd.f32 %v3448, %v1138
      %v3607 = vadd.f32 %v3449, %v1139
      %v3608 = vadd.f32 %v3450, %v1140
      %v3609 = vadd.f32 %v3451, %v1141
      %v3610 = vadd.f32 %v3452, %v1142
      %v3611 = vadd.f32 %v3453, %v1143
      %v3612 = vadd.f32 %v3454, %v1144
      %v3613 = vadd.f32 %v3455, %v1145
      %v3614 = vadd.f32 %v3456, %v1146
      %v3615 = vadd.f32 %v3457, %v1147
      %v3616 = vadd.f32 %v3458, %v1148
      %v3617 = vadd.f32 %v3459, %v1149
      %v3618 = vadd.f32 %v3460, %v1150
      %v3619 = vadd.f32 %v3461, %v1151
      %v3620 = vadd.f32 %v3462, %v1152
      %v3621 = vadd.f32 %v3463, %v1153
      %v3622 = vadd.f32 %v3464, %v1154
      %v3623 = vadd.f32 %v3433, %v1155
      %v3624 = vadd.f32 %v3434, %v1156
      %v3625 = vmax.f32 %v3561, %v3593
      %v3626 = vmax.f32 %v3562, %v3594
      %v3627 = vmax.f32 %v3563, %v3595
      %v3628 = vmax.f32 %v3564, %v3596
      %v3629 = vmax.f32 %v3565, %v3597
      %v3630 = vmax.f32 %v3566, %v3598
      %v3631 = vmax.f32 %v3567, %v3599
      %v3632 = vmax.f32 %v3568, %v3600
      %v3633 = vmax.f32 %v3569, %v3601
      %v3634 = vmax.f32 %v3570, %v3602
      %v3635 = vmax.f32 %v3571, %v3603
      %v3636 = vmax.f32 %v3572, %v3604
      %v3637 = vmax.f32 %v3573, %v3605
      %v3638 = vmax.f32 %v3574, %v3606
      %v3639 = vmax.f32 %v3575, %v3607
      %v3640 = vmax.f32 %v3576, %v3608
      %v3641 = vmax.f32 %v3577, %v3609
      %v3642 = vmax.f32 %v3578, %v3610
      %v3643 = vmax.f32 %v3579, %v3611
      %v3644 = vmax.f32 %v3580, %v3612
      %v3645 = vmax.f32 %v3581, %v3613
      %v3646 = vmax.f32 %v3582, %v3614
      %v3647 = vmax.f32 %v3583, %v3615
      %v3648 = vmax.f32 %v3584, %v3616
      %v3649 = vmax.f32 %v3585, %v3617
      %v3650 = vmax.f32 %v3586, %v3618
      %v3651 = vmax.f32 %v3587, %v3619
      %v3652 = vmax.f32 %v3588, %v3620
      %v3653 = vmax.f32 %v3589, %v3621
      %v3654 = vmax.f32 %v3590, %v3622
      %v3655 = vmax.f32 %v3591, %v3623
      %v3656 = vmax.f32 %v3592, %v3624
      %v3657 = vadd.f32 %v3437, %v1189
      %v3658 = vadd.f32 %v3438, %v1190
      %v3659 = vadd.f32 %v3439, %v1191
      %v3660 = vadd.f32 %v3440, %v1192
      %v3661 = vadd.f32 %v3441, %v1193
      %v3662 = vadd.f32 %v3442, %v1194
      %v3663 = vadd.f32 %v3443, %v1195
      %v3664 = vadd.f32 %v3444, %v1196
      %v3665 = vadd.f32 %v3445, %v1197
      %v3666 = vadd.f32 %v3446, %v1198
      %v3667 = vadd.f32 %v3447, %v1199
      %v3668 = vadd.f32 %v3448, %v1200
      %v3669 = vadd.f32 %v3449, %v1201
      %v3670 = vadd.f32 %v3450, %v1202
      %v3671 = vadd.f32 %v3451, %v1203
      %v3672 = vadd.f32 %v3452, %v1204
      %v3673 = vadd.f32 %v3453, %v1205
      %v3674 = vadd.f32 %v3454, %v1206
      %v3675 = vadd.f32 %v3455, %v1207
      %v3676 = vadd.f32 %v3456, %v1208
      %v3677 = vadd.f32 %v3457, %v1209
      %v3678 = vadd.f32 %v3458, %v1210
      %v3679 = vadd.f32 %v3459, %v1211
      %v3680 = vadd.f32 %v3460, %v1212
      %v3681 = vadd.f32 %v3461, %v1213
      %v3682 = vadd.f32 %v3462, %v1214
      %v3683 = vadd.f32 %v3463, %v1215
      %v3684 = vadd.f32 %v3464, %v1216
      %v3685 = vadd.f32 %v3433, %v1217
      %v3686 = vadd.f32 %v3434, %v1218
      %v3687 = vadd.f32 %v3435, %v1219
      %v3688 = vadd.f32 %v3436, %v1220
      %v3689 = vmax.f32 %v3625, %v3657
      %v3690 = vmax.f32 %v3626, %v3658
      %v3691 = vmax.f32 %v3627, %v3659
      %v3692 = vmax.f32 %v3628, %v3660
      %v3693 = vmax.f32 %v3629, %v3661
      %v3694 = vmax.f32 %v3630, %v3662
      %v3695 = vmax.f32 %v3631, %v3663
      %v3696 = vmax.f32 %v3632, %v3664
      %v3697 = vmax.f32 %v3633, %v3665
      %v3698 = vmax.f32 %v3634, %v3666
      %v3699 = vmax.f32 %v3635, %v3667
      %v3700 = vmax.f32 %v3636, %v3668
      %v3701 = vmax.f32 %v3637, %v3669
      %v3702 = vmax.f32 %v3638, %v3670
      %v3703 = vmax.f32 %v3639, %v3671
      %v3704 = vmax.f32 %v3640, %v3672
      %v3705 = vmax.f32 %v3641, %v3673
      %v3706 = vmax.f32 %v3642, %v3674
      %v3707 = vmax.f32 %v3643, %v3675
      %v3708 = vmax.f32 %v3644, %v3676
      %v3709 = vmax.f32 %v3645, %v3677
      %v3710 = vmax.f32 %v3646, %v3678
      %v3711 = vmax.f32 %v3647, %v3679
      %v3712 = vmax.f32 %v3648, %v3680
      %v3713 = vmax.f32 %v3649, %v3681
      %v3714 = vmax.f32 %v3650, %v3682
      %v3715 = vmax.f32 %v3651, %v3683
      %v3716 = vmax.f32 %v3652, %v3684
      %v3717 = vmax.f32 %v3653, %v3685
      %v3718 = vmax.f32 %v3654, %v3686
      %v3719 = vmax.f32 %v3655, %v3687
      %v3720 = vmax.f32 %v3656, %v3688
      %v3722 = vrot.slane %v3720, 6
      %v3755 = vrot.slane %v3689, 6
      %v3756 = vrot.slane %v3690, 6
      %v3757 = vsel %vm1385, %v3755, %v3756
      %v3758 = vrot.slane %v3691, 6
      %v3759 = vsel %vm1385, %v3756, %v3758
      %v3760 = vrot.slane %v3692, 6
      %v3761 = vsel %vm1385, %v3758, %v3760
      %v3762 = vrot.slane %v3693, 6
      %v3763 = vsel %vm1385, %v3760, %v3762
      %v3764 = vrot.slane %v3694, 6
      %v3765 = vsel %vm1385, %v3762, %v3764
      %v3766 = vrot.slane %v3695, 6
      %v3767 = vsel %vm1385, %v3764, %v3766
      %v3768 = vrot.slane %v3696, 6
      %v3769 = vsel %vm1385, %v3766, %v3768
      %v3770 = vrot.slane %v3697, 6
      %v3771 = vsel %vm1385, %v3768, %v3770
      %v3772 = vrot.slane %v3698, 6
      %v3773 = vsel %vm1385, %v3770, %v3772
      %v3774 = vrot.slane %v3699, 6
      %v3775 = vsel %vm1385, %v3772, %v3774
      %v3776 = vrot.slane %v3700, 6
      %v3777 = vsel %vm1385, %v3774, %v3776
      %v3778 = vrot.slane %v3701, 6
      %v3779 = vsel %vm1385, %v3776, %v3778
      %v3780 = vrot.slane %v3702, 6
      %v3781 = vsel %vm1385, %v3778, %v3780
      %v3782 = vrot.slane %v3703, 6
      %v3783 = vsel %vm1385, %v3780, %v3782
      %v3784 = vrot.slane %v3704, 6
      %v3785 = vsel %vm1385, %v3782, %v3784
      %v3786 = vrot.slane %v3705, 6
      %v3787 = vsel %vm1385, %v3784, %v3786
      %v3788 = vrot.slane %v3706, 6
      %v3789 = vsel %vm1385, %v3786, %v3788
      %v3790 = vrot.slane %v3707, 6
      %v3791 = vsel %vm1385, %v3788, %v3790
      %v3792 = vrot.slane %v3708, 6
      %v3793 = vsel %vm1385, %v3790, %v3792
      %v3794 = vrot.slane %v3709, 6
      %v3795 = vsel %vm1385, %v3792, %v3794
      %v3796 = vrot.slane %v3710, 6
      %v3797 = vsel %vm1385, %v3794, %v3796
      %v3798 = vrot.slane %v3711, 6
      %v3799 = vsel %vm1385, %v3796, %v3798
      %v3800 = vrot.slane %v3712, 6
      %v3801 = vsel %vm1385, %v3798, %v3800
      %v3802 = vrot.slane %v3713, 6
      %v3803 = vsel %vm1385, %v3800, %v3802
      %v3804 = vrot.slane %v3714, 6
      %v3805 = vsel %vm1385, %v3802, %v3804
      %v3806 = vrot.slane %v3715, 6
      %v3807 = vsel %vm1385, %v3804, %v3806
      %v3808 = vrot.slane %v3716, 6
      %v3809 = vsel %vm1385, %v3806, %v3808
      %v3810 = vrot.slane %v3717, 6
      %v3811 = vsel %vm1385, %v3808, %v3810
      %v3812 = vrot.slane %v3718, 6
      %v3813 = vsel %vm1385, %v3810, %v3812
      %v3814 = vrot.slane %v3719, 6
      %v3815 = vsel %vm1385, %v3812, %v3814
      %v3816 = vsel %vm1385, %v3814, %v3722
      %v3849 = vsel %vm1385, %v3722, %v3755
      %v3850 = vadd.f32 %v3849, %v741
      %v3851 = vadd.f32 %v3757, %v742
      %v3852 = vadd.f32 %v3759, %v743
      %v3853 = vadd.f32 %v3761, %v744
      %v3854 = vadd.f32 %v3763, %v745
      %v3855 = vadd.f32 %v3765, %v746
      %v3856 = vadd.f32 %v3767, %v747
      %v3857 = vadd.f32 %v3769, %v748
      %v3858 = vadd.f32 %v3771, %v749
      %v3859 = vadd.f32 %v3773, %v750
      %v3860 = vadd.f32 %v3775, %v751
      %v3861 = vadd.f32 %v3777, %v752
      %v3862 = vadd.f32 %v3779, %v753
      %v3863 = vadd.f32 %v3781, %v754
      %v3864 = vadd.f32 %v3783, %v755
      %v3865 = vadd.f32 %v3785, %v756
      %v3866 = vadd.f32 %v3787, %v757
      %v3867 = vadd.f32 %v3789, %v758
      %v3868 = vadd.f32 %v3791, %v759
      %v3869 = vadd.f32 %v3793, %v760
      %v3870 = vadd.f32 %v3795, %v761
      %v3871 = vadd.f32 %v3797, %v762
      %v3872 = vadd.f32 %v3799, %v763
      %v3873 = vadd.f32 %v3801, %v764
      %v3874 = vadd.f32 %v3803, %v765
      %v3875 = vadd.f32 %v3805, %v766
      %v3876 = vadd.f32 %v3807, %v767
      %v3877 = vadd.f32 %v3809, %v768
      %v3878 = vadd.f32 %v3811, %v769
      %v3879 = vadd.f32 %v3813, %v770
      %v3880 = vadd.f32 %v3815, %v771
      %v3881 = vadd.f32 %v3816, %v772
      %v3882 = vmax.f32 %v3689, %v3850
      %v3883 = vmax.f32 %v3690, %v3851
      %v3884 = vmax.f32 %v3691, %v3852
      %v3885 = vmax.f32 %v3692, %v3853
      %v3886 = vmax.f32 %v3693, %v3854
      %v3887 = vmax.f32 %v3694, %v3855
      %v3888 = vmax.f32 %v3695, %v3856
      %v3889 = vmax.f32 %v3696, %v3857
      %v3890 = vmax.f32 %v3697, %v3858
      %v3891 = vmax.f32 %v3698, %v3859
      %v3892 = vmax.f32 %v3699, %v3860
      %v3893 = vmax.f32 %v3700, %v3861
      %v3894 = vmax.f32 %v3701, %v3862
      %v3895 = vmax.f32 %v3702, %v3863
      %v3896 = vmax.f32 %v3703, %v3864
      %v3897 = vmax.f32 %v3704, %v3865
      %v3898 = vmax.f32 %v3705, %v3866
      %v3899 = vmax.f32 %v3706, %v3867
      %v3900 = vmax.f32 %v3707, %v3868
      %v3901 = vmax.f32 %v3708, %v3869
      %v3902 = vmax.f32 %v3709, %v3870
      %v3903 = vmax.f32 %v3710, %v3871
      %v3904 = vmax.f32 %v3711, %v3872
      %v3905 = vmax.f32 %v3712, %v3873
      %v3906 = vmax.f32 %v3713, %v3874
      %v3907 = vmax.f32 %v3714, %v3875
      %v3908 = vmax.f32 %v3715, %v3876
      %v3909 = vmax.f32 %v3716, %v3877
      %v3910 = vmax.f32 %v3717, %v3878
      %v3911 = vmax.f32 %v3718, %v3879
      %v3912 = vmax.f32 %v3719, %v3880
      %v3913 = vmax.f32 %v3720, %v3881
      %v3914 = vrot.slane %v3720, 7
      %v3916 = vrot.slane %v3689, 7
      %v3917 = vrot.slane %v3690, 7
      %v3918 = vsel %vm2049, %v3916, %v3917
      %v3919 = vrot.slane %v3691, 7
      %v3920 = vsel %vm2049, %v3917, %v3919
      %v3921 = vrot.slane %v3692, 7
      %v3922 = vsel %vm2049, %v3919, %v3921
      %v3923 = vrot.slane %v3693, 7
      %v3924 = vsel %vm2049, %v3921, %v3923
      %v3925 = vrot.slane %v3694, 7
      %v3926 = vsel %vm2049, %v3923, %v3925
      %v3927 = vrot.slane %v3695, 7
      %v3928 = vsel %vm2049, %v3925, %v3927
      %v3929 = vrot.slane %v3696, 7
      %v3930 = vsel %vm2049, %v3927, %v3929
      %v3931 = vrot.slane %v3697, 7
      %v3932 = vsel %vm2049, %v3929, %v3931
      %v3933 = vrot.slane %v3698, 7
      %v3934 = vsel %vm2049, %v3931, %v3933
      %v3935 = vrot.slane %v3699, 7
      %v3936 = vsel %vm2049, %v3933, %v3935
      %v3937 = vrot.slane %v3700, 7
      %v3938 = vsel %vm2049, %v3935, %v3937
      %v3939 = vrot.slane %v3701, 7
      %v3940 = vsel %vm2049, %v3937, %v3939
      %v3941 = vrot.slane %v3702, 7
      %v3942 = vsel %vm2049, %v3939, %v3941
      %v3943 = vrot.slane %v3703, 7
      %v3944 = vsel %vm2049, %v3941, %v3943
      %v3945 = vrot.slane %v3704, 7
      %v3946 = vsel %vm2049, %v3943, %v3945
      %v3947 = vrot.slane %v3705, 7
      %v3948 = vsel %vm2049, %v3945, %v3947
      %v3949 = vrot.slane %v3706, 7
      %v3950 = vsel %vm2049, %v3947, %v3949
      %v3951 = vrot.slane %v3707, 7
      %v3952 = vsel %vm2049, %v3949, %v3951
      %v3953 = vrot.slane %v3708, 7
      %v3954 = vsel %vm2049, %v3951, %v3953
      %v3955 = vrot.slane %v3709, 7
      %v3956 = vsel %vm2049, %v3953, %v3955
      %v3957 = vrot.slane %v3710, 7
      %v3958 = vsel %vm2049, %v3955, %v3957
      %v3959 = vrot.slane %v3711, 7
      %v3960 = vsel %vm2049, %v3957, %v3959
      %v3961 = vrot.slane %v3712, 7
      %v3962 = vsel %vm2049, %v3959, %v3961
      %v3963 = vrot.slane %v3713, 7
      %v3964 = vsel %vm2049, %v3961, %v3963
      %v3965 = vrot.slane %v3714, 7
      %v3966 = vsel %vm2049, %v3963, %v3965
      %v3967 = vrot.slane %v3715, 7
      %v3968 = vsel %vm2049, %v3965, %v3967
      %v3969 = vrot.slane %v3716, 7
      %v3970 = vsel %vm2049, %v3967, %v3969
      %v3971 = vrot.slane %v3717, 7
      %v3972 = vsel %vm2049, %v3969, %v3971
      %v3973 = vrot.slane %v3718, 7
      %v3974 = vsel %vm2049, %v3971, %v3973
      %v3975 = vrot.slane %v3719, 7
      %v3976 = vsel %vm2049, %v3973, %v3975
      %v3977 = vsel %vm2049, %v3975, %v3914
      %v4010 = vsel %vm2049, %v3914, %v3916
      %v4011 = vadd.f32 %v4010, %v805
      %v4012 = vadd.f32 %v3918, %v806
      %v4013 = vadd.f32 %v3920, %v807
      %v4014 = vadd.f32 %v3922, %v808
      %v4015 = vadd.f32 %v3924, %v809
      %v4016 = vadd.f32 %v3926, %v810
      %v4017 = vadd.f32 %v3928, %v811
      %v4018 = vadd.f32 %v3930, %v812
      %v4019 = vadd.f32 %v3932, %v813
      %v4020 = vadd.f32 %v3934, %v814
      %v4021 = vadd.f32 %v3936, %v815
      %v4022 = vadd.f32 %v3938, %v816
      %v4023 = vadd.f32 %v3940, %v817
      %v4024 = vadd.f32 %v3942, %v818
      %v4025 = vadd.f32 %v3944, %v819
      %v4026 = vadd.f32 %v3946, %v820
      %v4027 = vadd.f32 %v3948, %v821
      %v4028 = vadd.f32 %v3950, %v822
      %v4029 = vadd.f32 %v3952, %v823
      %v4030 = vadd.f32 %v3954, %v824
      %v4031 = vadd.f32 %v3956, %v825
      %v4032 = vadd.f32 %v3958, %v826
      %v4033 = vadd.f32 %v3960, %v827
      %v4034 = vadd.f32 %v3962, %v828
      %v4035 = vadd.f32 %v3964, %v829
      %v4036 = vadd.f32 %v3966, %v830
      %v4037 = vadd.f32 %v3968, %v831
      %v4038 = vadd.f32 %v3970, %v832
      %v4039 = vadd.f32 %v3972, %v833
      %v4040 = vadd.f32 %v3974, %v834
      %v4041 = vadd.f32 %v3976, %v835
      %v4042 = vadd.f32 %v3977, %v836
      %v4043 = vmax.f32 %v3882, %v4011
      %v4044 = vmax.f32 %v3883, %v4012
      %v4045 = vmax.f32 %v3884, %v4013
      %v4046 = vmax.f32 %v3885, %v4014
      %v4047 = vmax.f32 %v3886, %v4015
      %v4048 = vmax.f32 %v3887, %v4016
      %v4049 = vmax.f32 %v3888, %v4017
      %v4050 = vmax.f32 %v3889, %v4018
      %v4051 = vmax.f32 %v3890, %v4019
      %v4052 = vmax.f32 %v3891, %v4020
      %v4053 = vmax.f32 %v3892, %v4021
      %v4054 = vmax.f32 %v3893, %v4022
      %v4055 = vmax.f32 %v3894, %v4023
      %v4056 = vmax.f32 %v3895, %v4024
      %v4057 = vmax.f32 %v3896, %v4025
      %v4058 = vmax.f32 %v3897, %v4026
      %v4059 = vmax.f32 %v3898, %v4027
      %v4060 = vmax.f32 %v3899, %v4028
      %v4061 = vmax.f32 %v3900, %v4029
      %v4062 = vmax.f32 %v3901, %v4030
      %v4063 = vmax.f32 %v3902, %v4031
      %v4064 = vmax.f32 %v3903, %v4032
      %v4065 = vmax.f32 %v3904, %v4033
      %v4066 = vmax.f32 %v3905, %v4034
      %v4067 = vmax.f32 %v3906, %v4035
      %v4068 = vmax.f32 %v3907, %v4036
      %v4069 = vmax.f32 %v3908, %v4037
      %v4070 = vmax.f32 %v3909, %v4038
      %v4071 = vmax.f32 %v3910, %v4039
      %v4072 = vmax.f32 %v3911, %v4040
      %v4073 = vmax.f32 %v3912, %v4041
      %v4074 = vmax.f32 %v3913, %v4042
      %v4075 = vrot.slane %v3689, 1
      %v4076 = vrot.slane %v3690, 1
      %v4077 = vsel %vm2209, %v4075, %v4076
      %v4078 = vrot.slane %v3691, 1
      %v4079 = vsel %vm2209, %v4076, %v4078
      %v4080 = vrot.slane %v3692, 1
      %v4081 = vsel %vm2209, %v4078, %v4080
      %v4082 = vrot.slane %v3693, 1
      %v4083 = vsel %vm2209, %v4080, %v4082
      %v4084 = vrot.slane %v3694, 1
      %v4085 = vsel %vm2209, %v4082, %v4084
      %v4086 = vrot.slane %v3695, 1
      %v4087 = vsel %vm2209, %v4084, %v4086
      %v4088 = vrot.slane %v3696, 1
      %v4089 = vsel %vm2209, %v4086, %v4088
      %v4090 = vrot.slane %v3697, 1
      %v4091 = vsel %vm2209, %v4088, %v4090
      %v4092 = vrot.slane %v3698, 1
      %v4093 = vsel %vm2209, %v4090, %v4092
      %v4094 = vrot.slane %v3699, 1
      %v4095 = vsel %vm2209, %v4092, %v4094
      %v4096 = vrot.slane %v3700, 1
      %v4097 = vsel %vm2209, %v4094, %v4096
      %v4098 = vrot.slane %v3701, 1
      %v4099 = vsel %vm2209, %v4096, %v4098
      %v4100 = vrot.slane %v3702, 1
      %v4101 = vsel %vm2209, %v4098, %v4100
      %v4102 = vrot.slane %v3703, 1
      %v4103 = vsel %vm2209, %v4100, %v4102
      %v4104 = vrot.slane %v3704, 1
      %v4105 = vsel %vm2209, %v4102, %v4104
      %v4106 = vrot.slane %v3705, 1
      %v4107 = vsel %vm2209, %v4104, %v4106
      %v4108 = vrot.slane %v3706, 1
      %v4109 = vsel %vm2209, %v4106, %v4108
      %v4110 = vrot.slane %v3707, 1
      %v4111 = vsel %vm2209, %v4108, %v4110
      %v4112 = vrot.slane %v3708, 1
      %v4113 = vsel %vm2209, %v4110, %v4112
      %v4114 = vrot.slane %v3709, 1
      %v4115 = vsel %vm2209, %v4112, %v4114
      %v4116 = vrot.slane %v3710, 1
      %v4117 = vsel %vm2209, %v4114, %v4116
      %v4118 = vrot.slane %v3711, 1
      %v4119 = vsel %vm2209, %v4116, %v4118
      %v4120 = vrot.slane %v3712, 1
      %v4121 = vsel %vm2209, %v4118, %v4120
      %v4122 = vrot.slane %v3713, 1
      %v4123 = vsel %vm2209, %v4120, %v4122
      %v4124 = vrot.slane %v3714, 1
      %v4125 = vsel %vm2209, %v4122, %v4124
      %v4126 = vrot.slane %v3715, 1
      %v4127 = vsel %vm2209, %v4124, %v4126
      %v4128 = vrot.slane %v3716, 1
      %v4129 = vsel %vm2209, %v4126, %v4128
      %v4130 = vrot.slane %v3717, 1
      %v4131 = vsel %vm2209, %v4128, %v4130
      %v4132 = vrot.slane %v3718, 1
      %v4133 = vsel %vm2209, %v4130, %v4132
      %v4134 = vrot.slane %v3719, 1
      %v4135 = vsel %vm2209, %v4132, %v4134
      %v4136 = vrot.slane %v3720, 1
      %v4137 = vsel %vm2209, %v4134, %v4136
      %v4171 = vsel %vm2209, %v4136, %v4075
      %v4172 = vadd.f32 %v4077, %v869
      %v4173 = vadd.f32 %v4079, %v870
      %v4174 = vadd.f32 %v4081, %v871
      %v4175 = vadd.f32 %v4083, %v872
      %v4176 = vadd.f32 %v4085, %v873
      %v4177 = vadd.f32 %v4087, %v874
      %v4178 = vadd.f32 %v4089, %v875
      %v4179 = vadd.f32 %v4091, %v876
      %v4180 = vadd.f32 %v4093, %v877
      %v4181 = vadd.f32 %v4095, %v878
      %v4182 = vadd.f32 %v4097, %v879
      %v4183 = vadd.f32 %v4099, %v880
      %v4184 = vadd.f32 %v4101, %v881
      %v4185 = vadd.f32 %v4103, %v882
      %v4186 = vadd.f32 %v4105, %v883
      %v4187 = vadd.f32 %v4107, %v884
      %v4188 = vadd.f32 %v4109, %v885
      %v4189 = vadd.f32 %v4111, %v886
      %v4190 = vadd.f32 %v4113, %v887
      %v4191 = vadd.f32 %v4115, %v888
      %v4192 = vadd.f32 %v4117, %v889
      %v4193 = vadd.f32 %v4119, %v890
      %v4194 = vadd.f32 %v4121, %v891
      %v4195 = vadd.f32 %v4123, %v892
      %v4196 = vadd.f32 %v4125, %v893
      %v4197 = vadd.f32 %v4127, %v894
      %v4198 = vadd.f32 %v4129, %v895
      %v4199 = vadd.f32 %v4131, %v896
      %v4200 = vadd.f32 %v4133, %v897
      %v4201 = vadd.f32 %v4135, %v898
      %v4202 = vadd.f32 %v4137, %v899
      %v4203 = vadd.f32 %v4171, %v900
      %v4204 = vmax.f32 %v4043, %v4172
      %v4205 = vmax.f32 %v4044, %v4173
      %v4206 = vmax.f32 %v4045, %v4174
      %v4207 = vmax.f32 %v4046, %v4175
      %v4208 = vmax.f32 %v4047, %v4176
      %v4209 = vmax.f32 %v4048, %v4177
      %v4210 = vmax.f32 %v4049, %v4178
      %v4211 = vmax.f32 %v4050, %v4179
      %v4212 = vmax.f32 %v4051, %v4180
      %v4213 = vmax.f32 %v4052, %v4181
      %v4214 = vmax.f32 %v4053, %v4182
      %v4215 = vmax.f32 %v4054, %v4183
      %v4216 = vmax.f32 %v4055, %v4184
      %v4217 = vmax.f32 %v4056, %v4185
      %v4218 = vmax.f32 %v4057, %v4186
      %v4219 = vmax.f32 %v4058, %v4187
      %v4220 = vmax.f32 %v4059, %v4188
      %v4221 = vmax.f32 %v4060, %v4189
      %v4222 = vmax.f32 %v4061, %v4190
      %v4223 = vmax.f32 %v4062, %v4191
      %v4224 = vmax.f32 %v4063, %v4192
      %v4225 = vmax.f32 %v4064, %v4193
      %v4226 = vmax.f32 %v4065, %v4194
      %v4227 = vmax.f32 %v4066, %v4195
      %v4228 = vmax.f32 %v4067, %v4196
      %v4229 = vmax.f32 %v4068, %v4197
      %v4230 = vmax.f32 %v4069, %v4198
      %v4231 = vmax.f32 %v4070, %v4199
      %v4232 = vmax.f32 %v4071, %v4200
      %v4233 = vmax.f32 %v4072, %v4201
      %v4234 = vmax.f32 %v4073, %v4202
      %v4235 = vmax.f32 %v4074, %v4203
      %v4236 = vrot.slane %v3689, 2
      %v4237 = vrot.slane %v3690, 2
      %v4238 = vsel %vm2371, %v4236, %v4237
      %v4239 = vrot.slane %v3691, 2
      %v4240 = vsel %vm2371, %v4237, %v4239
      %v4241 = vrot.slane %v3692, 2
      %v4242 = vsel %vm2371, %v4239, %v4241
      %v4243 = vrot.slane %v3693, 2
      %v4244 = vsel %vm2371, %v4241, %v4243
      %v4245 = vrot.slane %v3694, 2
      %v4246 = vsel %vm2371, %v4243, %v4245
      %v4247 = vrot.slane %v3695, 2
      %v4248 = vsel %vm2371, %v4245, %v4247
      %v4249 = vrot.slane %v3696, 2
      %v4250 = vsel %vm2371, %v4247, %v4249
      %v4251 = vrot.slane %v3697, 2
      %v4252 = vsel %vm2371, %v4249, %v4251
      %v4253 = vrot.slane %v3698, 2
      %v4254 = vsel %vm2371, %v4251, %v4253
      %v4255 = vrot.slane %v3699, 2
      %v4256 = vsel %vm2371, %v4253, %v4255
      %v4257 = vrot.slane %v3700, 2
      %v4258 = vsel %vm2371, %v4255, %v4257
      %v4259 = vrot.slane %v3701, 2
      %v4260 = vsel %vm2371, %v4257, %v4259
      %v4261 = vrot.slane %v3702, 2
      %v4262 = vsel %vm2371, %v4259, %v4261
      %v4263 = vrot.slane %v3703, 2
      %v4264 = vsel %vm2371, %v4261, %v4263
      %v4265 = vrot.slane %v3704, 2
      %v4266 = vsel %vm2371, %v4263, %v4265
      %v4267 = vrot.slane %v3705, 2
      %v4268 = vsel %vm2371, %v4265, %v4267
      %v4269 = vrot.slane %v3706, 2
      %v4270 = vsel %vm2371, %v4267, %v4269
      %v4271 = vrot.slane %v3707, 2
      %v4272 = vsel %vm2371, %v4269, %v4271
      %v4273 = vrot.slane %v3708, 2
      %v4274 = vsel %vm2371, %v4271, %v4273
      %v4275 = vrot.slane %v3709, 2
      %v4276 = vsel %vm2371, %v4273, %v4275
      %v4277 = vrot.slane %v3710, 2
      %v4278 = vsel %vm2371, %v4275, %v4277
      %v4279 = vrot.slane %v3711, 2
      %v4280 = vsel %vm2371, %v4277, %v4279
      %v4281 = vrot.slane %v3712, 2
      %v4282 = vsel %vm2371, %v4279, %v4281
      %v4283 = vrot.slane %v3713, 2
      %v4284 = vsel %vm2371, %v4281, %v4283
      %v4285 = vrot.slane %v3714, 2
      %v4286 = vsel %vm2371, %v4283, %v4285
      %v4287 = vrot.slane %v3715, 2
      %v4288 = vsel %vm2371, %v4285, %v4287
      %v4289 = vrot.slane %v3716, 2
      %v4290 = vsel %vm2371, %v4287, %v4289
      %v4291 = vrot.slane %v3717, 2
      %v4292 = vsel %vm2371, %v4289, %v4291
      %v4293 = vrot.slane %v3718, 2
      %v4294 = vsel %vm2371, %v4291, %v4293
      %v4295 = vrot.slane %v3719, 2
      %v4296 = vsel %vm2371, %v4293, %v4295
      %v4297 = vrot.slane %v3720, 2
      %v4298 = vsel %vm2371, %v4295, %v4297
      %v4332 = vsel %vm2371, %v4297, %v4236
      %v4333 = vadd.f32 %v4238, %v933
      %v4334 = vadd.f32 %v4240, %v934
      %v4335 = vadd.f32 %v4242, %v935
      %v4336 = vadd.f32 %v4244, %v936
      %v4337 = vadd.f32 %v4246, %v937
      %v4338 = vadd.f32 %v4248, %v938
      %v4339 = vadd.f32 %v4250, %v939
      %v4340 = vadd.f32 %v4252, %v940
      %v4341 = vadd.f32 %v4254, %v941
      %v4342 = vadd.f32 %v4256, %v942
      %v4343 = vadd.f32 %v4258, %v943
      %v4344 = vadd.f32 %v4260, %v944
      %v4345 = vadd.f32 %v4262, %v945
      %v4346 = vadd.f32 %v4264, %v946
      %v4347 = vadd.f32 %v4266, %v947
      %v4348 = vadd.f32 %v4268, %v948
      %v4349 = vadd.f32 %v4270, %v949
      %v4350 = vadd.f32 %v4272, %v950
      %v4351 = vadd.f32 %v4274, %v951
      %v4352 = vadd.f32 %v4276, %v952
      %v4353 = vadd.f32 %v4278, %v953
      %v4354 = vadd.f32 %v4280, %v954
      %v4355 = vadd.f32 %v4282, %v955
      %v4356 = vadd.f32 %v4284, %v956
      %v4357 = vadd.f32 %v4286, %v957
      %v4358 = vadd.f32 %v4288, %v958
      %v4359 = vadd.f32 %v4290, %v959
      %v4360 = vadd.f32 %v4292, %v960
      %v4361 = vadd.f32 %v4294, %v961
      %v4362 = vadd.f32 %v4296, %v962
      %v4363 = vadd.f32 %v4298, %v963
      %v4364 = vadd.f32 %v4332, %v964
      %v4365 = vmax.f32 %v4204, %v4333
      %v4366 = vmax.f32 %v4205, %v4334
      %v4367 = vmax.f32 %v4206, %v4335
      %v4368 = vmax.f32 %v4207, %v4336
      %v4369 = vmax.f32 %v4208, %v4337
      %v4370 = vmax.f32 %v4209, %v4338
      %v4371 = vmax.f32 %v4210, %v4339
      %v4372 = vmax.f32 %v4211, %v4340
      %v4373 = vmax.f32 %v4212, %v4341
      %v4374 = vmax.f32 %v4213, %v4342
      %v4375 = vmax.f32 %v4214, %v4343
      %v4376 = vmax.f32 %v4215, %v4344
      %v4377 = vmax.f32 %v4216, %v4345
      %v4378 = vmax.f32 %v4217, %v4346
      %v4379 = vmax.f32 %v4218, %v4347
      %v4380 = vmax.f32 %v4219, %v4348
      %v4381 = vmax.f32 %v4220, %v4349
      %v4382 = vmax.f32 %v4221, %v4350
      %v4383 = vmax.f32 %v4222, %v4351
      %v4384 = vmax.f32 %v4223, %v4352
      %v4385 = vmax.f32 %v4224, %v4353
      %v4386 = vmax.f32 %v4225, %v4354
      %v4387 = vmax.f32 %v4226, %v4355
      %v4388 = vmax.f32 %v4227, %v4356
      %v4389 = vmax.f32 %v4228, %v4357
      %v4390 = vmax.f32 %v4229, %v4358
      %v4391 = vmax.f32 %v4230, %v4359
      %v4392 = vmax.f32 %v4231, %v4360
      %v4393 = vmax.f32 %v4232, %v4361
      %v4394 = vmax.f32 %v4233, %v4362
      %v4395 = vmax.f32 %v4234, %v4363
      %v4396 = vmax.f32 %v4235, %v4364
      %v4397 = vadd.f32 %v4393, %v997
      %v4398 = vadd.f32 %v4394, %v998
      %v4399 = vadd.f32 %v4395, %v999
      %v4400 = vadd.f32 %v4396, %v1000
      %v4401 = vadd.f32 %v4365, %v1001
      %v4402 = vadd.f32 %v4366, %v1002
      %v4403 = vadd.f32 %v4367, %v1003
      %v4404 = vadd.f32 %v4368, %v1004
      %v4405 = vadd.f32 %v4369, %v1005
      %v4406 = vadd.f32 %v4370, %v1006
      %v4407 = vadd.f32 %v4371, %v1007
      %v4408 = vadd.f32 %v4372, %v1008
      %v4409 = vadd.f32 %v4373, %v1009
      %v4410 = vadd.f32 %v4374, %v1010
      %v4411 = vadd.f32 %v4375, %v1011
      %v4412 = vadd.f32 %v4376, %v1012
      %v4413 = vadd.f32 %v4377, %v1013
      %v4414 = vadd.f32 %v4378, %v1014
      %v4415 = vadd.f32 %v4379, %v1015
      %v4416 = vadd.f32 %v4380, %v1016
      %v4417 = vadd.f32 %v4381, %v1017
      %v4418 = vadd.f32 %v4382, %v1018
      %v4419 = vadd.f32 %v4383, %v1019
      %v4420 = vadd.f32 %v4384, %v1020
      %v4421 = vadd.f32 %v4385, %v1021
      %v4422 = vadd.f32 %v4386, %v1022
      %v4423 = vadd.f32 %v4387, %v1023
      %v4424 = vadd.f32 %v4388, %v1024
      %v4425 = vadd.f32 %v4389, %v1025
      %v4426 = vadd.f32 %v4390, %v1026
      %v4427 = vadd.f32 %v4391, %v1027
      %v4428 = vadd.f32 %v4392, %v1028
      %v4429 = vmax.f32 %v4365, %v4397
      %v4430 = vmax.f32 %v4366, %v4398
      %v4431 = vmax.f32 %v4367, %v4399
      %v4432 = vmax.f32 %v4368, %v4400
      %v4433 = vmax.f32 %v4369, %v4401
      %v4434 = vmax.f32 %v4370, %v4402
      %v4435 = vmax.f32 %v4371, %v4403
      %v4436 = vmax.f32 %v4372, %v4404
      %v4437 = vmax.f32 %v4373, %v4405
      %v4438 = vmax.f32 %v4374, %v4406
      %v4439 = vmax.f32 %v4375, %v4407
      %v4440 = vmax.f32 %v4376, %v4408
      %v4441 = vmax.f32 %v4377, %v4409
      %v4442 = vmax.f32 %v4378, %v4410
      %v4443 = vmax.f32 %v4379, %v4411
      %v4444 = vmax.f32 %v4380, %v4412
      %v4445 = vmax.f32 %v4381, %v4413
      %v4446 = vmax.f32 %v4382, %v4414
      %v4447 = vmax.f32 %v4383, %v4415
      %v4448 = vmax.f32 %v4384, %v4416
      %v4449 = vmax.f32 %v4385, %v4417
      %v4450 = vmax.f32 %v4386, %v4418
      %v4451 = vmax.f32 %v4387, %v4419
      %v4452 = vmax.f32 %v4388, %v4420
      %v4453 = vmax.f32 %v4389, %v4421
      %v4454 = vmax.f32 %v4390, %v4422
      %v4455 = vmax.f32 %v4391, %v4423
      %v4456 = vmax.f32 %v4392, %v4424
      %v4457 = vmax.f32 %v4393, %v4425
      %v4458 = vmax.f32 %v4394, %v4426
      %v4459 = vmax.f32 %v4395, %v4427
      %v4460 = vmax.f32 %v4396, %v4428
      %v4461 = vadd.f32 %v4395, %v1061
      %v4462 = vadd.f32 %v4396, %v1062
      %v4463 = vadd.f32 %v4365, %v1063
      %v4464 = vadd.f32 %v4366, %v1064
      %v4465 = vadd.f32 %v4367, %v1065
      %v4466 = vadd.f32 %v4368, %v1066
      %v4467 = vadd.f32 %v4369, %v1067
      %v4468 = vadd.f32 %v4370, %v1068
      %v4469 = vadd.f32 %v4371, %v1069
      %v4470 = vadd.f32 %v4372, %v1070
      %v4471 = vadd.f32 %v4373, %v1071
      %v4472 = vadd.f32 %v4374, %v1072
      %v4473 = vadd.f32 %v4375, %v1073
      %v4474 = vadd.f32 %v4376, %v1074
      %v4475 = vadd.f32 %v4377, %v1075
      %v4476 = vadd.f32 %v4378, %v1076
      %v4477 = vadd.f32 %v4379, %v1077
      %v4478 = vadd.f32 %v4380, %v1078
      %v4479 = vadd.f32 %v4381, %v1079
      %v4480 = vadd.f32 %v4382, %v1080
      %v4481 = vadd.f32 %v4383, %v1081
      %v4482 = vadd.f32 %v4384, %v1082
      %v4483 = vadd.f32 %v4385, %v1083
      %v4484 = vadd.f32 %v4386, %v1084
      %v4485 = vadd.f32 %v4387, %v1085
      %v4486 = vadd.f32 %v4388, %v1086
      %v4487 = vadd.f32 %v4389, %v1087
      %v4488 = vadd.f32 %v4390, %v1088
      %v4489 = vadd.f32 %v4391, %v1089
      %v4490 = vadd.f32 %v4392, %v1090
      %v4491 = vadd.f32 %v4393, %v1091
      %v4492 = vadd.f32 %v4394, %v1092
      %v4493 = vmax.f32 %v4429, %v4461
      %v4494 = vmax.f32 %v4430, %v4462
      %v4495 = vmax.f32 %v4431, %v4463
      %v4496 = vmax.f32 %v4432, %v4464
      %v4497 = vmax.f32 %v4433, %v4465
      %v4498 = vmax.f32 %v4434, %v4466
      %v4499 = vmax.f32 %v4435, %v4467
      %v4500 = vmax.f32 %v4436, %v4468
      %v4501 = vmax.f32 %v4437, %v4469
      %v4502 = vmax.f32 %v4438, %v4470
      %v4503 = vmax.f32 %v4439, %v4471
      %v4504 = vmax.f32 %v4440, %v4472
      %v4505 = vmax.f32 %v4441, %v4473
      %v4506 = vmax.f32 %v4442, %v4474
      %v4507 = vmax.f32 %v4443, %v4475
      %v4508 = vmax.f32 %v4444, %v4476
      %v4509 = vmax.f32 %v4445, %v4477
      %v4510 = vmax.f32 %v4446, %v4478
      %v4511 = vmax.f32 %v4447, %v4479
      %v4512 = vmax.f32 %v4448, %v4480
      %v4513 = vmax.f32 %v4449, %v4481
      %v4514 = vmax.f32 %v4450, %v4482
      %v4515 = vmax.f32 %v4451, %v4483
      %v4516 = vmax.f32 %v4452, %v4484
      %v4517 = vmax.f32 %v4453, %v4485
      %v4518 = vmax.f32 %v4454, %v4486
      %v4519 = vmax.f32 %v4455, %v4487
      %v4520 = vmax.f32 %v4456, %v4488
      %v4521 = vmax.f32 %v4457, %v4489
      %v4522 = vmax.f32 %v4458, %v4490
      %v4523 = vmax.f32 %v4459, %v4491
      %v4524 = vmax.f32 %v4460, %v4492
      %v4525 = vadd.f32 %v4367, %v1125
      %v4526 = vadd.f32 %v4368, %v1126
      %v4527 = vadd.f32 %v4369, %v1127
      %v4528 = vadd.f32 %v4370, %v1128
      %v4529 = vadd.f32 %v4371, %v1129
      %v4530 = vadd.f32 %v4372, %v1130
      %v4531 = vadd.f32 %v4373, %v1131
      %v4532 = vadd.f32 %v4374, %v1132
      %v4533 = vadd.f32 %v4375, %v1133
      %v4534 = vadd.f32 %v4376, %v1134
      %v4535 = vadd.f32 %v4377, %v1135
      %v4536 = vadd.f32 %v4378, %v1136
      %v4537 = vadd.f32 %v4379, %v1137
      %v4538 = vadd.f32 %v4380, %v1138
      %v4539 = vadd.f32 %v4381, %v1139
      %v4540 = vadd.f32 %v4382, %v1140
      %v4541 = vadd.f32 %v4383, %v1141
      %v4542 = vadd.f32 %v4384, %v1142
      %v4543 = vadd.f32 %v4385, %v1143
      %v4544 = vadd.f32 %v4386, %v1144
      %v4545 = vadd.f32 %v4387, %v1145
      %v4546 = vadd.f32 %v4388, %v1146
      %v4547 = vadd.f32 %v4389, %v1147
      %v4548 = vadd.f32 %v4390, %v1148
      %v4549 = vadd.f32 %v4391, %v1149
      %v4550 = vadd.f32 %v4392, %v1150
      %v4551 = vadd.f32 %v4393, %v1151
      %v4552 = vadd.f32 %v4394, %v1152
      %v4553 = vadd.f32 %v4395, %v1153
      %v4554 = vadd.f32 %v4396, %v1154
      %v4555 = vadd.f32 %v4365, %v1155
      %v4556 = vadd.f32 %v4366, %v1156
      %v4557 = vmax.f32 %v4493, %v4525
      %v4558 = vmax.f32 %v4494, %v4526
      %v4559 = vmax.f32 %v4495, %v4527
      %v4560 = vmax.f32 %v4496, %v4528
      %v4561 = vmax.f32 %v4497, %v4529
      %v4562 = vmax.f32 %v4498, %v4530
      %v4563 = vmax.f32 %v4499, %v4531
      %v4564 = vmax.f32 %v4500, %v4532
      %v4565 = vmax.f32 %v4501, %v4533
      %v4566 = vmax.f32 %v4502, %v4534
      %v4567 = vmax.f32 %v4503, %v4535
      %v4568 = vmax.f32 %v4504, %v4536
      %v4569 = vmax.f32 %v4505, %v4537
      %v4570 = vmax.f32 %v4506, %v4538
      %v4571 = vmax.f32 %v4507, %v4539
      %v4572 = vmax.f32 %v4508, %v4540
      %v4573 = vmax.f32 %v4509, %v4541
      %v4574 = vmax.f32 %v4510, %v4542
      %v4575 = vmax.f32 %v4511, %v4543
      %v4576 = vmax.f32 %v4512, %v4544
      %v4577 = vmax.f32 %v4513, %v4545
      %v4578 = vmax.f32 %v4514, %v4546
      %v4579 = vmax.f32 %v4515, %v4547
      %v4580 = vmax.f32 %v4516, %v4548
      %v4581 = vmax.f32 %v4517, %v4549
      %v4582 = vmax.f32 %v4518, %v4550
      %v4583 = vmax.f32 %v4519, %v4551
      %v4584 = vmax.f32 %v4520, %v4552
      %v4585 = vmax.f32 %v4521, %v4553
      %v4586 = vmax.f32 %v4522, %v4554
      %v4587 = vmax.f32 %v4523, %v4555
      %v4588 = vmax.f32 %v4524, %v4556
      %v4589 = vadd.f32 %v4369, %v1189
      %v4590 = vadd.f32 %v4370, %v1190
      %v4591 = vadd.f32 %v4371, %v1191
      %v4592 = vadd.f32 %v4372, %v1192
      %v4593 = vadd.f32 %v4373, %v1193
      %v4594 = vadd.f32 %v4374, %v1194
      %v4595 = vadd.f32 %v4375, %v1195
      %v4596 = vadd.f32 %v4376, %v1196
      %v4597 = vadd.f32 %v4377, %v1197
      %v4598 = vadd.f32 %v4378, %v1198
      %v4599 = vadd.f32 %v4379, %v1199
      %v4600 = vadd.f32 %v4380, %v1200
      %v4601 = vadd.f32 %v4381, %v1201
      %v4602 = vadd.f32 %v4382, %v1202
      %v4603 = vadd.f32 %v4383, %v1203
      %v4604 = vadd.f32 %v4384, %v1204
      %v4605 = vadd.f32 %v4385, %v1205
      %v4606 = vadd.f32 %v4386, %v1206
      %v4607 = vadd.f32 %v4387, %v1207
      %v4608 = vadd.f32 %v4388, %v1208
      %v4609 = vadd.f32 %v4389, %v1209
      %v4610 = vadd.f32 %v4390, %v1210
      %v4611 = vadd.f32 %v4391, %v1211
      %v4612 = vadd.f32 %v4392, %v1212
      %v4613 = vadd.f32 %v4393, %v1213
      %v4614 = vadd.f32 %v4394, %v1214
      %v4615 = vadd.f32 %v4395, %v1215
      %v4616 = vadd.f32 %v4396, %v1216
      %v4617 = vadd.f32 %v4365, %v1217
      %v4618 = vadd.f32 %v4366, %v1218
      %v4619 = vadd.f32 %v4367, %v1219
      %v4620 = vadd.f32 %v4368, %v1220
      %v4621 = vmax.f32 %v4557, %v4589
      %v4622 = vmax.f32 %v4558, %v4590
      %v4623 = vmax.f32 %v4559, %v4591
      %v4624 = vmax.f32 %v4560, %v4592
      %v4625 = vmax.f32 %v4561, %v4593
      %v4626 = vmax.f32 %v4562, %v4594
      %v4627 = vmax.f32 %v4563, %v4595
      %v4628 = vmax.f32 %v4564, %v4596
      %v4629 = vmax.f32 %v4565, %v4597
      %v4630 = vmax.f32 %v4566, %v4598
      %v4631 = vmax.f32 %v4567, %v4599
      %v4632 = vmax.f32 %v4568, %v4600
      %v4633 = vmax.f32 %v4569, %v4601
      %v4634 = vmax.f32 %v4570, %v4602
      %v4635 = vmax.f32 %v4571, %v4603
      %v4636 = vmax.f32 %v4572, %v4604
      %v4637 = vmax.f32 %v4573, %v4605
      %v4638 = vmax.f32 %v4574, %v4606
      %v4639 = vmax.f32 %v4575, %v4607
      %v4640 = vmax.f32 %v4576, %v4608
      %v4641 = vmax.f32 %v4577, %v4609
      %v4642 = vmax.f32 %v4578, %v4610
      %v4643 = vmax.f32 %v4579, %v4611
      %v4644 = vmax.f32 %v4580, %v4612
      %v4645 = vmax.f32 %v4581, %v4613
      %v4646 = vmax.f32 %v4582, %v4614
      %v4647 = vmax.f32 %v4583, %v4615
      %v4648 = vmax.f32 %v4584, %v4616
      %v4649 = vmax.f32 %v4585, %v4617
      %v4650 = vmax.f32 %v4586, %v4618
      %v4651 = vmax.f32 %v4587, %v4619
      %v4652 = vmax.f32 %v4588, %v4620
      %v4653 = vpack.c.bf16 %v1823, %v1822
      %v4654 = vpack.c.bf16 %v1825, %v1824
      %v4655 = vpack.c.bf16 %v1827, %v1826
      %v4656 = vpack.c.bf16 %v1829, %v1828
      %v4657 = vpack.c.bf16 %v1831, %v1830
      %v4658 = vpack.c.bf16 %v1833, %v1832
      %v4659 = vpack.c.bf16 %v1835, %v1834
      %v4660 = vpack.c.bf16 %v1837, %v1836
      %v4661 = vpack.c.bf16 %v1839, %v1838
      %v4662 = vpack.c.bf16 %v1841, %v1840
      %v4663 = vpack.c.bf16 %v1843, %v1842
      %v4664 = vpack.c.bf16 %v1845, %v1844
      %v4665 = vpack.c.bf16 %v1847, %v1846
      %v4666 = vpack.c.bf16 %v1849, %v1848
      %v4667 = vpack.c.bf16 %v1851, %v1850
      %v4668 = vpack.c.bf16 %v1853, %v1852
      %vm4669 = vcmask 15360
      %4670 = vst.msk [vmem:[#allocation2] sm:$0xff] %vm4669, %v4653
      %4671 = vst.msk [vmem:[#allocation2 + $0x8] sm:$0xff] %vm4669, %v4654
      %4672 = vst.msk [vmem:[#allocation2 + $0x10] sm:$0xff] %vm4669, %v4655
      %4673 = vst.msk [vmem:[#allocation2 + $0x18] sm:$0xff] %vm4669, %v4656
      %4674 = vst.msk [vmem:[#allocation2 + $0x20] sm:$0xff] %vm4669, %v4657
      %4675 = vst.msk [vmem:[#allocation2 + $0x28] sm:$0xff] %vm4669, %v4658
      %4676 = vst.msk [vmem:[#allocation2 + $0x30] sm:$0xff] %vm4669, %v4659
      %4677 = vst.msk [vmem:[#allocation2 + $0x38] sm:$0xff] %vm4669, %v4660
      %4678 = vst.msk [vmem:[#allocation2 + $0x40] sm:$0xff] %vm4669, %v4661
      %4679 = vst.msk [vmem:[#allocation2 + $0x48] sm:$0xff] %vm4669, %v4662
      %4680 = vst.msk [vmem:[#allocation2 + $0x50] sm:$0xff] %vm4669, %v4663
      %4681 = vst.msk [vmem:[#allocation2 + $0x58] sm:$0xff] %vm4669, %v4664
      %4682 = vst.msk [vmem:[#allocation2 + $0x60] sm:$0xff] %vm4669, %v4665
      %4683 = vst.msk [vmem:[#allocation2 + $0x68] sm:$0xff] %vm4669, %v4666
      %4684 = vst.msk [vmem:[#allocation2 + $0x70] sm:$0xff] %vm4669, %v4667
      %4685 = vst.msk [vmem:[#allocation2 + $0x78] sm:$0xff] %vm4669, %v4668
      %v4686 = vpack.c.bf16 %v2758, %v2757
      %v4687 = vpack.c.bf16 %v2760, %v2759
      %v4688 = vpack.c.bf16 %v2762, %v2761
      %v4689 = vpack.c.bf16 %v2764, %v2763
      %v4690 = vpack.c.bf16 %v2766, %v2765
      %v4691 = vpack.c.bf16 %v2768, %v2767
      %v4692 = vpack.c.bf16 %v2770, %v2769
      %v4693 = vpack.c.bf16 %v2772, %v2771
      %v4694 = vpack.c.bf16 %v2774, %v2773
      %v4695 = vpack.c.bf16 %v2776, %v2775
      %v4696 = vpack.c.bf16 %v2778, %v2777
      %v4697 = vpack.c.bf16 %v2780, %v2779
      %v4698 = vpack.c.bf16 %v2782, %v2781
      %v4699 = vpack.c.bf16 %v2784, %v2783
      %v4700 = vpack.c.bf16 %v2786, %v2785
      %v4701 = vpack.c.bf16 %v2788, %v2787
      %4718 = vrot.lane.b32.xlu0 %v4686, 2
      %v4719 = vpop.permute.xlu0 %4718
      %4720 = vrot.lane.b32.xlu0 %v4687, 2
      %v4721 = vpop.permute.xlu0 %4720
      %4722 = vrot.lane.b32.xlu0 %v4688, 2
      %v4723 = vpop.permute.xlu0 %4722
      %4724 = vrot.lane.b32.xlu0 %v4689, 2
      %v4725 = vpop.permute.xlu0 %4724
      %4726 = vrot.lane.b32.xlu0 %v4690, 2
      %v4727 = vpop.permute.xlu0 %4726
      %4728 = vrot.lane.b32.xlu0 %v4691, 2
      %v4729 = vpop.permute.xlu0 %4728
      %4730 = vrot.lane.b32.xlu0 %v4692, 2
      %v4731 = vpop.permute.xlu0 %4730
      %4732 = vrot.lane.b32.xlu0 %v4693, 2
      %v4733 = vpop.permute.xlu0 %4732
      %4734 = vrot.lane.b32.xlu0 %v4694, 2
      %v4735 = vpop.permute.xlu0 %4734
      %4736 = vrot.lane.b32.xlu0 %v4695, 2
      %v4737 = vpop.permute.xlu0 %4736
      %4738 = vrot.lane.b32.xlu0 %v4696, 2
      %v4739 = vpop.permute.xlu0 %4738
      %4740 = vrot.lane.b32.xlu0 %v4697, 2
      %v4741 = vpop.permute.xlu0 %4740
      %4742 = vrot.lane.b32.xlu0 %v4698, 2
      %v4743 = vpop.permute.xlu0 %4742
      %4744 = vrot.lane.b32.xlu0 %v4699, 2
      %v4745 = vpop.permute.xlu0 %4744
      %4746 = vrot.lane.b32.xlu0 %v4700, 2
      %v4747 = vpop.permute.xlu0 %4746
      %4748 = vrot.lane.b32.xlu0 %v4701, 2
      %v4749 = vpop.permute.xlu0 %4748
      %vm4766 = vcmask 31760
      %4767 = vst.msk [vmem:[#allocation2] sm:$0xff] %vm4766, %v4719
      %4768 = vst.msk [vmem:[#allocation2 + $0x8] sm:$0xff] %vm4766, %v4721
      %4769 = vst.msk [vmem:[#allocation2 + $0x10] sm:$0xff] %vm4766, %v4723
      %4770 = vst.msk [vmem:[#allocation2 + $0x18] sm:$0xff] %vm4766, %v4725
      %4771 = vst.msk [vmem:[#allocation2 + $0x20] sm:$0xff] %vm4766, %v4727
      %4772 = vst.msk [vmem:[#allocation2 + $0x28] sm:$0xff] %vm4766, %v4729
      %4773 = vst.msk [vmem:[#allocation2 + $0x30] sm:$0xff] %vm4766, %v4731
      %4774 = vst.msk [vmem:[#allocation2 + $0x38] sm:$0xff] %vm4766, %v4733
      %4775 = vst.msk [vmem:[#allocation2 + $0x40] sm:$0xff] %vm4766, %v4735
      %4776 = vst.msk [vmem:[#allocation2 + $0x48] sm:$0xff] %vm4766, %v4737
      %4777 = vst.msk [vmem:[#allocation2 + $0x50] sm:$0xff] %vm4766, %v4739
      %4778 = vst.msk [vmem:[#allocation2 + $0x58] sm:$0xff] %vm4766, %v4741
      %4779 = vst.msk [vmem:[#allocation2 + $0x60] sm:$0xff] %vm4766, %v4743
      %4780 = vst.msk [vmem:[#allocation2 + $0x68] sm:$0xff] %vm4766, %v4745
      %4781 = vst.msk [vmem:[#allocation2 + $0x70] sm:$0xff] %vm4766, %v4747
      %4782 = vst.msk [vmem:[#allocation2 + $0x78] sm:$0xff] %vm4766, %v4749
      %v4783 = vpack.c.bf16 %v3690, %v3689
      %v4784 = vpack.c.bf16 %v3692, %v3691
      %v4785 = vpack.c.bf16 %v3694, %v3693
      %v4786 = vpack.c.bf16 %v3696, %v3695
      %v4787 = vpack.c.bf16 %v3698, %v3697
      %v4788 = vpack.c.bf16 %v3700, %v3699
      %v4789 = vpack.c.bf16 %v3702, %v3701
      %v4790 = vpack.c.bf16 %v3704, %v3703
      %v4791 = vpack.c.bf16 %v3706, %v3705
      %v4792 = vpack.c.bf16 %v3708, %v3707
      %v4793 = vpack.c.bf16 %v3710, %v3709
      %v4794 = vpack.c.bf16 %v3712, %v3711
      %v4795 = vpack.c.bf16 %v3714, %v3713
      %v4796 = vpack.c.bf16 %v3716, %v3715
      %v4797 = vpack.c.bf16 %v3718, %v3717
      %v4798 = vpack.c.bf16 %v3720, %v3719
      %4815 = vrot.lane.b32.xlu0 %v4783, 4
      %v4816 = vpop.permute.xlu0 %4815
      %4817 = vrot.lane.b32.xlu0 %v4784, 4
      %v4818 = vpop.permute.xlu0 %4817
      %4819 = vrot.lane.b32.xlu0 %v4785, 4
      %v4820 = vpop.permute.xlu0 %4819
      %4821 = vrot.lane.b32.xlu0 %v4786, 4
      %v4822 = vpop.permute.xlu0 %4821
      %4823 = vrot.lane.b32.xlu0 %v4787, 4
      %v4824 = vpop.permute.xlu0 %4823
      %4825 = vrot.lane.b32.xlu0 %v4788, 4
      %v4826 = vpop.permute.xlu0 %4825
      %4827 = vrot.lane.b32.xlu0 %v4789, 4
      %v4828 = vpop.permute.xlu0 %4827
      %4829 = vrot.lane.b32.xlu0 %v4790, 4
      %v4830 = vpop.permute.xlu0 %4829
      %4831 = vrot.lane.b32.xlu0 %v4791, 4
      %v4832 = vpop.permute.xlu0 %4831
      %4833 = vrot.lane.b32.xlu0 %v4792, 4
      %v4834 = vpop.permute.xlu0 %4833
      %4835 = vrot.lane.b32.xlu0 %v4793, 4
      %v4836 = vpop.permute.xlu0 %4835
      %4837 = vrot.lane.b32.xlu0 %v4794, 4
      %v4838 = vpop.permute.xlu0 %4837
      %4839 = vrot.lane.b32.xlu0 %v4795, 4
      %v4840 = vpop.permute.xlu0 %4839
      %4841 = vrot.lane.b32.xlu0 %v4796, 4
      %v4842 = vpop.permute.xlu0 %4841
      %4843 = vrot.lane.b32.xlu0 %v4797, 4
      %v4844 = vpop.permute.xlu0 %4843
      %4845 = vrot.lane.b32.xlu0 %v4798, 4
      %v4846 = vpop.permute.xlu0 %4845
      %vm4863 = vcmask 48160
      %4864 = vst.msk [vmem:[#allocation2] sm:$0xff] %vm4863, %v4816
      %4865 = vst.msk [vmem:[#allocation2 + $0x8] sm:$0xff] %vm4863, %v4818
      %4866 = vst.msk [vmem:[#allocation2 + $0x10] sm:$0xff] %vm4863, %v4820
      %4867 = vst.msk [vmem:[#allocation2 + $0x18] sm:$0xff] %vm4863, %v4822
      %4868 = vst.msk [vmem:[#allocation2 + $0x20] sm:$0xff] %vm4863, %v4824
      %4869 = vst.msk [vmem:[#allocation2 + $0x28] sm:$0xff] %vm4863, %v4826
      %4870 = vst.msk [vmem:[#allocation2 + $0x30] sm:$0xff] %vm4863, %v4828
      %4871 = vst.msk [vmem:[#allocation2 + $0x38] sm:$0xff] %vm4863, %v4830
      %4872 = vst.msk [vmem:[#allocation2 + $0x40] sm:$0xff] %vm4863, %v4832
      %4873 = vst.msk [vmem:[#allocation2 + $0x48] sm:$0xff] %vm4863, %v4834
      %4874 = vst.msk [vmem:[#allocation2 + $0x50] sm:$0xff] %vm4863, %v4836
      %4875 = vst.msk [vmem:[#allocation2 + $0x58] sm:$0xff] %vm4863, %v4838
      %4876 = vst.msk [vmem:[#allocation2 + $0x60] sm:$0xff] %vm4863, %v4840
      %4877 = vst.msk [vmem:[#allocation2 + $0x68] sm:$0xff] %vm4863, %v4842
      %4878 = vst.msk [vmem:[#allocation2 + $0x70] sm:$0xff] %vm4863, %v4844
      %4879 = vst.msk [vmem:[#allocation2 + $0x78] sm:$0xff] %vm4863, %v4846
      %v4880 = vpack.c.bf16 %v4622, %v4621
      %v4881 = vpack.c.bf16 %v4624, %v4623
      %v4882 = vpack.c.bf16 %v4626, %v4625
      %v4883 = vpack.c.bf16 %v4628, %v4627
      %v4884 = vpack.c.bf16 %v4630, %v4629
      %v4885 = vpack.c.bf16 %v4632, %v4631
      %v4886 = vpack.c.bf16 %v4634, %v4633
      %v4887 = vpack.c.bf16 %v4636, %v4635
      %v4888 = vpack.c.bf16 %v4638, %v4637
      %v4889 = vpack.c.bf16 %v4640, %v4639
      %v4890 = vpack.c.bf16 %v4642, %v4641
      %v4891 = vpack.c.bf16 %v4644, %v4643
      %v4892 = vpack.c.bf16 %v4646, %v4645
      %v4893 = vpack.c.bf16 %v4648, %v4647
      %v4894 = vpack.c.bf16 %v4650, %v4649
      %v4895 = vpack.c.bf16 %v4652, %v4651
      %4912 = vrot.lane.b32.xlu0 %v4880, 6
      %v4913 = vpop.permute.xlu0 %4912
      %4914 = vrot.lane.b32.xlu0 %v4881, 6
      %v4915 = vpop.permute.xlu0 %4914
      %4916 = vrot.lane.b32.xlu0 %v4882, 6
      %v4917 = vpop.permute.xlu0 %4916
      %4918 = vrot.lane.b32.xlu0 %v4883, 6
      %v4919 = vpop.permute.xlu0 %4918
      %4920 = vrot.lane.b32.xlu0 %v4884, 6
      %v4921 = vpop.permute.xlu0 %4920
      %4922 = vrot.lane.b32.xlu0 %v4885, 6
      %v4923 = vpop.permute.xlu0 %4922
      %4924 = vrot.lane.b32.xlu0 %v4886, 6
      %v4925 = vpop.permute.xlu0 %4924
      %4926 = vrot.lane.b32.xlu0 %v4887, 6
      %v4927 = vpop.permute.xlu0 %4926
      %4928 = vrot.lane.b32.xlu0 %v4888, 6
      %v4929 = vpop.permute.xlu0 %4928
      %4930 = vrot.lane.b32.xlu0 %v4889, 6
      %v4931 = vpop.permute.xlu0 %4930
      %4932 = vrot.lane.b32.xlu0 %v4890, 6
      %v4933 = vpop.permute.xlu0 %4932
      %4934 = vrot.lane.b32.xlu0 %v4891, 6
      %v4935 = vpop.permute.xlu0 %4934
      %4936 = vrot.lane.b32.xlu0 %v4892, 6
      %v4937 = vpop.permute.xlu0 %4936
      %4938 = vrot.lane.b32.xlu0 %v4893, 6
      %v4939 = vpop.permute.xlu0 %4938
      %4940 = vrot.lane.b32.xlu0 %v4894, 6
      %v4941 = vpop.permute.xlu0 %4940
      %4942 = vrot.lane.b32.xlu0 %v4895, 6
      %v4943 = vpop.permute.xlu0 %4942
      %vm4960 = vcmask 64560
      %4961 = vst.msk [vmem:[#allocation2] sm:$0xff] %vm4960, %v4913
      %4962 = vst.msk [vmem:[#allocation2 + $0x8] sm:$0xff] %vm4960, %v4915
      %4963 = vst.msk [vmem:[#allocation2 + $0x10] sm:$0xff] %vm4960, %v4917
      %4964 = vst.msk [vmem:[#allocation2 + $0x18] sm:$0xff] %vm4960, %v4919
      %4965 = vst.msk [vmem:[#allocation2 + $0x20] sm:$0xff] %vm4960, %v4921
      %4966 = vst.msk [vmem:[#allocation2 + $0x28] sm:$0xff] %vm4960, %v4923
      %4967 = vst.msk [vmem:[#allocation2 + $0x30] sm:$0xff] %vm4960, %v4925
      %4968 = vst.msk [vmem:[#allocation2 + $0x38] sm:$0xff] %vm4960, %v4927
      %4969 = vst.msk [vmem:[#allocation2 + $0x40] sm:$0xff] %vm4960, %v4929
      %4970 = vst.msk [vmem:[#allocation2 + $0x48] sm:$0xff] %vm4960, %v4931
      %4971 = vst.msk [vmem:[#allocation2 + $0x50] sm:$0xff] %vm4960, %v4933
      %4972 = vst.msk [vmem:[#allocation2 + $0x58] sm:$0xff] %vm4960, %v4935
      %4973 = vst.msk [vmem:[#allocation2 + $0x60] sm:$0xff] %vm4960, %v4937
      %4974 = vst.msk [vmem:[#allocation2 + $0x68] sm:$0xff] %vm4960, %v4939
      %4975 = vst.msk [vmem:[#allocation2 + $0x70] sm:$0xff] %vm4960, %v4941
      %4976 = vst.msk [vmem:[#allocation2 + $0x78] sm:$0xff] %vm4960, %v4943
      %v4977 = vld [vmem:[#allocation2] sm:$0xff]
      %v4978 = vld [vmem:[#allocation2 + $0x8] sm:$0xff]
      %v4979 = vld [vmem:[#allocation2 + $0x10] sm:$0xff]
      %v4980 = vld [vmem:[#allocation2 + $0x18] sm:$0xff]
      %v4981 = vld [vmem:[#allocation2 + $0x20] sm:$0xff]
      %v4982 = vld [vmem:[#allocation2 + $0x28] sm:$0xff]
      %v4983 = vld [vmem:[#allocation2 + $0x30] sm:$0xff]
      %v4984 = vld [vmem:[#allocation2 + $0x38] sm:$0xff]
      %v4985 = vld [vmem:[#allocation2 + $0x40] sm:$0xff]
      %v4986 = vld [vmem:[#allocation2 + $0x48] sm:$0xff]
      %v4987 = vld [vmem:[#allocation2 + $0x50] sm:$0xff]
      %v4988 = vld [vmem:[#allocation2 + $0x58] sm:$0xff]
      %v4989 = vld [vmem:[#allocation2 + $0x60] sm:$0xff]
      %v4990 = vld [vmem:[#allocation2 + $0x68] sm:$0xff]
      %v4991 = vld [vmem:[#allocation2 + $0x70] sm:$0xff]
      %v4992 = vld [vmem:[#allocation2 + $0x78] sm:$0xff]
      %s4993 = smul.addr %s23, 4
      %s4994 = scalar_lea.vmem %s4, %s4993
      %v4995 = vld [vmem:[%s4994] sm:$0xf]
      %vm4996 = vcmask 64512
      %v4998 = vsel %vm4996, %v4977, 0
      %v5001 = vsel %vm4996, %v4978, 0
      %v5004 = vsel %vm4996, %v4979, 0
      %v5007 = vsel %vm4996, %v4980, 0
      %v5010 = vsel %vm4996, %v4981, 0
      %v5013 = vsel %vm4996, %v4982, 0
      %v5016 = vsel %vm4996, %v4983, 0
      %v5019 = vsel %vm4996, %v4984, 0
      %v5022 = vsel %vm4996, %v4985, 0
      %v5025 = vsel %vm4996, %v4986, 0
      %v5028 = vsel %vm4996, %v4987, 0
      %v5031 = vsel %vm4996, %v4988, 0
      %v5034 = vsel %vm4996, %v4989, 0
      %v5037 = vsel %vm4996, %v4990, 0
      %v5040 = vsel %vm4996, %v4991, 0
      %v5043 = vsel %vm4996, %v4992, 0
      %vm5045 = vcmask 1043456
      %v5047 = vsel %vm5045, %v4995, 0
      %5049 = vmatprep.subr.bf16.mxu0 0
      %5050 = vmatpush1.bf16.msra.mxu0 %v5047
      %5051 = vmatprep.subr.bf16.mxu0 0
      %5052 = vmatpush1.bf16.msra.mxu0 0
      %5053 = vmatprep.subr.bf16.mxu0 0
      %5054 = vmatpush1.bf16.msra.mxu0 0
      %5055 = vmatprep.subr.bf16.mxu0 0
      %5056 = vmatpush1.bf16.msra.mxu0 0
      %5057 = vmatprep.subr.bf16.mxu0 0
      %5058 = vmatpush1.bf16.msra.mxu0 0
      %5059 = vmatprep.subr.bf16.mxu0 0
      %5060 = vmatpush1.bf16.msra.mxu0 0
      %5061 = vmatprep.subr.bf16.mxu0 0
      %5062 = vmatpush1.bf16.msra.mxu0 0
      %5063 = vmatprep.subr.bf16.mxu0 0
      %5064 = vmatpush1.bf16.msra.mxu0 0
      %5065 = vmatprep.subr.bf16.mxu0 0
      %5066 = vmatpush1.bf16.msra.mxu0 0
      %5067 = vmatprep.subr.bf16.mxu0 0
      %5068 = vmatpush1.bf16.msra.mxu0 0
      %5069 = vmatprep.subr.bf16.mxu0 0
      %5070 = vmatpush1.bf16.msra.mxu0 0
      %5071 = vmatprep.subr.bf16.mxu0 0
      %5072 = vmatpush1.bf16.msra.mxu0 0
      %5073 = vmatprep.subr.bf16.mxu0 0
      %5074 = vmatpush1.bf16.msra.mxu0 0
      %5075 = vmatprep.subr.bf16.mxu0 0
      %5076 = vmatpush1.bf16.msra.mxu0 0
      %5077 = vmatprep.subr.bf16.mxu0 0
      %5078 = vmatpush1.bf16.msra.mxu0 0
      %5079 = vmatprep.subr.bf16.mxu0 0
      %5080 = vmatpush1.bf16.msra.mxu0 0
      %5081 = vmatprep.mubr.bf16.mxu0 0
      %5082 = vmatmul.mubr.bf16.gmra.mrb[0].mxu0 %v4998
      %v5083 = vpop.f32.mrb[0].mxu0
      %v5084 = vadd.f32 0.0, %v5083
      %v5085 = vpop.f32.mrb[0].mxu0
      %v5086 = vpop.f32.mrb[0].mxu0
      %v5087 = vadd.f32 0.0, %v5086
      %v5088 = vpop.f32.mrb[0].mxu0
      %5089 = vmatprep.mubr.bf16.mxu0 0
      %5090 = vmatmul.mubr.bf16.gmra.mrb[0].mxu0 %v5001
      %v5091 = vpop.f32.mrb[0].mxu0
      %v5092 = vadd.f32 0.0, %v5091
      %v5093 = vpop.f32.mrb[0].mxu0
      %v5094 = vpop.f32.mrb[0].mxu0
      %v5095 = vadd.f32 0.0, %v5094
      %v5096 = vpop.f32.mrb[0].mxu0
      %5097 = vmatprep.mubr.bf16.mxu0 0
      %5098 = vmatmul.mubr.bf16.gmra.mrb[0].mxu0 %v5004
      %v5099 = vpop.f32.mrb[0].mxu0
      %v5100 = vadd.f32 0.0, %v5099
      %v5101 = vpop.f32.mrb[0].mxu0
      %v5102 = vpop.f32.mrb[0].mxu0
      %v5103 = vadd.f32 0.0, %v5102
      %v5104 = vpop.f32.mrb[0].mxu0
      %5105 = vmatprep.mubr.bf16.mxu0 0
      %5106 = vmatmul.mubr.bf16.gmra.mrb[0].mxu0 %v5007
      %v5107 = vpop.f32.mrb[0].mxu0
      %v5108 = vadd.f32 0.0, %v5107
      %v5109 = vpop.f32.mrb[0].mxu0
      %v5110 = vpop.f32.mrb[0].mxu0
      %v5111 = vadd.f32 0.0, %v5110
      %v5112 = vpop.f32.mrb[0].mxu0
      %5113 = vmatprep.mubr.bf16.mxu0 0
      %5114 = vmatmul.mubr.bf16.gmra.mrb[0].mxu0 %v5010
      %v5115 = vpop.f32.mrb[0].mxu0
      %v5116 = vadd.f32 0.0, %v5115
      %v5117 = vpop.f32.mrb[0].mxu0
      %v5118 = vpop.f32.mrb[0].mxu0
      %v5119 = vadd.f32 0.0, %v5118
      %v5120 = vpop.f32.mrb[0].mxu0
      %5121 = vmatprep.mubr.bf16.mxu0 0
      %5122 = vmatmul.mubr.bf16.gmra.mrb[0].mxu0 %v5013
      %v5123 = vpop.f32.mrb[0].mxu0
      %v5124 = vadd.f32 0.0, %v5123
      %v5125 = vpop.f32.mrb[0].mxu0
      %v5126 = vpop.f32.mrb[0].mxu0
      %v5127 = vadd.f32 0.0, %v5126
      %v5128 = vpop.f32.mrb[0].mxu0
      %5129 = vmatprep.mubr.bf16.mxu0 0
      %5130 = vmatmul.mubr.bf16.gmra.mrb[0].mxu0 %v5016
      %v5131 = vpop.f32.mrb[0].mxu0
      %v5132 = vadd.f32 0.0, %v5131
      %v5133 = vpop.f32.mrb[0].mxu0
      %v5134 = vpop.f32.mrb[0].mxu0
      %v5135 = vadd.f32 0.0, %v5134
      %v5136 = vpop.f32.mrb[0].mxu0
      %5137 = vmatprep.mubr.bf16.mxu0 0
      %5138 = vmatmul.mubr.bf16.gmra.mrb[0].mxu0 %v5019
      %v5139 = vpop.f32.mrb[0].mxu0
      %v5140 = vadd.f32 0.0, %v5139
      %v5141 = vpop.f32.mrb[0].mxu0
      %v5142 = vpop.f32.mrb[0].mxu0
      %v5143 = vadd.f32 0.0, %v5142
      %v5144 = vpop.f32.mrb[0].mxu0
      %5145 = vmatprep.mubr.bf16.mxu0 0
      %5146 = vmatmul.mubr.bf16.gmra.mrb[0].mxu0 %v5022
      %v5147 = vpop.f32.mrb[0].mxu0
      %v5148 = vadd.f32 0.0, %v5147
      %v5149 = vpop.f32.mrb[0].mxu0
      %v5150 = vpop.f32.mrb[0].mxu0
      %v5151 = vadd.f32 0.0, %v5150
      %v5152 = vpop.f32.mrb[0].mxu0
      %5153 = vmatprep.mubr.bf16.mxu0 0
      %5154 = vmatmul.mubr.bf16.gmra.mrb[0].mxu0 %v5025
      %v5155 = vpop.f32.mrb[0].mxu0
      %v5156 = vadd.f32 0.0, %v5155
      %v5157 = vpop.f32.mrb[0].mxu0
      %v5158 = vpop.f32.mrb[0].mxu0
      %v5159 = vadd.f32 0.0, %v5158
      %v5160 = vpop.f32.mrb[0].mxu0
      %5161 = vmatprep.mubr.bf16.mxu0 0
      %5162 = vmatmul.mubr.bf16.gmra.mrb[0].mxu0 %v5028
      %v5163 = vpop.f32.mrb[0].mxu0
      %v5164 = vadd.f32 0.0, %v5163
      %v5165 = vpop.f32.mrb[0].mxu0
      %v5166 = vpop.f32.mrb[0].mxu0
      %v5167 = vadd.f32 0.0, %v5166
      %v5168 = vpop.f32.mrb[0].mxu0
      %5169 = vmatprep.mubr.bf16.mxu0 0
      %5170 = vmatmul.mubr.bf16.gmra.mrb[0].mxu0 %v5031
      %v5171 = vpop.f32.mrb[0].mxu0
      %v5172 = vadd.f32 0.0, %v5171
      %v5173 = vpop.f32.mrb[0].mxu0
      %v5174 = vpop.f32.mrb[0].mxu0
      %v5175 = vadd.f32 0.0, %v5174
      %v5176 = vpop.f32.mrb[0].mxu0
      %5177 = vmatprep.mubr.bf16.mxu0 0
      %5178 = vmatmul.mubr.bf16.gmra.mrb[0].mxu0 %v5034
      %v5179 = vpop.f32.mrb[0].mxu0
      %v5180 = vadd.f32 0.0, %v5179
      %v5181 = vpop.f32.mrb[0].mxu0
      %v5182 = vpop.f32.mrb[0].mxu0
      %v5183 = vadd.f32 0.0, %v5182
      %v5184 = vpop.f32.mrb[0].mxu0
      %5185 = vmatprep.mubr.bf16.mxu0 0
      %5186 = vmatmul.mubr.bf16.gmra.mrb[0].mxu0 %v5037
      %v5187 = vpop.f32.mrb[0].mxu0
      %v5188 = vadd.f32 0.0, %v5187
      %v5189 = vpop.f32.mrb[0].mxu0
      %v5190 = vpop.f32.mrb[0].mxu0
      %v5191 = vadd.f32 0.0, %v5190
      %v5192 = vpop.f32.mrb[0].mxu0
      %5193 = vmatprep.mubr.bf16.mxu0 0
      %5194 = vmatmul.mubr.bf16.gmra.mrb[0].mxu0 %v5040
      %v5195 = vpop.f32.mrb[0].mxu0
      %v5196 = vadd.f32 0.0, %v5195
      %v5197 = vpop.f32.mrb[0].mxu0
      %v5198 = vpop.f32.mrb[0].mxu0
      %v5199 = vadd.f32 0.0, %v5198
      %v5200 = vpop.f32.mrb[0].mxu0
      %5201 = vmatprep.mubr.bf16.mxu0 0
      %5202 = vmatmul.mubr.bf16.gmra.mrb[0].mxu0 %v5043
      %v5203 = vpop.f32.mrb[0].mxu0
      %v5204 = vadd.f32 0.0, %v5203
      %v5205 = vpop.f32.mrb[0].mxu0
      %v5206 = vpop.f32.mrb[0].mxu0
      %v5207 = vadd.f32 0.0, %v5206
      %v5208 = vpop.f32.mrb[0].mxu0
      %5209 = vdwg.mxu0
      %p5210 = scmp.eq.s32.totalorder %s23, 0
      // Predicated region
      $region49: #{tpu_custom_call.1} parent=47 // pred_check
        %p5211 = pneg %p5210
      $region50: #{tpu_custom_call.1} parent=47 // pred_check_branch
        %5213 = sbr.rel (%p5211) target = $region52
      $region51: #{tpu_custom_call.1} parent=47 // pred_region
        %5214 = vst.msk [vmem:[%s290] sm:$0xff] %vm1336, %v5084
        %5215 = vst.msk [vmem:[%s290 + $0x8] sm:$0xff] %vm1336, %v5087
        %5216 = vst.msk [vmem:[%s290 + $0x10] sm:$0xff] %vm1336, %v5092
        %5217 = vst.msk [vmem:[%s290 + $0x18] sm:$0xff] %vm1336, %v5095
        %5218 = vst.msk [vmem:[%s290 + $0x20] sm:$0xff] %vm1336, %v5100
        %5219 = vst.msk [vmem:[%s290 + $0x28] sm:$0xff] %vm1336, %v5103
        %5220 = vst.msk [vmem:[%s290 + $0x30] sm:$0xff] %vm1336, %v5108
        %5221 = vst.msk [vmem:[%s290 + $0x38] sm:$0xff] %vm1336, %v5111
        %5222 = vst.msk [vmem:[%s290 + $0x40] sm:$0xff] %vm1336, %v5116
        %5223 = vst.msk [vmem:[%s290 + $0x48] sm:$0xff] %vm1336, %v5119
        %5224 = vst.msk [vmem:[%s290 + $0x50] sm:$0xff] %vm1336, %v5124
        %5225 = vst.msk [vmem:[%s290 + $0x58] sm:$0xff] %vm1336, %v5127
        %5226 = vst.msk [vmem:[%s290 + $0x60] sm:$0xff] %vm1336, %v5132
        %5227 = vst.msk [vmem:[%s290 + $0x68] sm:$0xff] %vm1336, %v5135
        %5228 = vst.msk [vmem:[%s290 + $0x70] sm:$0xff] %vm1336, %v5140
        %5229 = vst.msk [vmem:[%s290 + $0x78] sm:$0xff] %vm1336, %v5143
        %5230 = vst.msk [vmem:[%s290 + $0x80] sm:$0xff] %vm1336, %v5148
        %5231 = vst.msk [vmem:[%s290 + $0x88] sm:$0xff] %vm1336, %v5151
        %5232 = vst.msk [vmem:[%s290 + $0x90] sm:$0xff] %vm1336, %v5156
        %5233 = vst.msk [vmem:[%s290 + $0x98] sm:$0xff] %vm1336, %v5159
        %5234 = vst.msk [vmem:[%s290 + $0xa0] sm:$0xff] %vm1336, %v5164
        %5235 = vst.msk [vmem:[%s290 + $0xa8] sm:$0xff] %vm1336, %v5167
        %5236 = vst.msk [vmem:[%s290 + $0xb0] sm:$0xff] %vm1336, %v5172
        %5237 = vst.msk [vmem:[%s290 + $0xb8] sm:$0xff] %vm1336, %v5175
        %5238 = vst.msk [vmem:[%s290 + $0xc0] sm:$0xff] %vm1336, %v5180
        %5239 = vst.msk [vmem:[%s290 + $0xc8] sm:$0xff] %vm1336, %v5183
        %5240 = vst.msk [vmem:[%s290 + $0xd0] sm:$0xff] %vm1336, %v5188
        %5241 = vst.msk [vmem:[%s290 + $0xd8] sm:$0xff] %vm1336, %v5191
        %5242 = vst.msk [vmem:[%s290 + $0xe0] sm:$0xff] %vm1336, %v5196
        %5243 = vst.msk [vmem:[%s290 + $0xe8] sm:$0xff] %vm1336, %v5199
        %5244 = vst.msk [vmem:[%s290 + $0xf0] sm:$0xff] %vm1336, %v5204
        %5245 = vst.msk [vmem:[%s290 + $0xf8] sm:$0xff] %vm1336, %v5207
      $region52: #{tpu_custom_call.1} parent=47 // pred_fallthru
        _
      %p5246 = scmp.gt.s32.totalorder %s23, 0
      // Predicated region
      $region53: #{tpu_custom_call.1} parent=47 // pred_check
        %p5247 = pneg %p5246
      $region54: #{tpu_custom_call.1} parent=47 // pred_check_branch
        %5249 = sbr.rel (%p5247) target = $region56
      $region55: #{tpu_custom_call.1} parent=47 // pred_region
        %v5250 = vld [vmem:[%s290] sm:$0xff]
        %v5251 = vld [vmem:[%s290 + $0x8] sm:$0xff]
        %v5252 = vld [vmem:[%s290 + $0x10] sm:$0xff]
        %v5253 = vld [vmem:[%s290 + $0x18] sm:$0xff]
        %v5254 = vld [vmem:[%s290 + $0x20] sm:$0xff]
        %v5255 = vld [vmem:[%s290 + $0x28] sm:$0xff]
        %v5256 = vld [vmem:[%s290 + $0x30] sm:$0xff]
        %v5257 = vld [vmem:[%s290 + $0x38] sm:$0xff]
        %v5258 = vld [vmem:[%s290 + $0x40] sm:$0xff]
        %v5259 = vld [vmem:[%s290 + $0x48] sm:$0xff]
        %v5260 = vld [vmem:[%s290 + $0x50] sm:$0xff]
        %v5261 = vld [vmem:[%s290 + $0x58] sm:$0xff]
        %v5262 = vld [vmem:[%s290 + $0x60] sm:$0xff]
        %v5263 = vld [vmem:[%s290 + $0x68] sm:$0xff]
        %v5264 = vld [vmem:[%s290 + $0x70] sm:$0xff]
        %v5265 = vld [vmem:[%s290 + $0x78] sm:$0xff]
        %v5266 = vld [vmem:[%s290 + $0x80] sm:$0xff]
        %v5267 = vld [vmem:[%s290 + $0x88] sm:$0xff]
        %v5268 = vld [vmem:[%s290 + $0x90] sm:$0xff]
        %v5269 = vld [vmem:[%s290 + $0x98] sm:$0xff]
        %v5270 = vld [vmem:[%s290 + $0xa0] sm:$0xff]
        %v5271 = vld [vmem:[%s290 + $0xa8] sm:$0xff]
        %v5272 = vld [vmem:[%s290 + $0xb0] sm:$0xff]
        %v5273 = vld [vmem:[%s290 + $0xb8] sm:$0xff]
        %v5274 = vld [vmem:[%s290 + $0xc0] sm:$0xff]
        %v5275 = vld [vmem:[%s290 + $0xc8] sm:$0xff]
        %v5276 = vld [vmem:[%s290 + $0xd0] sm:$0xff]
        %v5277 = vld [vmem:[%s290 + $0xd8] sm:$0xff]
        %v5278 = vld [vmem:[%s290 + $0xe0] sm:$0xff]
        %v5279 = vld [vmem:[%s290 + $0xe8] sm:$0xff]
        %v5280 = vld [vmem:[%s290 + $0xf0] sm:$0xff]
        %v5281 = vld [vmem:[%s290 + $0xf8] sm:$0xff]
        %v5282 = vadd.f32 %v5250, %v5084
        %v5283 = vadd.f32 %v5251, %v5087
        %v5284 = vadd.f32 %v5252, %v5092
        %v5285 = vadd.f32 %v5253, %v5095
        %v5286 = vadd.f32 %v5254, %v5100
        %v5287 = vadd.f32 %v5255, %v5103
        %v5288 = vadd.f32 %v5256, %v5108
        %v5289 = vadd.f32 %v5257, %v5111
        %v5290 = vadd.f32 %v5258, %v5116
        %v5291 = vadd.f32 %v5259, %v5119
        %v5292 = vadd.f32 %v5260, %v5124
        %v5293 = vadd.f32 %v5261, %v5127
        %v5294 = vadd.f32 %v5262, %v5132
        %v5295 = vadd.f32 %v5263, %v5135
        %v5296 = vadd.f32 %v5264, %v5140
        %v5297 = vadd.f32 %v5265, %v5143
        %v5298 = vadd.f32 %v5266, %v5148
        %v5299 = vadd.f32 %v5267, %v5151
        %v5300 = vadd.f32 %v5268, %v5156
        %v5301 = vadd.f32 %v5269, %v5159
        %v5302 = vadd.f32 %v5270, %v5164
        %v5303 = vadd.f32 %v5271, %v5167
        %v5304 = vadd.f32 %v5272, %v5172
        %v5305 = vadd.f32 %v5273, %v5175
        %v5306 = vadd.f32 %v5274, %v5180
        %v5307 = vadd.f32 %v5275, %v5183
        %v5308 = vadd.f32 %v5276, %v5188
        %v5309 = vadd.f32 %v5277, %v5191
        %v5310 = vadd.f32 %v5278, %v5196
        %v5311 = vadd.f32 %v5279, %v5199
        %v5312 = vadd.f32 %v5280, %v5204
        %v5313 = vadd.f32 %v5281, %v5207
        %5314 = vst.msk [vmem:[%s290] sm:$0xff] %vm1336, %v5282
        %5315 = vst.msk [vmem:[%s290 + $0x8] sm:$0xff] %vm1336, %v5283
        %5316 = vst.msk [vmem:[%s290 + $0x10] sm:$0xff] %vm1336, %v5284
        %5317 = vst.msk [vmem:[%s290 + $0x18] sm:$0xff] %vm1336, %v5285
        %5318 = vst.msk [vmem:[%s290 + $0x20] sm:$0xff] %vm1336, %v5286
        %5319 = vst.msk [vmem:[%s290 + $0x28] sm:$0xff] %vm1336, %v5287
        %5320 = vst.msk [vmem:[%s290 + $0x30] sm:$0xff] %vm1336, %v5288
        %5321 = vst.msk [vmem:[%s290 + $0x38] sm:$0xff] %vm1336, %v5289
        %5322 = vst.msk [vmem:[%s290 + $0x40] sm:$0xff] %vm1336, %v5290
        %5323 = vst.msk [vmem:[%s290 + $0x48] sm:$0xff] %vm1336, %v5291
        %5324 = vst.msk [vmem:[%s290 + $0x50] sm:$0xff] %vm1336, %v5292
        %5325 = vst.msk [vmem:[%s290 + $0x58] sm:$0xff] %vm1336, %v5293
        %5326 = vst.msk [vmem:[%s290 + $0x60] sm:$0xff] %vm1336, %v5294
        %5327 = vst.msk [vmem:[%s290 + $0x68] sm:$0xff] %vm1336, %v5295
        %5328 = vst.msk [vmem:[%s290 + $0x70] sm:$0xff] %vm1336, %v5296
        %5329 = vst.msk [vmem:[%s290 + $0x78] sm:$0xff] %vm1336, %v5297
        %5330 = vst.msk [vmem:[%s290 + $0x80] sm:$0xff] %vm1336, %v5298
        %5331 = vst.msk [vmem:[%s290 + $0x88] sm:$0xff] %vm1336, %v5299
        %5332 = vst.msk [vmem:[%s290 + $0x90] sm:$0xff] %vm1336, %v5300
        %5333 = vst.msk [vmem:[%s290 + $0x98] sm:$0xff] %vm1336, %v5301
        %5334 = vst.msk [vmem:[%s290 + $0xa0] sm:$0xff] %vm1336, %v5302
        %5335 = vst.msk [vmem:[%s290 + $0xa8] sm:$0xff] %vm1336, %v5303
        %5336 = vst.msk [vmem:[%s290 + $0xb0] sm:$0xff] %vm1336, %v5304
        %5337 = vst.msk [vmem:[%s290 + $0xb8] sm:$0xff] %vm1336, %v5305
        %5338 = vst.msk [vmem:[%s290 + $0xc0] sm:$0xff] %vm1336, %v5306
        %5339 = vst.msk [vmem:[%s290 + $0xc8] sm:$0xff] %vm1336, %v5307
        %5340 = vst.msk [vmem:[%s290 + $0xd0] sm:$0xff] %vm1336, %v5308
        %5341 = vst.msk [vmem:[%s290 + $0xd8] sm:$0xff] %vm1336, %v5309
        %5342 = vst.msk [vmem:[%s290 + $0xe0] sm:$0xff] %vm1336, %v5310
        %5343 = vst.msk [vmem:[%s290 + $0xe8] sm:$0xff] %vm1336, %v5311
        %5344 = vst.msk [vmem:[%s290 + $0xf0] sm:$0xff] %vm1336, %v5312
        %5345 = vst.msk [vmem:[%s290 + $0xf8] sm:$0xff] %vm1336, %v5313
      $region56: #{tpu_custom_call.1} parent=47 // pred_fallthru
        _
      // Predicated region
      $region57: #{tpu_custom_call.1} parent=47 // pred_check
        %p5346 = pneg %p5210
      $region58: #{tpu_custom_call.1} parent=47 // pred_check_branch
        %5348 = sbr.rel (%p5346) target = $region60
      $region59: #{tpu_custom_call.1} parent=47 // pred_region
        %v5349 = vld [vmem:[%s290] sm:$0xff]
        %v5350 = vld [vmem:[%s290 + $0x8] sm:$0xff]
        %v5351 = vld [vmem:[%s290 + $0x10] sm:$0xff]
        %v5352 = vld [vmem:[%s290 + $0x18] sm:$0xff]
        %v5353 = vld [vmem:[%s290 + $0x20] sm:$0xff]
        %v5354 = vld [vmem:[%s290 + $0x28] sm:$0xff]
        %v5355 = vld [vmem:[%s290 + $0x30] sm:$0xff]
        %v5356 = vld [vmem:[%s290 + $0x38] sm:$0xff]
        %v5357 = vld [vmem:[%s290 + $0x40] sm:$0xff]
        %v5358 = vld [vmem:[%s290 + $0x48] sm:$0xff]
        %v5359 = vld [vmem:[%s290 + $0x50] sm:$0xff]
        %v5360 = vld [vmem:[%s290 + $0x58] sm:$0xff]
        %v5361 = vld [vmem:[%s290 + $0x60] sm:$0xff]
        %v5362 = vld [vmem:[%s290 + $0x68] sm:$0xff]
        %v5363 = vld [vmem:[%s290 + $0x70] sm:$0xff]
        %v5364 = vld [vmem:[%s290 + $0x78] sm:$0xff]
        %v5365 = vld [vmem:[%s290 + $0x80] sm:$0xff]
        %v5366 = vld [vmem:[%s290 + $0x88] sm:$0xff]
        %v5367 = vld [vmem:[%s290 + $0x90] sm:$0xff]
        %v5368 = vld [vmem:[%s290 + $0x98] sm:$0xff]
        %v5369 = vld [vmem:[%s290 + $0xa0] sm:$0xff]
        %v5370 = vld [vmem:[%s290 + $0xa8] sm:$0xff]
        %v5371 = vld [vmem:[%s290 + $0xb0] sm:$0xff]
        %v5372 = vld [vmem:[%s290 + $0xb8] sm:$0xff]
        %v5373 = vld [vmem:[%s290 + $0xc0] sm:$0xff]
        %v5374 = vld [vmem:[%s290 + $0xc8] sm:$0xff]
        %v5375 = vld [vmem:[%s290 + $0xd0] sm:$0xff]
        %v5376 = vld [vmem:[%s290 + $0xd8] sm:$0xff]
        %v5377 = vld [vmem:[%s290 + $0xe0] sm:$0xff]
        %v5378 = vld [vmem:[%s290 + $0xe8] sm:$0xff]
        %v5379 = vld [vmem:[%s290 + $0xf0] sm:$0xff]
        %v5380 = vld [vmem:[%s290 + $0xf8] sm:$0xff]
        %v5381 = vld [vmem:[%s5] sm:$0x1]
        %v5383 = vlaneseq
        %v5384 = vshrl.u32 %v5383, 7
        %v5385 = vsub.s32 0, %v5384
        %v5386 = vrot.slane %v5381, %v5385
        %v5388 = vmul.f32 %v5349, %v5386
        %v5389 = vmul.f32 %v5350, %v5386
        %v5390 = vmul.f32 %v5351, %v5386
        %v5391 = vmul.f32 %v5352, %v5386
        %v5392 = vmul.f32 %v5353, %v5386
        %v5393 = vmul.f32 %v5354, %v5386
        %v5394 = vmul.f32 %v5355, %v5386
        %v5395 = vmul.f32 %v5356, %v5386
        %v5396 = vmul.f32 %v5357, %v5386
        %v5397 = vmul.f32 %v5358, %v5386
        %v5398 = vmul.f32 %v5359, %v5386
        %v5399 = vmul.f32 %v5360, %v5386
        %v5400 = vmul.f32 %v5361, %v5386
        %v5401 = vmul.f32 %v5362, %v5386
        %v5402 = vmul.f32 %v5363, %v5386
        %v5403 = vmul.f32 %v5364, %v5386
        %v5404 = vmul.f32 %v5365, %v5386
        %v5405 = vmul.f32 %v5366, %v5386
        %v5406 = vmul.f32 %v5367, %v5386
        %v5407 = vmul.f32 %v5368, %v5386
        %v5408 = vmul.f32 %v5369, %v5386
        %v5409 = vmul.f32 %v5370, %v5386
        %v5410 = vmul.f32 %v5371, %v5386
        %v5411 = vmul.f32 %v5372, %v5386
        %v5412 = vmul.f32 %v5373, %v5386
        %v5413 = vmul.f32 %v5374, %v5386
        %v5414 = vmul.f32 %v5375, %v5386
        %v5415 = vmul.f32 %v5376, %v5386
        %v5416 = vmul.f32 %v5377, %v5386
        %v5417 = vmul.f32 %v5378, %v5386
        %v5418 = vmul.f32 %v5379, %v5386
        %v5419 = vmul.f32 %v5380, %v5386
        %v5420 = vld [vmem:[%s6] sm:$0x1]
        %v5422 = vlaneseq
        %v5423 = vshrl.u32 %v5422, 7
        %v5424 = vsub.s32 0, %v5423
        %v5425 = vrot.slane %v5420, %v5424
        %v5427 = vadd.f32 %v5388, %v5425
        %v5428 = vadd.f32 %v5389, %v5425
        %v5429 = vadd.f32 %v5390, %v5425
        %v5430 = vadd.f32 %v5391, %v5425
        %v5431 = vadd.f32 %v5392, %v5425
        %v5432 = vadd.f32 %v5393, %v5425
        %v5433 = vadd.f32 %v5394, %v5425
        %v5434 = vadd.f32 %v5395, %v5425
        %v5435 = vadd.f32 %v5396, %v5425
        %v5436 = vadd.f32 %v5397, %v5425
        %v5437 = vadd.f32 %v5398, %v5425
        %v5438 = vadd.f32 %v5399, %v5425
        %v5439 = vadd.f32 %v5400, %v5425
        %v5440 = vadd.f32 %v5401, %v5425
        %v5441 = vadd.f32 %v5402, %v5425
        %v5442 = vadd.f32 %v5403, %v5425
        %v5443 = vadd.f32 %v5404, %v5425
        %v5444 = vadd.f32 %v5405, %v5425
        %v5445 = vadd.f32 %v5406, %v5425
        %v5446 = vadd.f32 %v5407, %v5425
        %v5447 = vadd.f32 %v5408, %v5425
        %v5448 = vadd.f32 %v5409, %v5425
        %v5449 = vadd.f32 %v5410, %v5425
        %v5450 = vadd.f32 %v5411, %v5425
        %v5451 = vadd.f32 %v5412, %v5425
        %v5452 = vadd.f32 %v5413, %v5425
        %v5453 = vadd.f32 %v5414, %v5425
        %v5454 = vadd.f32 %v5415, %v5425
        %v5455 = vadd.f32 %v5416, %v5425
        %v5456 = vadd.f32 %v5417, %v5425
        %v5457 = vadd.f32 %v5418, %v5425
        %v5458 = vadd.f32 %v5419, %v5425
        %v5459 = vxor.u32 %v5427, 2147483648
        %v5460 = vxor.u32 %v5428, 2147483648
        %v5461 = vxor.u32 %v5429, 2147483648
        %v5462 = vxor.u32 %v5430, 2147483648
        %v5463 = vxor.u32 %v5431, 2147483648
        %v5464 = vxor.u32 %v5432, 2147483648
        %v5465 = vxor.u32 %v5433, 2147483648
        %v5466 = vxor.u32 %v5434, 2147483648
        %v5467 = vxor.u32 %v5435, 2147483648
        %v5468 = vxor.u32 %v5436, 2147483648
        %v5469 = vxor.u32 %v5437, 2147483648
        %v5470 = vxor.u32 %v5438, 2147483648
        %v5471 = vxor.u32 %v5439, 2147483648
        %v5472 = vxor.u32 %v5440, 2147483648
        %v5473 = vxor.u32 %v5441, 2147483648
        %v5474 = vxor.u32 %v5442, 2147483648
        %v5475 = vxor.u32 %v5443, 2147483648
        %v5476 = vxor.u32 %v5444, 2147483648
        %v5477 = vxor.u32 %v5445, 2147483648
        %v5478 = vxor.u32 %v5446, 2147483648
        %v5479 = vxor.u32 %v5447, 2147483648
        %v5480 = vxor.u32 %v5448, 2147483648
        %v5481 = vxor.u32 %v5449, 2147483648
        %v5482 = vxor.u32 %v5450, 2147483648
        %v5483 = vxor.u32 %v5451, 2147483648
        %v5484 = vxor.u32 %v5452, 2147483648
        %v5485 = vxor.u32 %v5453, 2147483648
        %v5486 = vxor.u32 %v5454, 2147483648
        %v5487 = vxor.u32 %v5455, 2147483648
        %v5488 = vxor.u32 %v5456, 2147483648
        %v5489 = vxor.u32 %v5457, 2147483648
        %v5490 = vxor.u32 %v5458, 2147483648
        %v5491 = vmul.f32 %v5459, 1.442695
        %v5492 = vpow.pop %v5491
        %v5493 = vmul.f32 %v5460, 1.442695
        %v5494 = vpow.pop %v5493
        %v5495 = vmul.f32 %v5461, 1.442695
        %v5496 = vpow.pop %v5495
        %v5497 = vmul.f32 %v5462, 1.442695
        %v5498 = vpow.pop %v5497
        %v5499 = vmul.f32 %v5463, 1.442695
        %v5500 = vpow.pop %v5499
        %v5501 = vmul.f32 %v5464, 1.442695
        %v5502 = vpow.pop %v5501
        %v5503 = vmul.f32 %v5465, 1.442695
        %v5504 = vpow.pop %v5503
        %v5505 = vmul.f32 %v5466, 1.442695
        %v5506 = vpow.pop %v5505
        %v5507 = vmul.f32 %v5467, 1.442695
        %v5508 = vpow.pop %v5507
        %v5509 = vmul.f32 %v5468, 1.442695
        %v5510 = vpow.pop %v5509
        %v5511 = vmul.f32 %v5469, 1.442695
        %v5512 = vpow.pop %v5511
        %v5513 = vmul.f32 %v5470, 1.442695
        %v5514 = vpow.pop %v5513
        %v5515 = vmul.f32 %v5471, 1.442695
        %v5516 = vpow.pop %v5515
        %v5517 = vmul.f32 %v5472, 1.442695
        %v5518 = vpow.pop %v5517
        %v5519 = vmul.f32 %v5473, 1.442695
        %v5520 = vpow.pop %v5519
        %v5521 = vmul.f32 %v5474, 1.442695
        %v5522 = vpow.pop %v5521
        %v5523 = vmul.f32 %v5475, 1.442695
        %v5524 = vpow.pop %v5523
        %v5525 = vmul.f32 %v5476, 1.442695
        %v5526 = vpow.pop %v5525
        %v5527 = vmul.f32 %v5477, 1.442695
        %v5528 = vpow.pop %v5527
        %v5529 = vmul.f32 %v5478, 1.442695
        %v5530 = vpow.pop %v5529
        %v5531 = vmul.f32 %v5479, 1.442695
        %v5532 = vpow.pop %v5531
        %v5533 = vmul.f32 %v5480, 1.442695
        %v5534 = vpow.pop %v5533
        %v5535 = vmul.f32 %v5481, 1.442695
        %v5536 = vpow.pop %v5535
        %v5537 = vmul.f32 %v5482, 1.442695
        %v5538 = vpow.pop %v5537
        %v5539 = vmul.f32 %v5483, 1.442695
        %v5540 = vpow.pop %v5539
        %v5541 = vmul.f32 %v5484, 1.442695
        %v5542 = vpow.pop %v5541
        %v5543 = vmul.f32 %v5485, 1.442695
        %v5544 = vpow.pop %v5543
        %v5545 = vmul.f32 %v5486, 1.442695
        %v5546 = vpow.pop %v5545
        %v5547 = vmul.f32 %v5487, 1.442695
        %v5548 = vpow.pop %v5547
        %v5549 = vmul.f32 %v5488, 1.442695
        %v5550 = vpow.pop %v5549
        %v5551 = vmul.f32 %v5489, 1.442695
        %v5552 = vpow.pop %v5551
        %v5553 = vmul.f32 %v5490, 1.442695
        %v5554 = vpow.pop %v5553
        %v5555 = vadd.f32 %v5492, 1.0
        %v5556 = vadd.f32 %v5494, 1.0
        %v5557 = vadd.f32 %v5496, 1.0
        %v5558 = vadd.f32 %v5498, 1.0
        %v5559 = vadd.f32 %v5500, 1.0
        %v5560 = vadd.f32 %v5502, 1.0
        %v5561 = vadd.f32 %v5504, 1.0
        %v5562 = vadd.f32 %v5506, 1.0
        %v5563 = vadd.f32 %v5508, 1.0
        %v5564 = vadd.f32 %v5510, 1.0
        %v5565 = vadd.f32 %v5512, 1.0
        %v5566 = vadd.f32 %v5514, 1.0
        %v5567 = vadd.f32 %v5516, 1.0
        %v5568 = vadd.f32 %v5518, 1.0
        %v5569 = vadd.f32 %v5520, 1.0
        %v5570 = vadd.f32 %v5522, 1.0
        %v5571 = vadd.f32 %v5524, 1.0
        %v5572 = vadd.f32 %v5526, 1.0
        %v5573 = vadd.f32 %v5528, 1.0
        %v5574 = vadd.f32 %v5530, 1.0
        %v5575 = vadd.f32 %v5532, 1.0
        %v5576 = vadd.f32 %v5534, 1.0
        %v5577 = vadd.f32 %v5536, 1.0
        %v5578 = vadd.f32 %v5538, 1.0
        %v5579 = vadd.f32 %v5540, 1.0
        %v5580 = vadd.f32 %v5542, 1.0
        %v5581 = vadd.f32 %v5544, 1.0
        %v5582 = vadd.f32 %v5546, 1.0
        %v5583 = vadd.f32 %v5548, 1.0
        %v5584 = vadd.f32 %v5550, 1.0
        %v5585 = vadd.f32 %v5552, 1.0
        %v5586 = vadd.f32 %v5554, 1.0
        %v5587 = vrcp.pop %v5555
        %v5588 = vmul.f32 1.0, %v5587
        %v5589 = vrcp.pop %v5556
        %v5590 = vmul.f32 1.0, %v5589
        %v5591 = vrcp.pop %v5557
        %v5592 = vmul.f32 1.0, %v5591
        %v5593 = vrcp.pop %v5558
        %v5594 = vmul.f32 1.0, %v5593
        %v5595 = vrcp.pop %v5559
        %v5596 = vmul.f32 1.0, %v5595
        %v5597 = vrcp.pop %v5560
        %v5598 = vmul.f32 1.0, %v5597
        %v5599 = vrcp.pop %v5561
        %v5600 = vmul.f32 1.0, %v5599
        %v5601 = vrcp.pop %v5562
        %v5602 = vmul.f32 1.0, %v5601
        %v5603 = vrcp.pop %v5563
        %v5604 = vmul.f32 1.0, %v5603
        %v5605 = vrcp.pop %v5564
        %v5606 = vmul.f32 1.0, %v5605
        %v5607 = vrcp.pop %v5565
        %v5608 = vmul.f32 1.0, %v5607
        %v5609 = vrcp.pop %v5566
        %v5610 = vmul.f32 1.0, %v5609
        %v5611 = vrcp.pop %v5567
        %v5612 = vmul.f32 1.0, %v5611
        %v5613 = vrcp.pop %v5568
        %v5614 = vmul.f32 1.0, %v5613
        %v5615 = vrcp.pop %v5569
        %v5616 = vmul.f32 1.0, %v5615
        %v5617 = vrcp.pop %v5570
        %v5618 = vmul.f32 1.0, %v5617
        %v5619 = vrcp.pop %v5571
        %v5620 = vmul.f32 1.0, %v5619
        %v5621 = vrcp.pop %v5572
        %v5622 = vmul.f32 1.0, %v5621
        %v5623 = vrcp.pop %v5573
        %v5624 = vmul.f32 1.0, %v5623
        %v5625 = vrcp.pop %v5574
        %v5626 = vmul.f32 1.0, %v5625
        %v5627 = vrcp.pop %v5575
        %v5628 = vmul.f32 1.0, %v5627
        %v5629 = vrcp.pop %v5576
        %v5630 = vmul.f32 1.0, %v5629
        %v5631 = vrcp.pop %v5577
        %v5632 = vmul.f32 1.0, %v5631
        %v5633 = vrcp.pop %v5578
        %v5634 = vmul.f32 1.0, %v5633
        %v5635 = vrcp.pop %v5579
        %v5636 = vmul.f32 1.0, %v5635
        %v5637 = vrcp.pop %v5580
        %v5638 = vmul.f32 1.0, %v5637
        %v5639 = vrcp.pop %v5581
        %v5640 = vmul.f32 1.0, %v5639
        %v5641 = vrcp.pop %v5582
        %v5642 = vmul.f32 1.0, %v5641
        %v5643 = vrcp.pop %v5583
        %v5644 = vmul.f32 1.0, %v5643
        %v5645 = vrcp.pop %v5584
        %v5646 = vmul.f32 1.0, %v5645
        %v5647 = vrcp.pop %v5585
        %v5648 = vmul.f32 1.0, %v5647
        %v5649 = vrcp.pop %v5586
        %v5650 = vmul.f32 1.0, %v5649
        %v5651 = vmul.f32 %v5427, %v5588
        %v5652 = vmul.f32 %v5428, %v5590
        %v5653 = vmul.f32 %v5429, %v5592
        %v5654 = vmul.f32 %v5430, %v5594
        %v5655 = vmul.f32 %v5431, %v5596
        %v5656 = vmul.f32 %v5432, %v5598
        %v5657 = vmul.f32 %v5433, %v5600
        %v5658 = vmul.f32 %v5434, %v5602
        %v5659 = vmul.f32 %v5435, %v5604
        %v5660 = vmul.f32 %v5436, %v5606
        %v5661 = vmul.f32 %v5437, %v5608
        %v5662 = vmul.f32 %v5438, %v5610
        %v5663 = vmul.f32 %v5439, %v5612
        %v5664 = vmul.f32 %v5440, %v5614
        %v5665 = vmul.f32 %v5441, %v5616
        %v5666 = vmul.f32 %v5442, %v5618
        %v5667 = vmul.f32 %v5443, %v5620
        %v5668 = vmul.f32 %v5444, %v5622
        %v5669 = vmul.f32 %v5445, %v5624
        %v5670 = vmul.f32 %v5446, %v5626
        %v5671 = vmul.f32 %v5447, %v5628
        %v5672 = vmul.f32 %v5448, %v5630
        %v5673 = vmul.f32 %v5449, %v5632
        %v5674 = vmul.f32 %v5450, %v5634
        %v5675 = vmul.f32 %v5451, %v5636
        %v5676 = vmul.f32 %v5452, %v5638
        %v5677 = vmul.f32 %v5453, %v5640
        %v5678 = vmul.f32 %v5454, %v5642
        %v5679 = vmul.f32 %v5455, %v5644
        %v5680 = vmul.f32 %v5456, %v5646
        %v5681 = vmul.f32 %v5457, %v5648
        %v5682 = vmul.f32 %v5458, %v5650
        %5683 = vst.msk [vmem:[%s290] sm:$0xff] %vm1336, %v5651
        %5684 = vst.msk [vmem:[%s290 + $0x8] sm:$0xff] %vm1336, %v5652
        %5685 = vst.msk [vmem:[%s290 + $0x10] sm:$0xff] %vm1336, %v5653
        %5686 = vst.msk [vmem:[%s290 + $0x18] sm:$0xff] %vm1336, %v5654
        %5687 = vst.msk [vmem:[%s290 + $0x20] sm:$0xff] %vm1336, %v5655
        %5688 = vst.msk [vmem:[%s290 + $0x28] sm:$0xff] %vm1336, %v5656
        %5689 = vst.msk [vmem:[%s290 + $0x30] sm:$0xff] %vm1336, %v5657
        %5690 = vst.msk [vmem:[%s290 + $0x38] sm:$0xff] %vm1336, %v5658
        %5691 = vst.msk [vmem:[%s290 + $0x40] sm:$0xff] %vm1336, %v5659
        %5692 = vst.msk [vmem:[%s290 + $0x48] sm:$0xff] %vm1336, %v5660
        %5693 = vst.msk [vmem:[%s290 + $0x50] sm:$0xff] %vm1336, %v5661
        %5694 = vst.msk [vmem:[%s290 + $0x58] sm:$0xff] %vm1336, %v5662
        %5695 = vst.msk [vmem:[%s290 + $0x60] sm:$0xff] %vm1336, %v5663
        %5696 = vst.msk [vmem:[%s290 + $0x68] sm:$0xff] %vm1336, %v5664
        %5697 = vst.msk [vmem:[%s290 + $0x70] sm:$0xff] %vm1336, %v5665
        %5698 = vst.msk [vmem:[%s290 + $0x78] sm:$0xff] %vm1336, %v5666
        %5699 = vst.msk [vmem:[%s290 + $0x80] sm:$0xff] %vm1336, %v5667
        %5700 = vst.msk [vmem:[%s290 + $0x88] sm:$0xff] %vm1336, %v5668
        %5701 = vst.msk [vmem:[%s290 + $0x90] sm:$0xff] %vm1336, %v5669
        %5702 = vst.msk [vmem:[%s290 + $0x98] sm:$0xff] %vm1336, %v5670
        %5703 = vst.msk [vmem:[%s290 + $0xa0] sm:$0xff] %vm1336, %v5671
        %5704 = vst.msk [vmem:[%s290 + $0xa8] sm:$0xff] %vm1336, %v5672
        %5705 = vst.msk [vmem:[%s290 + $0xb0] sm:$0xff] %vm1336, %v5673
        %5706 = vst.msk [vmem:[%s290 + $0xb8] sm:$0xff] %vm1336, %v5674
        %5707 = vst.msk [vmem:[%s290 + $0xc0] sm:$0xff] %vm1336, %v5675
        %5708 = vst.msk [vmem:[%s290 + $0xc8] sm:$0xff] %vm1336, %v5676
        %5709 = vst.msk [vmem:[%s290 + $0xd0] sm:$0xff] %vm1336, %v5677
        %5710 = vst.msk [vmem:[%s290 + $0xd8] sm:$0xff] %vm1336, %v5678
        %5711 = vst.msk [vmem:[%s290 + $0xe0] sm:$0xff] %vm1336, %v5679
        %5712 = vst.msk [vmem:[%s290 + $0xe8] sm:$0xff] %vm1336, %v5680
        %5713 = vst.msk [vmem:[%s290 + $0xf0] sm:$0xff] %vm1336, %v5681
        %5714 = vst.msk [vmem:[%s290 + $0xf8] sm:$0xff] %vm1336, %v5682
      $region60: #{tpu_custom_call.1} parent=47 // pred_fallthru
        _
      %p5715 = scmp.lt.s32.totalorder %s22, 1
      %s5716 = scalar_select %p5715, %s22, 1
      %s5717 = smul.addr %s5716, 32
      %s5718 = smul.addr %s5717, 8
      %s5719 = scalar_lea.vmem %s7, %s5718
      // Predicated region
      $region61: #{tpu_custom_call.1} parent=47 // pred_check
        %p5720 = pneg %p200
      $region62: #{tpu_custom_call.1} parent=47 // pred_check_branch
        %5722 = sbr.rel (%p5720) target = $region64
      $region63: #{tpu_custom_call.1} parent=47 // pred_region
        _
      $region64: #{tpu_custom_call.1} parent=47 // pred_fallthru
        _
    $region48: #{tpu_custom_call.1} parent=5 // pred_fallthru
      _
    %p5723 = scmp.le.s32.totalorder 2, %s13
    // Predicated region
    $region65: #{tpu_custom_call.1} parent=5 // pred_check
      %p5724 = pneg %p5723
    $region66: #{tpu_custom_call.1} parent=5 // pred_check_branch
      %5726 = sbr.rel (%p5724) target = $region68
    $region67: #{tpu_custom_call.1} parent=5 // pred_region
      %s5727 = ssub.s32 %s13, 2
      // Predicated region
      $region69: #{tpu_custom_call.1} parent=67 // pred_check
        %p5728 = pneg %p206
      $region70: #{tpu_custom_call.1} parent=67 // pred_check_branch
        %5730 = sbr.rel (%p5728) target = $region72
      $region71: #{tpu_custom_call.1} parent=67 // pred_region
        %p5731 = scmp.lt.s32.totalorder %s24, 1
        %s5732 = scalar_select %p5731, %s24, 1
        %s5733 = smul.addr %s5732, 32
        %s5734 = smul.addr %s5733, 8
        %s5735 = scalar_lea.vmem %s7, %s5734
      $region72: #{tpu_custom_call.1} parent=67 // pred_fallthru
        _
    $region68: #{tpu_custom_call.1} parent=5 // pred_fallthru
      _
  $region6: #{tpu_custom_call.1} parent=0 // loop_footer
    %s17 = sadd.s32 1, %s13
  $region7: #{tpu_custom_call.1} parent=0 // loop_footer_branch
    %12 = sbr.rel target = $region3
  $region8: #{tpu_custom_call.1} parent=0 // loop_exit
    _

</llo_original>
